<compile_context>
chip_gen: v6e
topology: v6e:2x2x1
jax: 0.10.0
libtpu: 0.0.40
codegen_flags: <defaults>
</compile_context>

<pallas_src>
import jax
import jax.numpy as jnp
from jax import lax
from jax.experimental import pallas as pl
from jax.experimental.pallas import tpu as pltpu

D_MODEL = 32
NUM_HEADS = 4
FFN_HIDDEN = 64
D_K = D_MODEL // NUM_HEADS
N_LAYERS = 2
EPS = 1e-6


# ---------------------------------------------------------------------------
# shared math helper
# ---------------------------------------------------------------------------
def _layer_norm(v):
    # nn.LayerNorm(d_model, eps=1e-6) with default affine init (gamma=1, beta=0)
    mu = jnp.mean(v, axis=-1, keepdims=True)
    var = jnp.mean((v - mu) ** 2, axis=-1, keepdims=True)
    return (v - mu) * lax.rsqrt(var + EPS)


# ---------------------------------------------------------------------------
# Pallas kernel: one ExtendedDecoderLayer, whole batch, single invocation
#   x_ref      : (B*S, D)           input, already flattened to the row layout used
#   w_attn_ref : (D, 4*D)           [wq | wk | wv | wo]
#   w_ffn_ref  : (D+HID, HID)       rows 0:D = w1 (D,HID); rows D:D+HID, cols 0:D = w2
#   bias_ref   : (1, 256)           [bq|bk|bv | bo | b1 | b2 | pad]
#   rel_ref    : (S+H, S, S)        rows 0:S = erel^T (per-query (DK,S) tables, DK==S),
#                                   rows S:S+H = per-head relative bias + causal -1e9
#   out_ref    : (B*S, D)
# ---------------------------------------------------------------------------
def decoder_layer_kernel(x_ref, w_attn_ref, w_ffn_ref, bias_ref, rel_ref, out_ref):
    R, D = x_ref.shape                 # R = B*S
    H = NUM_HEADS
    DK = D // H
    HID = w_ffn_ref.shape[1]
    S = rel_ref.shape[-1]
    B = R // S
    N = H * B
    scale = 1.0 / (DK ** 0.5)

    x = x_ref[...]                                        # (R, D)

    # ---- unpack packed weight / bias slabs (static, aligned slices) ----
    w_qkv = w_attn_ref[:, 0:3 * D]                        # (D, 3D)
    w_o   = w_attn_ref[:, 3 * D:4 * D]                    # (D, D)
    w1    = w_ffn_ref[0:D, :]                             # (D, HID)
    w2    = w_ffn_ref[D:D + HID, 0:D]                     # (HID, D)
    b_qkv = bias_ref[:, 0:3 * D]                          # (1, 3D)
    b_o   = bias_ref[:, 3 * D:4 * D]                      # (1, D)
    b_1   = bias_ref[:, 4 * D:4 * D + HID]                # (1, HID)
    b_2   = bias_ref[:, 4 * D + HID:5 * D + HID]          # (1, D)

    # ---- fused QKV projection: ONE (R,D)@(D,3D) MXU matmul ----
    qkv = jnp.dot(x, w_qkv, preferred_element_type=jnp.float32) + b_qkv   # (R, 3D)

    def split_heads(t2d):
        # (B*S, H*DK) -> (H*B, S, DK), head-major; leading-dim-only reshapes,
        # lane slices and a leading concat (all cheap / well-supported relayouts).
        t3 = t2d.reshape(B, S, H * DK)
        return jnp.concatenate(
            [t3[:, :, h * DK:(h + 1) * DK] for h in range(H)], axis=0)

    q = split_heads(qkv[:, 0:D])                          # (N, S, DK)
    k = split_heads(qkv[:, D:2 * D])
    v = split_heads(qkv[:, 2 * D:3 * D])

    # ---- head/batch-batched scores on the MXU (leading-batch form) ----
    scores = jnp.einsum('nqd,nkd->nqk', q, k,
                        preferred_element_type=jnp.float32)              # (N, S, S)

    # ---- rel-E on the MXU: unrolled S-step (N,DK)@(DK,S) matmuls ----
    rel_rows = [
        jnp.dot(q[:, i, :], rel_ref[i],
                preferred_element_type=jnp.float32)[:, None, :]          # (N, 1, S)
        for i in range(S)]
    rel_e = jnp.concatenate(rel_rows, axis=1)                            # (N, S, S)

    # per-head relative bias with the causal mask already folded in (additive -1e9)
    brel = rel_ref[S:S + H]                                              # (H, S, S)
    brel_b = jnp.broadcast_to(brel[:, None], (H, B, S, S)).reshape(N, S, S)

    scores = (scores + rel_e) * scale + brel_b

    # ---- softmax (EUP exp, approx reciprocal) ----
    scores = scores - jnp.max(scores, axis=-1, keepdims=True)
    p = jnp.exp(scores)
    p = p * pl.reciprocal(jnp.sum(p, axis=-1, keepdims=True), approx=True)

    ctx = jnp.einsum('nqk,nkd->nqd', p, v,
                     preferred_element_type=jnp.float32)                 # (N, S, DK)

    # ---- merge heads back to (B*S, H*DK): ONE output-projection matmul ----
    ctx4 = ctx.reshape(H, B, S, DK)
    ctx2d = jnp.concatenate([ctx4[h] for h in range(H)], axis=2).reshape(R, D)
    a_out = jnp.dot(ctx2d, w_o, preferred_element_type=jnp.float32) + b_o

    out1 = _layer_norm(x + a_out)        # dropout1 == identity at inference

    # Cross-attention intentionally not computed: the reference assigns
    # `a_output2 = self.dropout2(a_output)`, so the residual reuses a_out.
    ff_in = _layer_norm(out1 + a_out)

    # ---- feed forward: relu(x @ W1 + b1) @ W2 + b2, two plain 2-D matmuls ----
    h1 = jnp.maximum(jnp.dot(ff_in, w1, preferred_element_type=jnp.float32) + b_1, 0.0)
    ff = jnp.dot(h1, w2, preferred_element_type=jnp.float32) + b_2

    out_ref[...] = _layer_norm(ff_in + ff)


# ---------------------------------------------------------------------------
# wrapper-side parameter packing (cheap XLA ops, done once per layer)
# ---------------------------------------------------------------------------
def _pack_layer_operands(p, rel_ids, trg_mask):
    D, HID = D_MODEL, FFN_HIDDEN
    S = rel_ids.shape[0]

    # [wq | wk | wv | wo] -> (D, 4D) = (32, 128): one lane-dense weight slab
    w_attn = jnp.concatenate([p["wq"], p["wk"], p["wv"], p["wo"]], axis=1)

    # [w1 ; w2(zero-padded)] -> (D+HID, HID) = (96, 64)
    w2_pad = jnp.concatenate(
        [p["w2"], jnp.zeros((HID, HID - D), jnp.float32)], axis=1)
    w_ffn = jnp.concatenate([p["w1"], w2_pad], axis=0)

    # bias slab (1, 256): [bq|bk|bv | bo | b1 | b2 | pad]
    pad = jnp.zeros((1, 256 - (5 * D + HID)), jnp.float32)
    bias = jnp.concatenate(
        [p["bq"], p["bk"], p["bv"], p["bo"], p["b1"], p["b2"], pad], axis=1)

    # relative tables: erel^T per query position, and per-head bias + causal mask
    erel = p["e_table"][rel_ids]                                   # (S, S, DK)
    erel_t = jnp.transpose(erel, (0, 2, 1))                        # (S, DK, S)
    mask_bias = jnp.where(trg_mask > 0, 0.0, -1e9).astype(jnp.float32)
    brel = p["b_table"][:, rel_ids] + mask_bias[None]              # (H, S, S)
    assert D_K == S, "rel-table packing assumes d_k == seq_len (true for this demo)"
    rel = jnp.concatenate([erel_t, brel], axis=0)                  # (S+H, S, S)

    return w_attn, w_ffn, bias, rel


def extended_decoder_layer(x, enc_output, params, dec_relative_ids1,
                           dec2enc_relative_ids, src_mask=None, trg_mask=None):
    B, S, D = x.shape
    # Cross-attention output is discarded by the reference forward, so enc_output,
    # src_mask and dec2enc_relative_ids cannot influence the result.
    del enc_output, src_mask, dec2enc_relative_ids

    w_attn, w_ffn, bias, rel = _pack_layer_operands(params, dec_relative_ids1, trg_mask)
    x2d = x.reshape(B * S, D)          # pre-flattened to the row layout the kernel uses

    out2d = pl.pallas_call(
        decoder_layer_kernel,
        out_shape=jax.ShapeDtypeStruct((B * S, D), jnp.float32),
        in_specs=[pl.BlockSpec(memory_space=pltpu.MemorySpace.VMEM)] * 5,
        out_specs=pl.BlockSpec(memory_space=pltpu.MemorySpace.VMEM),
    )(x2d, w_attn, w_ffn, bias, rel)
    return out2d.reshape(B, S, D)


def extended_decoder(trg, enc_src, layer_params, dec_relative_ids1,
                     dec2enc_relative_ids, trg_mask=None, src_mask=None):
    # ExtendedDecoder.forward: sequentially apply the layers
    for p in layer_params:
        trg = extended_decoder_layer(trg, enc_src, p, dec_relative_ids1,
                                     dec2enc_relative_ids, src_mask, trg_mask)
    return trg


# ---------------------------------------------------------------------------
# pure-JAX reference (independent per-head formulation) for a sanity check
# ---------------------------------------------------------------------------
def ref_forward(trg, layer_params, rel_ids1, trg_mask):
    scale = 1.0 / (D_K ** 0.5)

    def layer_apply(x, p):
        erel = p["e_table"][rel_ids1]          # (S, S, DK)
        brel = p["b_table"][:, rel_ids1]       # (H, S, S)

        def mha_rel(xb):
            Q = xb @ p["wq"] + p["bq"]
            K = xb @ p["wk"] + p["bk"]
            V = xb @ p["wv"] + p["bv"]
            heads = []
            for h in range(NUM_HEADS):
                sl = slice(h * D_K, (h + 1) * D_K)
                qh, kh, vh = Q[:, sl], K[:, sl], V[:, sl]
                s = qh @ kh.T + jnp.sum(qh[:, None, :] * erel, axis=-1)
                s = s * scale + brel[h]
                s = jnp.where(trg_mask > 0, s, -1e9)
                s = s - jnp.max(s, axis=-1, keepdims=True)
                w = jnp.exp(s)
                w = w / jnp.sum(w, axis=-1, keepdims=True)
                heads.append(w @ vh)
            return jnp.concatenate(heads, axis=-1) @ p["wo"] + p["bo"]

        def one(xb):
            a_out = mha_rel(xb)
            out1 = _layer_norm(xb + a_out)
            ff_in = _layer_norm(out1 + a_out)      # cross-attn output is discarded
            hdn = jnp.maximum(ff_in @ p["w1"] + p["b1"], 0.0)
            ff = hdn @ p["w2"] + p["b2"]
            return _layer_norm(ff_in + ff)

        return jax.vmap(one)(x)

    for p in layer_params:
        trg = layer_apply(trg, p)
    return trg


# ---------------------------------------------------------------------------
# deterministic parameter init
# ---------------------------------------------------------------------------
def _xavier(key, fan_in, fan_out):
    lim = (6.0 / (fan_in + fan_out)) ** 0.5
    return jax.random.uniform(key, (fan_in, fan_out), jnp.float32, -lim, lim)


def init_layer_params(key, num_rel):
    ks = jax.random.split(key, 12)
    z = lambda n: jnp.zeros((1, n), jnp.float32)
    return {
        # self-attention (rel-eb) projections: y = x @ W + b, W is (in, out)
        "wq": _xavier(ks[0], D_MODEL, D_MODEL), "bq": z(D_MODEL),
        "wk": _xavier(ks[1], D_MODEL, D_MODEL), "bk": z(D_MODEL),
        "wv": _xavier(ks[2], D_MODEL, D_MODEL), "bv": z(D_MODEL),
        "wo": _xavier(ks[3], D_MODEL, D_MODEL), "bo": z(D_MODEL),
        # cross-attention weights exist in the module but its output is discarded
        # by the reference forward; kept only for parameter-count parity.
        "cwq": _xavier(ks[4], D_MODEL, D_MODEL), "cbq": z(D_MODEL),
        "cwk": _xavier(ks[5], D_MODEL, D_MODEL), "cbk": z(D_MODEL),
        # FeedForward: xavier weights, zero biases (per module __init__)
        "w1": _xavier(ks[6], D_MODEL, FFN_HIDDEN), "b1": z(FFN_HIDDEN),
        "w2": _xavier(ks[7], FFN_HIDDEN, D_MODEL), "b2": z(D_MODEL),
        # relative-position tables (Attention module init unknown -> small normals)
        "e_table": 0.02 * jax.random.normal(ks[8], (num_rel, D_K), jnp.float32),
        "b_table": 0.02 * jax.random.normal(ks[9], (NUM_HEADS, num_rel), jnp.float32),
    }


if __name__ == "__main__":
    B, S, T = 2, 8, 8

    key = jax.random.PRNGKey(0)
    keys = jax.random.split(key, 2 + N_LAYERS)
    k_x, k_enc, layer_keys = keys[0], keys[1], keys[2:]

    trg = jax.random.normal(k_x, (B, S, D_MODEL), jnp.float32)
    enc_src = jax.random.normal(k_enc, (B, T, D_MODEL), jnp.float32)

    num_rel = 2 * S - 1
    layer_params = [init_layer_params(k, num_rel) for k in layer_keys]

    pos = jnp.arange(S)
    dec_relative_ids1 = (pos[None, :] - pos[:, None]) + (S - 1)              # (S, S)
    dec2enc_relative_ids = (jnp.arange(T)[None, :] - pos[:, None]) + (S - 1)

    trg_mask = jnp.tril(jnp.ones((S, S), jnp.float32))    # causal decoder mask
    src_mask = jnp.ones((S, T), jnp.float32)              # no source masking

    out = extended_decoder(trg, enc_src, layer_params, dec_relative_ids1,
                           dec2enc_relative_ids, trg_mask, src_mask)
    out = jax.block_until_ready(out)

    ref = ref_forward(trg, layer_params, dec_relative_ids1, trg_mask)
    assert out.shape == (B, S, D_MODEL)
    assert jnp.allclose(out, ref, atol=5e-3, rtol=5e-3), (
        "mismatch vs JAX reference, max err="
        f"{jnp.max(jnp.abs(out - ref))}")

    print("KERNEL_OK")
</pallas_src>

<mosaic_0001>
module attributes {stable_mosaic.version = 11 : i64} {
  func.func @decoder_layer_kernel(%arg0: memref<16x32xf32, #tpu.memory_space<vmem>>, %arg1: memref<32x128xf32, #tpu.memory_space<vmem>>, %arg2: memref<96x64xf32, #tpu.memory_space<vmem>>, %arg3: memref<1x256xf32, #tpu.memory_space<vmem>>, %arg4: memref<12x8x8xf32, #tpu.memory_space<vmem>>, %arg5: memref<16x32xf32, #tpu.memory_space<vmem>>) attributes {dimension_semantics = [], scalar_prefetch = 0 : i64, scratch_operands = 0 : i64, tpu.core_type = #tpu.core_type<tc>} {
    %c0 = arith.constant 0 : index
    %c0_0 = arith.constant 0 : index
    %0 = vector.load %arg0[%c0, %c0_0] : memref<16x32xf32, #tpu.memory_space<vmem>>, vector<16x32xf32>
    %c0_1 = arith.constant 0 : index
    %c0_2 = arith.constant 0 : index
    %1 = vector.load %arg1[%c0_1, %c0_2] : memref<32x128xf32, #tpu.memory_space<vmem>>, vector<32x96xf32>
    %c0_3 = arith.constant 0 : index
    %c96 = arith.constant 96 : index
    %2 = vector.load %arg1[%c0_3, %c96] : memref<32x128xf32, #tpu.memory_space<vmem>>, vector<32x32xf32>
    %c0_4 = arith.constant 0 : index
    %c0_5 = arith.constant 0 : index
    %3 = vector.load %arg2[%c0_4, %c0_5] : memref<96x64xf32, #tpu.memory_space<vmem>>, vector<32x64xf32>
    %c32 = arith.constant 32 : index
    %c0_6 = arith.constant 0 : index
    %4 = vector.load %arg2[%c32, %c0_6] : memref<96x64xf32, #tpu.memory_space<vmem>>, vector<64x32xf32>
    %c0_7 = arith.constant 0 : index
    %c0_8 = arith.constant 0 : index
    %5 = vector.load %arg3[%c0_7, %c0_8] : memref<1x256xf32, #tpu.memory_space<vmem>>, vector<1x96xf32>
    %c0_9 = arith.constant 0 : index
    %c96_10 = arith.constant 96 : index
    %6 = vector.load %arg3[%c0_9, %c96_10] : memref<1x256xf32, #tpu.memory_space<vmem>>, vector<1x32xf32>
    %c0_11 = arith.constant 0 : index
    %c128 = arith.constant 128 : index
    %7 = vector.load %arg3[%c0_11, %c128] : memref<1x256xf32, #tpu.memory_space<vmem>>, vector<1x64xf32>
    %c0_12 = arith.constant 0 : index
    %c192 = arith.constant 192 : index
    %8 = vector.load %arg3[%c0_12, %c192] : memref<1x256xf32, #tpu.memory_space<vmem>>, vector<1x32xf32>
    %cst = arith.constant dense<0.000000e+00> : vector<16x96xf32>
    %9 = tpu.matmul %0, %1, %cst {dimension_numbers = #tpu.dot_dimension_numbers<[1], [0], [0], [1], [0, 0, 1, 1], [], []>} : vector<16x32xf32>, vector<32x96xf32>, vector<16x96xf32> -> vector<16x96xf32>
    %10 = vector.broadcast %5 : vector<1x96xf32> to vector<16x96xf32>
    %11 = arith.addf %9, %10 : vector<16x96xf32>
    %12 = vector.extract_strided_slice %11 {offsets = [0, 0], sizes = [16, 32], strides = [1, 1]} : vector<16x96xf32> to vector<16x32xf32>
    %13 = vector.shape_cast %12 : vector<16x32xf32> to vector<2x8x32xf32>
    %14 = vector.extract_strided_slice %13 {offsets = [0, 0, 0], sizes = [2, 8, 8], strides = [1, 1, 1]} : vector<2x8x32xf32> to vector<2x8x8xf32>
    %15 = vector.extract_strided_slice %13 {offsets = [0, 0, 8], sizes = [2, 8, 8], strides = [1, 1, 1]} : vector<2x8x32xf32> to vector<2x8x8xf32>
    %16 = vector.extract_strided_slice %13 {offsets = [0, 0, 16], sizes = [2, 8, 8], strides = [1, 1, 1]} : vector<2x8x32xf32> to vector<2x8x8xf32>
    %17 = vector.extract_strided_slice %13 {offsets = [0, 0, 24], sizes = [2, 8, 8], strides = [1, 1, 1]} : vector<2x8x32xf32> to vector<2x8x8xf32>
    %18 = tpu.concatenate %14, %15, %16, %17 in 0 : vector<2x8x8xf32>, vector<2x8x8xf32>, vector<2x8x8xf32>, vector<2x8x8xf32> -> vector<8x8x8xf32>
    %19 = vector.extract_strided_slice %11 {offsets = [0, 32], sizes = [16, 32], strides = [1, 1]} : vector<16x96xf32> to vector<16x32xf32>
    %20 = vector.shape_cast %19 : vector<16x32xf32> to vector<2x8x32xf32>
    %21 = vector.extract_strided_slice %20 {offsets = [0, 0, 0], sizes = [2, 8, 8], strides = [1, 1, 1]} : vector<2x8x32xf32> to vector<2x8x8xf32>
    %22 = vector.extract_strided_slice %20 {offsets = [0, 0, 8], sizes = [2, 8, 8], strides = [1, 1, 1]} : vector<2x8x32xf32> to vector<2x8x8xf32>
    %23 = vector.extract_strided_slice %20 {offsets = [0, 0, 16], sizes = [2, 8, 8], strides = [1, 1, 1]} : vector<2x8x32xf32> to vector<2x8x8xf32>
    %24 = vector.extract_strided_slice %20 {offsets = [0, 0, 24], sizes = [2, 8, 8], strides = [1, 1, 1]} : vector<2x8x32xf32> to vector<2x8x8xf32>
    %25 = tpu.concatenate %21, %22, %23, %24 in 0 : vector<2x8x8xf32>, vector<2x8x8xf32>, vector<2x8x8xf32>, vector<2x8x8xf32> -> vector<8x8x8xf32>
    %26 = vector.extract_strided_slice %11 {offsets = [0, 64], sizes = [16, 32], strides = [1, 1]} : vector<16x96xf32> to vector<16x32xf32>
    %27 = vector.shape_cast %26 : vector<16x32xf32> to vector<2x8x32xf32>
    %28 = vector.extract_strided_slice %27 {offsets = [0, 0, 0], sizes = [2, 8, 8], strides = [1, 1, 1]} : vector<2x8x32xf32> to vector<2x8x8xf32>
    %29 = vector.extract_strided_slice %27 {offsets = [0, 0, 8], sizes = [2, 8, 8], strides = [1, 1, 1]} : vector<2x8x32xf32> to vector<2x8x8xf32>
    %30 = vector.extract_strided_slice %27 {offsets = [0, 0, 16], sizes = [2, 8, 8], strides = [1, 1, 1]} : vector<2x8x32xf32> to vector<2x8x8xf32>
    %31 = vector.extract_strided_slice %27 {offsets = [0, 0, 24], sizes = [2, 8, 8], strides = [1, 1, 1]} : vector<2x8x32xf32> to vector<2x8x8xf32>
    %32 = tpu.concatenate %28, %29, %30, %31 in 0 : vector<2x8x8xf32>, vector<2x8x8xf32>, vector<2x8x8xf32>, vector<2x8x8xf32> -> vector<8x8x8xf32>
    "tpu.trace_start"() <{level = 10 : i32, message = "nqd,nkd->nqk"}> : () -> ()
    %cst_13 = arith.constant dense<0.000000e+00> : vector<8x8x8xf32>
    %33 = tpu.matmul %18, %25, %cst_13 {dimension_numbers = #tpu.dot_dimension_numbers<[2], [2], [1], [1], [0, 0, 0, 1, 1, 1], [0], [0]>} : vector<8x8x8xf32>, vector<8x8x8xf32>, vector<8x8x8xf32> -> vector<8x8x8xf32>
    "tpu.trace_stop"() : () -> ()
    %34 = vector.extract_strided_slice %18 {offsets = [0, 0, 0], sizes = [8, 1, 8], strides = [1, 1, 1]} : vector<8x8x8xf32> to vector<8x1x8xf32>
    %35 = vector.shape_cast %34 : vector<8x1x8xf32> to vector<8x8xf32>
    %c0_14 = arith.constant 0 : index
    %c0_15 = arith.constant 0 : index
    %c0_16 = arith.constant 0 : index
    %36 = vector.load %arg4[%c0_14, %c0_15, %c0_16] : memref<12x8x8xf32, #tpu.memory_space<vmem>>, vector<1x8x8xf32>
    %37 = vector.shape_cast %36 : vector<1x8x8xf32> to vector<8x8xf32>
    %cst_17 = arith.constant dense<0.000000e+00> : vector<8x8xf32>
    %38 = tpu.matmul %35, %37, %cst_17 {dimension_numbers = #tpu.dot_dimension_numbers<[1], [0], [0], [1], [0, 0, 1, 1], [], []>} : vector<8x8xf32>, vector<8x8xf32>, vector<8x8xf32> -> vector<8x8xf32>
    %39 = vector.shape_cast %38 : vector<8x8xf32> to vector<8x1x8xf32>
    %40 = vector.extract_strided_slice %18 {offsets = [0, 1, 0], sizes = [8, 1, 8], strides = [1, 1, 1]} : vector<8x8x8xf32> to vector<8x1x8xf32>
    %41 = vector.shape_cast %40 : vector<8x1x8xf32> to vector<8x8xf32>
    %c1 = arith.constant 1 : index
    %c0_18 = arith.constant 0 : index
    %c0_19 = arith.constant 0 : index
    %42 = vector.load %arg4[%c1, %c0_18, %c0_19] : memref<12x8x8xf32, #tpu.memory_space<vmem>>, vector<1x8x8xf32>
    %43 = vector.shape_cast %42 : vector<1x8x8xf32> to vector<8x8xf32>
    %cst_20 = arith.constant dense<0.000000e+00> : vector<8x8xf32>
    %44 = tpu.matmul %41, %43, %cst_20 {dimension_numbers = #tpu.dot_dimension_numbers<[1], [0], [0], [1], [0, 0, 1, 1], [], []>} : vector<8x8xf32>, vector<8x8xf32>, vector<8x8xf32> -> vector<8x8xf32>
    %45 = vector.shape_cast %44 : vector<8x8xf32> to vector<8x1x8xf32>
    %46 = vector.extract_strided_slice %18 {offsets = [0, 2, 0], sizes = [8, 1, 8], strides = [1, 1, 1]} : vector<8x8x8xf32> to vector<8x1x8xf32>
    %47 = vector.shape_cast %46 : vector<8x1x8xf32> to vector<8x8xf32>
    %c2 = arith.constant 2 : index
    %c0_21 = arith.constant 0 : index
    %c0_22 = arith.constant 0 : index
    %48 = vector.load %arg4[%c2, %c0_21, %c0_22] : memref<12x8x8xf32, #tpu.memory_space<vmem>>, vector<1x8x8xf32>
    %49 = vector.shape_cast %48 : vector<1x8x8xf32> to vector<8x8xf32>
    %cst_23 = arith.constant dense<0.000000e+00> : vector<8x8xf32>
    %50 = tpu.matmul %47, %49, %cst_23 {dimension_numbers = #tpu.dot_dimension_numbers<[1], [0], [0], [1], [0, 0, 1, 1], [], []>} : vector<8x8xf32>, vector<8x8xf32>, vector<8x8xf32> -> vector<8x8xf32>
    %51 = vector.shape_cast %50 : vector<8x8xf32> to vector<8x1x8xf32>
    %52 = vector.extract_strided_slice %18 {offsets = [0, 3, 0], sizes = [8, 1, 8], strides = [1, 1, 1]} : vector<8x8x8xf32> to vector<8x1x8xf32>
    %53 = vector.shape_cast %52 : vector<8x1x8xf32> to vector<8x8xf32>
    %c3 = arith.constant 3 : index
    %c0_24 = arith.constant 0 : index
    %c0_25 = arith.constant 0 : index
    %54 = vector.load %arg4[%c3, %c0_24, %c0_25] : memref<12x8x8xf32, #tpu.memory_space<vmem>>, vector<1x8x8xf32>
    %55 = vector.shape_cast %54 : vector<1x8x8xf32> to vector<8x8xf32>
    %cst_26 = arith.constant dense<0.000000e+00> : vector<8x8xf32>
    %56 = tpu.matmul %53, %55, %cst_26 {dimension_numbers = #tpu.dot_dimension_numbers<[1], [0], [0], [1], [0, 0, 1, 1], [], []>} : vector<8x8xf32>, vector<8x8xf32>, vector<8x8xf32> -> vector<8x8xf32>
    %57 = vector.shape_cast %56 : vector<8x8xf32> to vector<8x1x8xf32>
    %58 = vector.extract_strided_slice %18 {offsets = [0, 4, 0], sizes = [8, 1, 8], strides = [1, 1, 1]} : vector<8x8x8xf32> to vector<8x1x8xf32>
    %59 = vector.shape_cast %58 : vector<8x1x8xf32> to vector<8x8xf32>
    %c4 = arith.constant 4 : index
    %c0_27 = arith.constant 0 : index
    %c0_28 = arith.constant 0 : index
    %60 = vector.load %arg4[%c4, %c0_27, %c0_28] : memref<12x8x8xf32, #tpu.memory_space<vmem>>, vector<1x8x8xf32>
    %61 = vector.shape_cast %60 : vector<1x8x8xf32> to vector<8x8xf32>
    %cst_29 = arith.constant dense<0.000000e+00> : vector<8x8xf32>
    %62 = tpu.matmul %59, %61, %cst_29 {dimension_numbers = #tpu.dot_dimension_numbers<[1], [0], [0], [1], [0, 0, 1, 1], [], []>} : vector<8x8xf32>, vector<8x8xf32>, vector<8x8xf32> -> vector<8x8xf32>
    %63 = vector.shape_cast %62 : vector<8x8xf32> to vector<8x1x8xf32>
    %64 = vector.extract_strided_slice %18 {offsets = [0, 5, 0], sizes = [8, 1, 8], strides = [1, 1, 1]} : vector<8x8x8xf32> to vector<8x1x8xf32>
    %65 = vector.shape_cast %64 : vector<8x1x8xf32> to vector<8x8xf32>
    %c5 = arith.constant 5 : index
    %c0_30 = arith.constant 0 : index
    %c0_31 = arith.constant 0 : index
    %66 = vector.load %arg4[%c5, %c0_30, %c0_31] : memref<12x8x8xf32, #tpu.memory_space<vmem>>, vector<1x8x8xf32>
    %67 = vector.shape_cast %66 : vector<1x8x8xf32> to vector<8x8xf32>
    %cst_32 = arith.constant dense<0.000000e+00> : vector<8x8xf32>
    %68 = tpu.matmul %65, %67, %cst_32 {dimension_numbers = #tpu.dot_dimension_numbers<[1], [0], [0], [1], [0, 0, 1, 1], [], []>} : vector<8x8xf32>, vector<8x8xf32>, vector<8x8xf32> -> vector<8x8xf32>
    %69 = vector.shape_cast %68 : vector<8x8xf32> to vector<8x1x8xf32>
    %70 = vector.extract_strided_slice %18 {offsets = [0, 6, 0], sizes = [8, 1, 8], strides = [1, 1, 1]} : vector<8x8x8xf32> to vector<8x1x8xf32>
    %71 = vector.shape_cast %70 : vector<8x1x8xf32> to vector<8x8xf32>
    %c6 = arith.constant 6 : index
    %c0_33 = arith.constant 0 : index
    %c0_34 = arith.constant 0 : index
    %72 = vector.load %arg4[%c6, %c0_33, %c0_34] : memref<12x8x8xf32, #tpu.memory_space<vmem>>, vector<1x8x8xf32>
    %73 = vector.shape_cast %72 : vector<1x8x8xf32> to vector<8x8xf32>
    %cst_35 = arith.constant dense<0.000000e+00> : vector<8x8xf32>
    %74 = tpu.matmul %71, %73, %cst_35 {dimension_numbers = #tpu.dot_dimension_numbers<[1], [0], [0], [1], [0, 0, 1, 1], [], []>} : vector<8x8xf32>, vector<8x8xf32>, vector<8x8xf32> -> vector<8x8xf32>
    %75 = vector.shape_cast %74 : vector<8x8xf32> to vector<8x1x8xf32>
    %76 = vector.extract_strided_slice %18 {offsets = [0, 7, 0], sizes = [8, 1, 8], strides = [1, 1, 1]} : vector<8x8x8xf32> to vector<8x1x8xf32>
    %77 = vector.shape_cast %76 : vector<8x1x8xf32> to vector<8x8xf32>
    %c7 = arith.constant 7 : index
    %c0_36 = arith.constant 0 : index
    %c0_37 = arith.constant 0 : index
    %78 = vector.load %arg4[%c7, %c0_36, %c0_37] : memref<12x8x8xf32, #tpu.memory_space<vmem>>, vector<1x8x8xf32>
    %79 = vector.shape_cast %78 : vector<1x8x8xf32> to vector<8x8xf32>
    %cst_38 = arith.constant dense<0.000000e+00> : vector<8x8xf32>
    %80 = tpu.matmul %77, %79, %cst_38 {dimension_numbers = #tpu.dot_dimension_numbers<[1], [0], [0], [1], [0, 0, 1, 1], [], []>} : vector<8x8xf32>, vector<8x8xf32>, vector<8x8xf32> -> vector<8x8xf32>
    %81 = vector.shape_cast %80 : vector<8x8xf32> to vector<8x1x8xf32>
    %82 = tpu.concatenate %39, %45, %51, %57, %63, %69, %75, %81 in 1 : vector<8x1x8xf32>, vector<8x1x8xf32>, vector<8x1x8xf32>, vector<8x1x8xf32>, vector<8x1x8xf32>, vector<8x1x8xf32>, vector<8x1x8xf32>, vector<8x1x8xf32> -> vector<8x8x8xf32>
    %c8 = arith.constant 8 : index
    %c0_39 = arith.constant 0 : index
    %c0_40 = arith.constant 0 : index
    %83 = vector.load %arg4[%c8, %c0_39, %c0_40] : memref<12x8x8xf32, #tpu.memory_space<vmem>>, vector<4x8x8xf32>
    %84 = vector.shape_cast %83 : vector<4x8x8xf32> to vector<4x1x8x8xf32>
    %85 = vector.shape_cast %84 : vector<4x1x8x8xf32> to vector<4x1x8x8xf32>
    %86 = vector.broadcast %85 : vector<4x1x8x8xf32> to vector<4x2x8x8xf32>
    %87 = vector.shape_cast %86 : vector<4x2x8x8xf32> to vector<8x8x8xf32>
    %88 = arith.addf %33, %82 : vector<8x8x8xf32>
    %cst_41 = arith.constant 0.353553385 : f32
    %89 = vector.broadcast %cst_41 : f32 to vector<8x8x8xf32>
    %90 = arith.mulf %88, %89 : vector<8x8x8xf32>
    %91 = arith.addf %90, %87 : vector<8x8x8xf32>
    %cst_42 = arith.constant dense<0xFF800000> : vector<8x8xf32>
    %92 = vector.multi_reduction <maximumf>, %91, %cst_42 [2] : vector<8x8x8xf32> to vector<8x8xf32>
    %93 = vector.shape_cast %92 : vector<8x8xf32> to vector<8x8x1xf32>
    %94 = vector.broadcast %93 : vector<8x8x1xf32> to vector<8x8x8xf32>
    %95 = arith.subf %91, %94 : vector<8x8x8xf32>
    %96 = math.exp %95 : vector<8x8x8xf32>
    %cst_43 = arith.constant dense<0.000000e+00> : vector<8x8xf32>
    %97 = vector.multi_reduction <add>, %96, %cst_43 [2] : vector<8x8x8xf32> to vector<8x8xf32>
    %98 = vector.shape_cast %97 : vector<8x8xf32> to vector<8x8x1xf32>
    %99 = tpu.reciprocal %98 {approx = true} : vector<8x8x1xf32> -> vector<8x8x1xf32>
    %100 = vector.broadcast %99 : vector<8x8x1xf32> to vector<8x8x8xf32>
    %101 = arith.mulf %96, %100 : vector<8x8x8xf32>
    "tpu.trace_start"() <{level = 10 : i32, message = "nqk,nkd->nqd"}> : () -> ()
    %cst_44 = arith.constant dense<0.000000e+00> : vector<8x8x8xf32>
    %102 = tpu.matmul %101, %32, %cst_44 {dimension_numbers = #tpu.dot_dimension_numbers<[2], [1], [1], [2], [0, 0, 0, 1, 1, 2], [0], [0]>} : vector<8x8x8xf32>, vector<8x8x8xf32>, vector<8x8x8xf32> -> vector<8x8x8xf32>
    "tpu.trace_stop"() : () -> ()
    %103 = vector.shape_cast %102 : vector<8x8x8xf32> to vector<4x2x8x8xf32>
    %104 = vector.extract_strided_slice %103 {offsets = [0, 0, 0, 0], sizes = [1, 2, 8, 8], strides = [1, 1, 1, 1]} : vector<4x2x8x8xf32> to vector<1x2x8x8xf32>
    %105 = vector.shape_cast %104 : vector<1x2x8x8xf32> to vector<2x8x8xf32>
    %106 = vector.extract_strided_slice %103 {offsets = [1, 0, 0, 0], sizes = [1, 2, 8, 8], strides = [1, 1, 1, 1]} : vector<4x2x8x8xf32> to vector<1x2x8x8xf32>
    %107 = vector.shape_cast %106 : vector<1x2x8x8xf32> to vector<2x8x8xf32>
    %108 = vector.extract_strided_slice %103 {offsets = [2, 0, 0, 0], sizes = [1, 2, 8, 8], strides = [1, 1, 1, 1]} : vector<4x2x8x8xf32> to vector<1x2x8x8xf32>
    %109 = vector.shape_cast %108 : vector<1x2x8x8xf32> to vector<2x8x8xf32>
    %110 = vector.extract_strided_slice %103 {offsets = [3, 0, 0, 0], sizes = [1, 2, 8, 8], strides = [1, 1, 1, 1]} : vector<4x2x8x8xf32> to vector<1x2x8x8xf32>
    %111 = vector.shape_cast %110 : vector<1x2x8x8xf32> to vector<2x8x8xf32>
    %112 = tpu.concatenate %105, %107, %109, %111 in 2 : vector<2x8x8xf32>, vector<2x8x8xf32>, vector<2x8x8xf32>, vector<2x8x8xf32> -> vector<2x8x32xf32>
    %113 = vector.shape_cast %112 : vector<2x8x32xf32> to vector<16x32xf32>
    %cst_45 = arith.constant dense<0.000000e+00> : vector<16x32xf32>
    %114 = tpu.matmul %113, %2, %cst_45 {dimension_numbers = #tpu.dot_dimension_numbers<[1], [0], [0], [1], [0, 0, 1, 1], [], []>} : vector<16x32xf32>, vector<32x32xf32>, vector<16x32xf32> -> vector<16x32xf32>
    %115 = vector.broadcast %6 : vector<1x32xf32> to vector<16x32xf32>
    %116 = arith.addf %114, %115 : vector<16x32xf32>
    %117 = arith.addf %0, %116 : vector<16x32xf32>
    %cst_46 = arith.constant dense<0.000000e+00> : vector<16xf32>
    %118 = vector.multi_reduction <add>, %117, %cst_46 [1] : vector<16x32xf32> to vector<16xf32>
    %119 = vector.shape_cast %118 : vector<16xf32> to vector<16x1xf32>
    %cst_47 = arith.constant 3.200000e+01 : f32
    %120 = vector.broadcast %cst_47 : f32 to vector<16x1xf32>
    %121 = arith.divf %119, %120 : vector<16x1xf32>
    %122 = vector.broadcast %121 : vector<16x1xf32> to vector<16x32xf32>
    %123 = arith.subf %117, %122 : vector<16x32xf32>
    %124 = arith.mulf %123, %123 : vector<16x32xf32>
    %cst_48 = arith.constant dense<0.000000e+00> : vector<16xf32>
    %125 = vector.multi_reduction <add>, %124, %cst_48 [1] : vector<16x32xf32> to vector<16xf32>
    %126 = vector.shape_cast %125 : vector<16xf32> to vector<16x1xf32>
    %cst_49 = arith.constant 3.200000e+01 : f32
    %127 = vector.broadcast %cst_49 : f32 to vector<16x1xf32>
    %128 = arith.divf %126, %127 : vector<16x1xf32>
    %129 = vector.broadcast %121 : vector<16x1xf32> to vector<16x32xf32>
    %130 = arith.subf %117, %129 : vector<16x32xf32>
    %cst_50 = arith.constant 9.99999997E-7 : f32
    %131 = vector.broadcast %cst_50 : f32 to vector<16x1xf32>
    %132 = arith.addf %128, %131 : vector<16x1xf32>
    %133 = math.rsqrt %132 : vector<16x1xf32>
    %134 = vector.broadcast %133 : vector<16x1xf32> to vector<16x32xf32>
    %135 = arith.mulf %130, %134 : vector<16x32xf32>
    %136 = arith.addf %135, %116 : vector<16x32xf32>
    %cst_51 = arith.constant dense<0.000000e+00> : vector<16xf32>
    %137 = vector.multi_reduction <add>, %136, %cst_51 [1] : vector<16x32xf32> to vector<16xf32>
    %138 = vector.shape_cast %137 : vector<16xf32> to vector<16x1xf32>
    %cst_52 = arith.constant 3.200000e+01 : f32
    %139 = vector.broadcast %cst_52 : f32 to vector<16x1xf32>
    %140 = arith.divf %138, %139 : vector<16x1xf32>
    %141 = vector.broadcast %140 : vector<16x1xf32> to vector<16x32xf32>
    %142 = arith.subf %136, %141 : vector<16x32xf32>
    %143 = arith.mulf %142, %142 : vector<16x32xf32>
    %cst_53 = arith.constant dense<0.000000e+00> : vector<16xf32>
    %144 = vector.multi_reduction <add>, %143, %cst_53 [1] : vector<16x32xf32> to vector<16xf32>
    %145 = vector.shape_cast %144 : vector<16xf32> to vector<16x1xf32>
    %cst_54 = arith.constant 3.200000e+01 : f32
    %146 = vector.broadcast %cst_54 : f32 to vector<16x1xf32>
    %147 = arith.divf %145, %146 : vector<16x1xf32>
    %148 = vector.broadcast %140 : vector<16x1xf32> to vector<16x32xf32>
    %149 = arith.subf %136, %148 : vector<16x32xf32>
    %cst_55 = arith.constant 9.99999997E-7 : f32
    %150 = vector.broadcast %cst_55 : f32 to vector<16x1xf32>
    %151 = arith.addf %147, %150 : vector<16x1xf32>
    %152 = math.rsqrt %151 : vector<16x1xf32>
    %153 = vector.broadcast %152 : vector<16x1xf32> to vector<16x32xf32>
    %154 = arith.mulf %149, %153 : vector<16x32xf32>
    %cst_56 = arith.constant dense<0.000000e+00> : vector<16x64xf32>
    %155 = tpu.matmul %154, %3, %cst_56 {dimension_numbers = #tpu.dot_dimension_numbers<[1], [0], [0], [1], [0, 0, 1, 1], [], []>} : vector<16x32xf32>, vector<32x64xf32>, vector<16x64xf32> -> vector<16x64xf32>
    %156 = vector.broadcast %7 : vector<1x64xf32> to vector<16x64xf32>
    %157 = arith.addf %155, %156 : vector<16x64xf32>
    %cst_57 = arith.constant 0.000000e+00 : f32
    %158 = vector.broadcast %cst_57 : f32 to vector<16x64xf32>
    %159 = arith.maximumf %157, %158 : vector<16x64xf32>
    %cst_58 = arith.constant dense<0.000000e+00> : vector<16x32xf32>
    %160 = tpu.matmul %159, %4, %cst_58 {dimension_numbers = #tpu.dot_dimension_numbers<[1], [0], [0], [1], [0, 0, 1, 1], [], []>} : vector<16x64xf32>, vector<64x32xf32>, vector<16x32xf32> -> vector<16x32xf32>
    %161 = vector.broadcast %8 : vector<1x32xf32> to vector<16x32xf32>
    %162 = arith.addf %160, %161 : vector<16x32xf32>
    %163 = arith.addf %154, %162 : vector<16x32xf32>
    %cst_59 = arith.constant dense<0.000000e+00> : vector<16xf32>
    %164 = vector.multi_reduction <add>, %163, %cst_59 [1] : vector<16x32xf32> to vector<16xf32>
    %165 = vector.shape_cast %164 : vector<16xf32> to vector<16x1xf32>
    %cst_60 = arith.constant 3.200000e+01 : f32
    %166 = vector.broadcast %cst_60 : f32 to vector<16x1xf32>
    %167 = arith.divf %165, %166 : vector<16x1xf32>
    %168 = vector.broadcast %167 : vector<16x1xf32> to vector<16x32xf32>
    %169 = arith.subf %163, %168 : vector<16x32xf32>
    %170 = arith.mulf %169, %169 : vector<16x32xf32>
    %cst_61 = arith.constant dense<0.000000e+00> : vector<16xf32>
    %171 = vector.multi_reduction <add>, %170, %cst_61 [1] : vector<16x32xf32> to vector<16xf32>
    %172 = vector.shape_cast %171 : vector<16xf32> to vector<16x1xf32>
    %cst_62 = arith.constant 3.200000e+01 : f32
    %173 = vector.broadcast %cst_62 : f32 to vector<16x1xf32>
    %174 = arith.divf %172, %173 : vector<16x1xf32>
    %175 = vector.broadcast %167 : vector<16x1xf32> to vector<16x32xf32>
    %176 = arith.subf %163, %175 : vector<16x32xf32>
    %cst_63 = arith.constant 9.99999997E-7 : f32
    %177 = vector.broadcast %cst_63 : f32 to vector<16x1xf32>
    %178 = arith.addf %174, %177 : vector<16x1xf32>
    %179 = math.rsqrt %178 : vector<16x1xf32>
    %180 = vector.broadcast %179 : vector<16x1xf32> to vector<16x32xf32>
    %181 = arith.mulf %176, %180 : vector<16x32xf32>
    %c0_64 = arith.constant 0 : index
    %c0_65 = arith.constant 0 : index
    %182 = vector.load %arg5[%c0_64, %c0_65] : memref<16x32xf32, #tpu.memory_space<vmem>>, vector<16x32xf32>
    tpu.vector_store %arg5[%c0_64, %c0_65], %181 {strides = array<i32>} : memref<16x32xf32, #tpu.memory_space<vmem>>, vector<16x32xf32>,
    return
  }
}

</mosaic_0001>

<llo_original>
// kernel: tpu_custom_call.1
$region0: #{tpu_custom_call.1}
  #allocation0 [shape = 'u32[]', space=smem, size = 0x4, offset = 0x4, fixed_abs, tag = 'smem constant byte address 0x4 - core index']
  #allocation1 [shape = 'u32[144,128]{1,0:T(1,128)}', space=vmem, size = 0x12000, scoped, tag = 'internal scratch']
  %s0 = inlined_call_operand.vmem [shape: f32[16,32], index: 0, kind: input, shape index: {}]
  %s1 = inlined_call_operand.vmem [shape: f32[32,128], index: 1, kind: input, shape index: {}]
  %s2 = inlined_call_operand.vmem [shape: f32[96,64], index: 2, kind: input, shape index: {}]
  %s3 = inlined_call_operand.vmem [shape: f32[1,256], index: 3, kind: input, shape index: {}]
  %s4 = inlined_call_operand.vmem [shape: f32[12,8,8], index: 4, kind: input, shape index: {}]
  %s5 = inlined_call_operand.hbm [shape: f32[16,32], index: 5, kind: output, shape index: {}]
  %s6 = sld [smem:[#allocation0]]
  $region30: #{tpu_custom_call.1} parent=0
    _
  %s8 = ssub.s32 1, %s6
  %s9 = scalar_select 0, %s8, %s6
  $region1: #{tpu_custom_call.1} parent=0
    #allocation2 [shape = 'u8[8192]{0}', space=vmem, size = 0x2000, scoped, tag = 'output window, operand 0, single buffered']
    #allocation3 [shape = 's32[1]{0}', space=sflag, size = 0x4, scoped, tag = 'scoped memory for tpu_custom_call.1']
    %10 = vsyncpa [#allocation3], 0
    // Predicated region
    $region2: #{tpu_custom_call.1} parent=1 // pred_check
      _
    $region3: #{tpu_custom_call.1} parent=1 // pred_check_branch
      %12 = sbr.rel (0) target = $region5
    $region4: #{tpu_custom_call.1} parent=1 // pred_region
      _
    $region5: #{tpu_custom_call.1} parent=1 // pred_fallthru
      _
    // Predicated region
    $region6: #{tpu_custom_call.1} parent=1 // pred_check
      _
    $region7: #{tpu_custom_call.1} parent=1 // pred_check_branch
      %14 = sbr.rel (0) target = $region9
    $region8: #{tpu_custom_call.1} parent=1 // pred_region
      _
    $region9: #{tpu_custom_call.1} parent=1 // pred_fallthru
      _
    // Predicated region
    $region10: #{tpu_custom_call.1} parent=1 // pred_check
      _
    $region11: #{tpu_custom_call.1} parent=1 // pred_check_branch
      %16 = sbr.rel (0) target = $region13
    $region12: #{tpu_custom_call.1} parent=1 // pred_region
      _
    $region13: #{tpu_custom_call.1} parent=1 // pred_fallthru
      _
    // Predicated region
    $region14: #{tpu_custom_call.1} parent=1 // pred_check
      _
    $region15: #{tpu_custom_call.1} parent=1 // pred_check_branch
      %18 = sbr.rel (0) target = $region17
    $region16: #{tpu_custom_call.1} parent=1 // pred_region
      _
    $region17: #{tpu_custom_call.1} parent=1 // pred_fallthru
      _
    // Predicated region
    $region18: #{tpu_custom_call.1} parent=1 // pred_check
      _
    $region19: #{tpu_custom_call.1} parent=1 // pred_check_branch
      %20 = sbr.rel (0) target = $region21
    $region20: #{tpu_custom_call.1} parent=1 // pred_region
      _
    $region21: #{tpu_custom_call.1} parent=1 // pred_fallthru
      _
    %v21 = vld [vmem:[%s0] sm:$0xff]
    %v22 = vld [vmem:[%s0 + $0x8] sm:$0xff]
    %v23 = vld [vmem:[%s1] sm:$0xff]
    %v24 = vld [vmem:[%s1 + $0x8] sm:$0xff]
    %v25 = vld [vmem:[%s1 + $0x10] sm:$0xff]
    %v26 = vld [vmem:[%s1 + $0x18] sm:$0xff]
    %v27 = vld [vmem:[%s2] sm:$0xff]
    %v28 = vld [vmem:[%s2 + $0x8] sm:$0xff]
    %v29 = vld [vmem:[%s2 + $0x10] sm:$0xff]
    %v30 = vld [vmem:[%s2 + $0x18] sm:$0xff]
    %v31 = vld [vmem:[%s2 + $0x20] sm:$0xff]
    %v32 = vld [vmem:[%s2 + $0x28] sm:$0xff]
    %v33 = vld [vmem:[%s2 + $0x30] sm:$0xff]
    %v34 = vld [vmem:[%s2 + $0x38] sm:$0xff]
    %v35 = vld [vmem:[%s2 + $0x40] sm:$0xff]
    %v36 = vld [vmem:[%s2 + $0x48] sm:$0xff]
    %v37 = vld [vmem:[%s2 + $0x50] sm:$0xff]
    %v38 = vld [vmem:[%s2 + $0x58] sm:$0xff]
    %v39 = vld [vmem:[%s3] sm:$0x1]
    %v40 = vld [vmem:[%s3 + $0x1] sm:$0x1]
    %v42 = vlaneseq
    %v43 = vshrl.u32 %v42, 7
    %v44 = vsub.s32 0, %v43
    %v45 = vrot.slane %v39, %v44
    %vm47 = vcmask 261120
    %v49 = vsel %vm47, %v21, 0
    %v52 = vsel %vm47, %v22, 0
    %54 = vmatprep.subr.mxu0 0.0
    %55 = vmatpush1.msra.mxu0 0.0
    %56 = vmatprep.subr.mxu0 0.0
    %57 = vmatpush1.msra.mxu0 0.0
    %58 = vmatprep.subr.mxu0 0.0
    %59 = vmatpush1.msra.mxu0 0.0
    %60 = vmatprep.subr.mxu0 0.0
    %61 = vmatpush1.msra.mxu0 0.0
    %62 = vmatprep.subr.mxu0 0.0
    %63 = vmatpush1.msra.mxu0 0.0
    %64 = vmatprep.subr.mxu0 0.0
    %65 = vmatpush1.msra.mxu0 0.0
    %66 = vmatprep.subr.mxu0 0.0
    %67 = vmatpush1.msra.mxu0 0.0
    %68 = vmatprep.subr.mxu0 0.0
    %69 = vmatpush1.msra.mxu0 0.0
    %70 = vmatprep.subr.mxu0 0.0
    %71 = vmatpush1.msra.mxu0 0.0
    %72 = vmatprep.subr.mxu0 0.0
    %73 = vmatpush1.msra.mxu0 0.0
    %74 = vmatprep.subr.mxu0 0.0
    %75 = vmatpush1.msra.mxu0 0.0
    %76 = vmatprep.subr.mxu0 0.0
    %77 = vmatpush1.msra.mxu0 0.0
    %78 = vmatprep.subr.mxu0 0.0
    %79 = vmatpush1.msra.mxu0 %v26
    %80 = vmatprep.subr.mxu0 0.0
    %81 = vmatpush1.msra.mxu0 %v25
    %82 = vmatprep.subr.mxu0 0.0
    %83 = vmatpush1.msra.mxu0 %v24
    %84 = vmatprep.subr.mxu0 0.0
    %85 = vmatpush1.msra.mxu0 %v23
    %86 = vmatprep.subr.mxu0 0.0
    %87 = vmatpush2.msra.mxu0 0.0
    %88 = vmatprep.subr.mxu0 0.0
    %89 = vmatpush2.msra.mxu0 0.0
    %90 = vmatprep.subr.mxu0 0.0
    %91 = vmatpush2.msra.mxu0 0.0
    %92 = vmatprep.subr.mxu0 0.0
    %93 = vmatpush2.msra.mxu0 0.0
    %94 = vmatprep.subr.mxu0 0.0
    %95 = vmatpush2.msra.mxu0 0.0
    %96 = vmatprep.subr.mxu0 0.0
    %97 = vmatpush2.msra.mxu0 0.0
    %98 = vmatprep.subr.mxu0 0.0
    %99 = vmatpush2.msra.mxu0 0.0
    %100 = vmatprep.subr.mxu0 0.0
    %101 = vmatpush2.msra.mxu0 0.0
    %102 = vmatprep.subr.mxu0 0.0
    %103 = vmatpush2.msra.mxu0 0.0
    %104 = vmatprep.subr.mxu0 0.0
    %105 = vmatpush2.msra.mxu0 0.0
    %106 = vmatprep.subr.mxu0 0.0
    %107 = vmatpush2.msra.mxu0 0.0
    %108 = vmatprep.subr.mxu0 0.0
    %109 = vmatpush2.msra.mxu0 0.0
    %110 = vmatprep.subr.mxu0 0.0
    %111 = vmatpush2.msra.mxu0 0.0
    %112 = vmatprep.subr.mxu0 0.0
    %113 = vmatpush2.msra.mxu0 0.0
    %114 = vmatprep.subr.mxu0 0.0
    %115 = vmatpush2.msra.mxu0 0.0
    %116 = vmatprep.subr.mxu0 0.0
    %117 = vmatpush2.msra.mxu0 0.0
    %118 = vmatprep.mubr.f32.mxu0 0.0
    %119 = vmatmul.mubr.f32.gmra.mxu0 %v49
    %v120 = vpop.f32.mrf.mxu0
    %v121 = vadd.f32 %v45, %v120
    %v122 = vpop.f32.mrf.mxu0
    %123 = vmatprep.mubr.f32.mxu0 0.0
    %124 = vmatmul.mubr.f32.gmra.mxu0 %v52
    %v125 = vpop.f32.mrf.mxu0
    %v126 = vadd.f32 %v45, %v125
    %v127 = vpop.f32.mrf.mxu0
    %128 = vdwg.mxu0
    %131 = vrot.lane.b32.xlu0 %v121, 120
    %v132 = vpop.permute.xlu0 %131
    %133 = vrot.lane.b32.xlu0 %v126, 120
    %v134 = vpop.permute.xlu0 %133
    %135 = vrot.lane.b32.xlu0 %v121, 112
    %v136 = vpop.permute.xlu0 %135
    %137 = vrot.lane.b32.xlu0 %v126, 112
    %v138 = vpop.permute.xlu0 %137
    %139 = vrot.lane.b32.xlu0 %v121, 104
    %v140 = vpop.permute.xlu0 %139
    %141 = vrot.lane.b32.xlu0 %v126, 104
    %v142 = vpop.permute.xlu0 %141
    %v143 = vld [vmem:[%s4] sm:$0xff]
    %v144 = vrot.slane %v126, 7
    %vm145 = vcmask 1041409
    %v146 = vsel %vm145, %v144, %v121
    %v147 = vrot.slane %v132, 6
    %vm148 = vcmask 1042434
    %v149 = vsel %vm148, %v147, %v146
    %v150 = vrot.slane %v134, 5
    %vm151 = vcmask 1043459
    %v152 = vsel %vm151, %v150, %v149
    %v153 = vrot.slane %v136, 4
    %vm154 = vcmask 1044484
    %v155 = vsel %vm154, %v153, %v152
    %v156 = vrot.slane %v138, 3
    %vm157 = vcmask 1045509
    %v158 = vsel %vm157, %v156, %v155
    %v159 = vrot.slane %v140, 2
    %vm160 = vcmask 1046534
    %v161 = vsel %vm160, %v159, %v158
    %v162 = vrot.slane %v142, 1
    %vm163 = vcmask 1047559
    %v164 = vsel %vm163, %v162, %v161
    %vm165 = vcmask 64512
    %v166 = vsel %vm165, %v164, 0
    %168 = vmatprep.subr.mxu0 0.0
    %169 = vmatpush1.msra.mxu0 0.0
    %170 = vmatprep.subr.mxu0 0.0
    %171 = vmatpush1.msra.mxu0 0.0
    %172 = vmatprep.subr.mxu0 0.0
    %173 = vmatpush1.msra.mxu0 0.0
    %174 = vmatprep.subr.mxu0 0.0
    %175 = vmatpush1.msra.mxu0 0.0
    %176 = vmatprep.subr.mxu0 0.0
    %177 = vmatpush1.msra.mxu0 0.0
    %178 = vmatprep.subr.mxu0 0.0
    %179 = vmatpush1.msra.mxu0 0.0
    %180 = vmatprep.subr.mxu0 0.0
    %181 = vmatpush1.msra.mxu0 0.0
    %182 = vmatprep.subr.mxu0 0.0
    %183 = vmatpush1.msra.mxu0 0.0
    %184 = vmatprep.subr.mxu0 0.0
    %185 = vmatpush1.msra.mxu0 0.0
    %186 = vmatprep.subr.mxu0 0.0
    %187 = vmatpush1.msra.mxu0 0.0
    %188 = vmatprep.subr.mxu0 0.0
    %189 = vmatpush1.msra.mxu0 0.0
    %190 = vmatprep.subr.mxu0 0.0
    %191 = vmatpush1.msra.mxu0 0.0
    %192 = vmatprep.subr.mxu0 0.0
    %193 = vmatpush1.msra.mxu0 0.0
    %194 = vmatprep.subr.mxu0 0.0
    %195 = vmatpush1.msra.mxu0 0.0
    %196 = vmatprep.subr.mxu0 0.0
    %197 = vmatpush1.msra.mxu0 0.0
    %198 = vmatprep.subr.mxu0 0.0
    %199 = vmatpush1.msra.mxu0 %v143
    %200 = vmatprep.subr.mxu0 0.0
    %201 = vmatpush2.msra.mxu0 0.0
    %202 = vmatprep.subr.mxu0 0.0
    %203 = vmatpush2.msra.mxu0 0.0
    %204 = vmatprep.subr.mxu0 0.0
    %205 = vmatpush2.msra.mxu0 0.0
    %206 = vmatprep.subr.mxu0 0.0
    %207 = vmatpush2.msra.mxu0 0.0
    %208 = vmatprep.subr.mxu0 0.0
    %209 = vmatpush2.msra.mxu0 0.0
    %210 = vmatprep.subr.mxu0 0.0
    %211 = vmatpush2.msra.mxu0 0.0
    %212 = vmatprep.subr.mxu0 0.0
    %213 = vmatpush2.msra.mxu0 0.0
    %214 = vmatprep.subr.mxu0 0.0
    %215 = vmatpush2.msra.mxu0 0.0
    %216 = vmatprep.subr.mxu0 0.0
    %217 = vmatpush2.msra.mxu0 0.0
    %218 = vmatprep.subr.mxu0 0.0
    %219 = vmatpush2.msra.mxu0 0.0
    %220 = vmatprep.subr.mxu0 0.0
    %221 = vmatpush2.msra.mxu0 0.0
    %222 = vmatprep.subr.mxu0 0.0
    %223 = vmatpush2.msra.mxu0 0.0
    %224 = vmatprep.subr.mxu0 0.0
    %225 = vmatpush2.msra.mxu0 0.0
    %226 = vmatprep.subr.mxu0 0.0
    %227 = vmatpush2.msra.mxu0 0.0
    %228 = vmatprep.subr.mxu0 0.0
    %229 = vmatpush2.msra.mxu0 0.0
    %230 = vmatprep.subr.mxu0 0.0
    %231 = vmatpush2.msra.mxu0 0.0
    %232 = vmatprep.mubr.f32.mxu0 0.0
    %233 = vmatmul.mubr.f32.gmra.mxu0 %v166
    %v234 = vpop.f32.mrf.mxu0
    %v235 = vadd.f32 0.0, %v234
    %v236 = vpop.f32.mrf.mxu0
    %237 = vdwg.mxu0
    %v239 = vcombine.high %v235, %v235
    %v241 = vunpack.c.l.s4 1966171168
    %v242 = vunpack.c.0.s8 %v241
    %v243 = vlaneseq
    %v244 = vshrl.u32 %v243, 7
    %v245 = vsub.s32 %v242, %v244
    %v246 = vrot.slane %v235, %v245
    %v248 = vunpack.c.l.s4 1966171168
    %v249 = vunpack.c.0.s8 %v248
    %v250 = vlaneseq
    %v251 = vshrl.u32 %v250, 7
    %v252 = vsub.s32 %v249, %v251
    %v253 = vrot.slane %v239, %v252
    %v254 = vcombine.high %v246, %v246
    %v255 = vcombine.high %v253, %v253
    %v257 = vunpack.c.l.s4 1966171168
    %v258 = vunpack.c.0.s8 %v257
    %v259 = vlaneseq
    %v260 = vshrl.u32 %v259, 7
    %v261 = vsub.s32 %v258, %v260
    %v262 = vrot.slane %v246, %v261
    %v264 = vunpack.c.l.s4 1966171168
    %v265 = vunpack.c.0.s8 %v264
    %v266 = vlaneseq
    %v267 = vshrl.u32 %v266, 7
    %v268 = vsub.s32 %v265, %v267
    %v269 = vrot.slane %v253, %v268
    %v271 = vunpack.c.l.s4 1966171168
    %v272 = vunpack.c.0.s8 %v271
    %v273 = vlaneseq
    %v274 = vshrl.u32 %v273, 7
    %v275 = vsub.s32 %v272, %v274
    %v276 = vrot.slane %v254, %v275
    %v278 = vunpack.c.l.s4 1966171168
    %v279 = vunpack.c.0.s8 %v278
    %v280 = vlaneseq
    %v281 = vshrl.u32 %v280, 7
    %v282 = vsub.s32 %v279, %v281
    %v283 = vrot.slane %v255, %v282
    %v284 = vcombine.high %v262, %v262
    %v285 = vcombine.high %v269, %v269
    %v286 = vcombine.high %v276, %v276
    %v287 = vcombine.high %v283, %v283
    %s296 = scalar_lea.vmem %s4, 8
    %v297 = vld [vmem:[%s296] sm:$0xff]
    %v298 = vrot.slane %v121, 1
    %v299 = vsel %vm145, %v126, %v298
    %v300 = vrot.slane %v132, 7
    %v301 = vsel %vm148, %v300, %v299
    %v302 = vrot.slane %v134, 6
    %v303 = vsel %vm151, %v302, %v301
    %v304 = vrot.slane %v136, 5
    %v305 = vsel %vm154, %v304, %v303
    %v306 = vrot.slane %v138, 4
    %v307 = vsel %vm157, %v306, %v305
    %v308 = vrot.slane %v140, 3
    %v309 = vsel %vm160, %v308, %v307
    %v310 = vrot.slane %v142, 2
    %v311 = vsel %vm163, %v310, %v309
    %v312 = vsel %vm165, %v311, 0
    %314 = vmatprep.subr.mxu0 0.0
    %315 = vmatpush1.msra.mxu0 0.0
    %316 = vmatprep.subr.mxu0 0.0
    %317 = vmatpush1.msra.mxu0 0.0
    %318 = vmatprep.subr.mxu0 0.0
    %319 = vmatpush1.msra.mxu0 0.0
    %320 = vmatprep.subr.mxu0 0.0
    %321 = vmatpush1.msra.mxu0 0.0
    %322 = vmatprep.subr.mxu0 0.0
    %323 = vmatpush1.msra.mxu0 0.0
    %324 = vmatprep.subr.mxu0 0.0
    %325 = vmatpush1.msra.mxu0 0.0
    %326 = vmatprep.subr.mxu0 0.0
    %327 = vmatpush1.msra.mxu0 0.0
    %328 = vmatprep.subr.mxu0 0.0
    %329 = vmatpush1.msra.mxu0 0.0
    %330 = vmatprep.subr.mxu0 0.0
    %331 = vmatpush1.msra.mxu0 0.0
    %332 = vmatprep.subr.mxu0 0.0
    %333 = vmatpush1.msra.mxu0 0.0
    %334 = vmatprep.subr.mxu0 0.0
    %335 = vmatpush1.msra.mxu0 0.0
    %336 = vmatprep.subr.mxu0 0.0
    %337 = vmatpush1.msra.mxu0 0.0
    %338 = vmatprep.subr.mxu0 0.0
    %339 = vmatpush1.msra.mxu0 0.0
    %340 = vmatprep.subr.mxu0 0.0
    %341 = vmatpush1.msra.mxu0 0.0
    %342 = vmatprep.subr.mxu0 0.0
    %343 = vmatpush1.msra.mxu0 0.0
    %344 = vmatprep.subr.mxu0 0.0
    %345 = vmatpush1.msra.mxu0 %v297
    %346 = vmatprep.subr.mxu0 0.0
    %347 = vmatpush2.msra.mxu0 0.0
    %348 = vmatprep.subr.mxu0 0.0
    %349 = vmatpush2.msra.mxu0 0.0
    %350 = vmatprep.subr.mxu0 0.0
    %351 = vmatpush2.msra.mxu0 0.0
    %352 = vmatprep.subr.mxu0 0.0
    %353 = vmatpush2.msra.mxu0 0.0
    %354 = vmatprep.subr.mxu0 0.0
    %355 = vmatpush2.msra.mxu0 0.0
    %356 = vmatprep.subr.mxu0 0.0
    %357 = vmatpush2.msra.mxu0 0.0
    %358 = vmatprep.subr.mxu0 0.0
    %359 = vmatpush2.msra.mxu0 0.0
    %360 = vmatprep.subr.mxu0 0.0
    %361 = vmatpush2.msra.mxu0 0.0
    %362 = vmatprep.subr.mxu0 0.0
    %363 = vmatpush2.msra.mxu0 0.0
    %364 = vmatprep.subr.mxu0 0.0
    %365 = vmatpush2.msra.mxu0 0.0
    %366 = vmatprep.subr.mxu0 0.0
    %367 = vmatpush2.msra.mxu0 0.0
    %368 = vmatprep.subr.mxu0 0.0
    %369 = vmatpush2.msra.mxu0 0.0
    %370 = vmatprep.subr.mxu0 0.0
    %371 = vmatpush2.msra.mxu0 0.0
    %372 = vmatprep.subr.mxu0 0.0
    %373 = vmatpush2.msra.mxu0 0.0
    %374 = vmatprep.subr.mxu0 0.0
    %375 = vmatpush2.msra.mxu0 0.0
    %376 = vmatprep.subr.mxu0 0.0
    %377 = vmatpush2.msra.mxu0 0.0
    %378 = vmatprep.mubr.f32.mxu0 0.0
    %379 = vmatmul.mubr.f32.gmra.mxu0 %v312
    %v380 = vpop.f32.mrf.mxu0
    %v381 = vadd.f32 0.0, %v380
    %v382 = vpop.f32.mrf.mxu0
    %383 = vdwg.mxu0
    %v385 = vcombine.high %v381, %v381
    %v387 = vunpack.c.l.s4 1966171168
    %v388 = vunpack.c.0.s8 %v387
    %v389 = vlaneseq
    %v390 = vshrl.u32 %v389, 7
    %v391 = vsub.s32 %v388, %v390
    %v392 = vrot.slane %v381, %v391
    %v394 = vunpack.c.l.s4 1966171168
    %v395 = vunpack.c.0.s8 %v394
    %v396 = vlaneseq
    %v397 = vshrl.u32 %v396, 7
    %v398 = vsub.s32 %v395, %v397
    %v399 = vrot.slane %v385, %v398
    %v400 = vcombine.high %v392, %v392
    %v401 = vcombine.high %v399, %v399
    %v403 = vunpack.c.l.s4 1966171168
    %v404 = vunpack.c.0.s8 %v403
    %v405 = vlaneseq
    %v406 = vshrl.u32 %v405, 7
    %v407 = vsub.s32 %v404, %v406
    %v408 = vrot.slane %v392, %v407
    %v410 = vunpack.c.l.s4 1966171168
    %v411 = vunpack.c.0.s8 %v410
    %v412 = vlaneseq
    %v413 = vshrl.u32 %v412, 7
    %v414 = vsub.s32 %v411, %v413
    %v415 = vrot.slane %v399, %v414
    %v417 = vunpack.c.l.s4 1966171168
    %v418 = vunpack.c.0.s8 %v417
    %v419 = vlaneseq
    %v420 = vshrl.u32 %v419, 7
    %v421 = vsub.s32 %v418, %v420
    %v422 = vrot.slane %v400, %v421
    %v424 = vunpack.c.l.s4 1966171168
    %v425 = vunpack.c.0.s8 %v424
    %v426 = vlaneseq
    %v427 = vshrl.u32 %v426, 7
    %v428 = vsub.s32 %v425, %v427
    %v429 = vrot.slane %v401, %v428
    %v430 = vcombine.high %v408, %v408
    %v431 = vcombine.high %v415, %v415
    %v432 = vcombine.high %v422, %v422
    %v433 = vcombine.high %v429, %v429
    %s434 = scalar_lea.vmem %s4, 16
    %v435 = vld [vmem:[%s434] sm:$0xff]
    %v436 = vrot.slane %v121, 2
    %v437 = vrot.slane %v126, 1
    %v438 = vsel %vm145, %v437, %v436
    %v439 = vsel %vm148, %v132, %v438
    %v440 = vrot.slane %v134, 7
    %v441 = vsel %vm151, %v440, %v439
    %v442 = vrot.slane %v136, 6
    %v443 = vsel %vm154, %v442, %v441
    %v444 = vrot.slane %v138, 5
    %v445 = vsel %vm157, %v444, %v443
    %v446 = vrot.slane %v140, 4
    %v447 = vsel %vm160, %v446, %v445
    %v448 = vrot.slane %v142, 3
    %v449 = vsel %vm163, %v448, %v447
    %v450 = vsel %vm165, %v449, 0
    %452 = vmatprep.subr.mxu0 0.0
    %453 = vmatpush1.msra.mxu0 0.0
    %454 = vmatprep.subr.mxu0 0.0
    %455 = vmatpush1.msra.mxu0 0.0
    %456 = vmatprep.subr.mxu0 0.0
    %457 = vmatpush1.msra.mxu0 0.0
    %458 = vmatprep.subr.mxu0 0.0
    %459 = vmatpush1.msra.mxu0 0.0
    %460 = vmatprep.subr.mxu0 0.0
    %461 = vmatpush1.msra.mxu0 0.0
    %462 = vmatprep.subr.mxu0 0.0
    %463 = vmatpush1.msra.mxu0 0.0
    %464 = vmatprep.subr.mxu0 0.0
    %465 = vmatpush1.msra.mxu0 0.0
    %466 = vmatprep.subr.mxu0 0.0
    %467 = vmatpush1.msra.mxu0 0.0
    %468 = vmatprep.subr.mxu0 0.0
    %469 = vmatpush1.msra.mxu0 0.0
    %470 = vmatprep.subr.mxu0 0.0
    %471 = vmatpush1.msra.mxu0 0.0
    %472 = vmatprep.subr.mxu0 0.0
    %473 = vmatpush1.msra.mxu0 0.0
    %474 = vmatprep.subr.mxu0 0.0
    %475 = vmatpush1.msra.mxu0 0.0
    %476 = vmatprep.subr.mxu0 0.0
    %477 = vmatpush1.msra.mxu0 0.0
    %478 = vmatprep.subr.mxu0 0.0
    %479 = vmatpush1.msra.mxu0 0.0
    %480 = vmatprep.subr.mxu0 0.0
    %481 = vmatpush1.msra.mxu0 0.0
    %482 = vmatprep.subr.mxu0 0.0
    %483 = vmatpush1.msra.mxu0 %v435
    %484 = vmatprep.subr.mxu0 0.0
    %485 = vmatpush2.msra.mxu0 0.0
    %486 = vmatprep.subr.mxu0 0.0
    %487 = vmatpush2.msra.mxu0 0.0
    %488 = vmatprep.subr.mxu0 0.0
    %489 = vmatpush2.msra.mxu0 0.0
    %490 = vmatprep.subr.mxu0 0.0
    %491 = vmatpush2.msra.mxu0 0.0
    %492 = vmatprep.subr.mxu0 0.0
    %493 = vmatpush2.msra.mxu0 0.0
    %494 = vmatprep.subr.mxu0 0.0
    %495 = vmatpush2.msra.mxu0 0.0
    %496 = vmatprep.subr.mxu0 0.0
    %497 = vmatpush2.msra.mxu0 0.0
    %498 = vmatprep.subr.mxu0 0.0
    %499 = vmatpush2.msra.mxu0 0.0
    %500 = vmatprep.subr.mxu0 0.0
    %501 = vmatpush2.msra.mxu0 0.0
    %502 = vmatprep.subr.mxu0 0.0
    %503 = vmatpush2.msra.mxu0 0.0
    %504 = vmatprep.subr.mxu0 0.0
    %505 = vmatpush2.msra.mxu0 0.0
    %506 = vmatprep.subr.mxu0 0.0
    %507 = vmatpush2.msra.mxu0 0.0
    %508 = vmatprep.subr.mxu0 0.0
    %509 = vmatpush2.msra.mxu0 0.0
    %510 = vmatprep.subr.mxu0 0.0
    %511 = vmatpush2.msra.mxu0 0.0
    %512 = vmatprep.subr.mxu0 0.0
    %513 = vmatpush2.msra.mxu0 0.0
    %514 = vmatprep.subr.mxu0 0.0
    %515 = vmatpush2.msra.mxu0 0.0
    %516 = vmatprep.mubr.f32.mxu0 0.0
    %517 = vmatmul.mubr.f32.gmra.mxu0 %v450
    %v518 = vpop.f32.mrf.mxu0
    %v519 = vadd.f32 0.0, %v518
    %v520 = vpop.f32.mrf.mxu0
    %521 = vdwg.mxu0
    %v523 = vcombine.high %v519, %v519
    %v525 = vunpack.c.l.s4 1966171168
    %v526 = vunpack.c.0.s8 %v525
    %v527 = vlaneseq
    %v528 = vshrl.u32 %v527, 7
    %v529 = vsub.s32 %v526, %v528
    %v530 = vrot.slane %v519, %v529
    %v532 = vunpack.c.l.s4 1966171168
    %v533 = vunpack.c.0.s8 %v532
    %v534 = vlaneseq
    %v535 = vshrl.u32 %v534, 7
    %v536 = vsub.s32 %v533, %v535
    %v537 = vrot.slane %v523, %v536
    %v538 = vcombine.high %v530, %v530
    %v539 = vcombine.high %v537, %v537
    %v541 = vunpack.c.l.s4 1966171168
    %v542 = vunpack.c.0.s8 %v541
    %v543 = vlaneseq
    %v544 = vshrl.u32 %v543, 7
    %v545 = vsub.s32 %v542, %v544
    %v546 = vrot.slane %v530, %v545
    %v548 = vunpack.c.l.s4 1966171168
    %v549 = vunpack.c.0.s8 %v548
    %v550 = vlaneseq
    %v551 = vshrl.u32 %v550, 7
    %v552 = vsub.s32 %v549, %v551
    %v553 = vrot.slane %v537, %v552
    %v555 = vunpack.c.l.s4 1966171168
    %v556 = vunpack.c.0.s8 %v555
    %v557 = vlaneseq
    %v558 = vshrl.u32 %v557, 7
    %v559 = vsub.s32 %v556, %v558
    %v560 = vrot.slane %v538, %v559
    %v562 = vunpack.c.l.s4 1966171168
    %v563 = vunpack.c.0.s8 %v562
    %v564 = vlaneseq
    %v565 = vshrl.u32 %v564, 7
    %v566 = vsub.s32 %v563, %v565
    %v567 = vrot.slane %v539, %v566
    %v568 = vcombine.high %v546, %v546
    %v569 = vcombine.high %v553, %v553
    %v570 = vcombine.high %v560, %v560
    %v571 = vcombine.high %v567, %v567
    %s572 = scalar_lea.vmem %s4, 24
    %v573 = vld [vmem:[%s572] sm:$0xff]
    %v574 = vrot.slane %v121, 3
    %v575 = vrot.slane %v126, 2
    %v576 = vsel %vm145, %v575, %v574
    %v577 = vrot.slane %v132, 1
    %v578 = vsel %vm148, %v577, %v576
    %v579 = vsel %vm151, %v134, %v578
    %v580 = vrot.slane %v136, 7
    %v581 = vsel %vm154, %v580, %v579
    %v582 = vrot.slane %v138, 6
    %v583 = vsel %vm157, %v582, %v581
    %v584 = vrot.slane %v140, 5
    %v585 = vsel %vm160, %v584, %v583
    %v586 = vrot.slane %v142, 4
    %v587 = vsel %vm163, %v586, %v585
    %v588 = vsel %vm165, %v587, 0
    %590 = vmatprep.subr.mxu0 0.0
    %591 = vmatpush1.msra.mxu0 0.0
    %592 = vmatprep.subr.mxu0 0.0
    %593 = vmatpush1.msra.mxu0 0.0
    %594 = vmatprep.subr.mxu0 0.0
    %595 = vmatpush1.msra.mxu0 0.0
    %596 = vmatprep.subr.mxu0 0.0
    %597 = vmatpush1.msra.mxu0 0.0
    %598 = vmatprep.subr.mxu0 0.0
    %599 = vmatpush1.msra.mxu0 0.0
    %600 = vmatprep.subr.mxu0 0.0
    %601 = vmatpush1.msra.mxu0 0.0
    %602 = vmatprep.subr.mxu0 0.0
    %603 = vmatpush1.msra.mxu0 0.0
    %604 = vmatprep.subr.mxu0 0.0
    %605 = vmatpush1.msra.mxu0 0.0
    %606 = vmatprep.subr.mxu0 0.0
    %607 = vmatpush1.msra.mxu0 0.0
    %608 = vmatprep.subr.mxu0 0.0
    %609 = vmatpush1.msra.mxu0 0.0
    %610 = vmatprep.subr.mxu0 0.0
    %611 = vmatpush1.msra.mxu0 0.0
    %612 = vmatprep.subr.mxu0 0.0
    %613 = vmatpush1.msra.mxu0 0.0
    %614 = vmatprep.subr.mxu0 0.0
    %615 = vmatpush1.msra.mxu0 0.0
    %616 = vmatprep.subr.mxu0 0.0
    %617 = vmatpush1.msra.mxu0 0.0
    %618 = vmatprep.subr.mxu0 0.0
    %619 = vmatpush1.msra.mxu0 0.0
    %620 = vmatprep.subr.mxu0 0.0
    %621 = vmatpush1.msra.mxu0 %v573
    %622 = vmatprep.subr.mxu0 0.0
    %623 = vmatpush2.msra.mxu0 0.0
    %624 = vmatprep.subr.mxu0 0.0
    %625 = vmatpush2.msra.mxu0 0.0
    %626 = vmatprep.subr.mxu0 0.0
    %627 = vmatpush2.msra.mxu0 0.0
    %628 = vmatprep.subr.mxu0 0.0
    %629 = vmatpush2.msra.mxu0 0.0
    %630 = vmatprep.subr.mxu0 0.0
    %631 = vmatpush2.msra.mxu0 0.0
    %632 = vmatprep.subr.mxu0 0.0
    %633 = vmatpush2.msra.mxu0 0.0
    %634 = vmatprep.subr.mxu0 0.0
    %635 = vmatpush2.msra.mxu0 0.0
    %636 = vmatprep.subr.mxu0 0.0
    %637 = vmatpush2.msra.mxu0 0.0
    %638 = vmatprep.subr.mxu0 0.0
    %639 = vmatpush2.msra.mxu0 0.0
    %640 = vmatprep.subr.mxu0 0.0
    %641 = vmatpush2.msra.mxu0 0.0
    %642 = vmatprep.subr.mxu0 0.0
    %643 = vmatpush2.msra.mxu0 0.0
    %644 = vmatprep.subr.mxu0 0.0
    %645 = vmatpush2.msra.mxu0 0.0
    %646 = vmatprep.subr.mxu0 0.0
    %647 = vmatpush2.msra.mxu0 0.0
    %648 = vmatprep.subr.mxu0 0.0
    %649 = vmatpush2.msra.mxu0 0.0
    %650 = vmatprep.subr.mxu0 0.0
    %651 = vmatpush2.msra.mxu0 0.0
    %652 = vmatprep.subr.mxu0 0.0
    %653 = vmatpush2.msra.mxu0 0.0
    %654 = vmatprep.mubr.f32.mxu0 0.0
    %655 = vmatmul.mubr.f32.gmra.mxu0 %v588
    %v656 = vpop.f32.mrf.mxu0
    %v657 = vadd.f32 0.0, %v656
    %v658 = vpop.f32.mrf.mxu0
    %659 = vdwg.mxu0
    %v661 = vcombine.high %v657, %v657
    %v663 = vunpack.c.l.s4 1966171168
    %v664 = vunpack.c.0.s8 %v663
    %v665 = vlaneseq
    %v666 = vshrl.u32 %v665, 7
    %v667 = vsub.s32 %v664, %v666
    %v668 = vrot.slane %v657, %v667
    %v670 = vunpack.c.l.s4 1966171168
    %v671 = vunpack.c.0.s8 %v670
    %v672 = vlaneseq
    %v673 = vshrl.u32 %v672, 7
    %v674 = vsub.s32 %v671, %v673
    %v675 = vrot.slane %v661, %v674
    %v676 = vcombine.high %v668, %v668
    %v677 = vcombine.high %v675, %v675
    %v679 = vunpack.c.l.s4 1966171168
    %v680 = vunpack.c.0.s8 %v679
    %v681 = vlaneseq
    %v682 = vshrl.u32 %v681, 7
    %v683 = vsub.s32 %v680, %v682
    %v684 = vrot.slane %v668, %v683
    %v686 = vunpack.c.l.s4 1966171168
    %v687 = vunpack.c.0.s8 %v686
    %v688 = vlaneseq
    %v689 = vshrl.u32 %v688, 7
    %v690 = vsub.s32 %v687, %v689
    %v691 = vrot.slane %v675, %v690
    %v693 = vunpack.c.l.s4 1966171168
    %v694 = vunpack.c.0.s8 %v693
    %v695 = vlaneseq
    %v696 = vshrl.u32 %v695, 7
    %v697 = vsub.s32 %v694, %v696
    %v698 = vrot.slane %v676, %v697
    %v700 = vunpack.c.l.s4 1966171168
    %v701 = vunpack.c.0.s8 %v700
    %v702 = vlaneseq
    %v703 = vshrl.u32 %v702, 7
    %v704 = vsub.s32 %v701, %v703
    %v705 = vrot.slane %v677, %v704
    %v706 = vcombine.high %v684, %v684
    %v707 = vcombine.high %v691, %v691
    %v708 = vcombine.high %v698, %v698
    %v709 = vcombine.high %v705, %v705
    %s710 = scalar_lea.vmem %s4, 32
    %v711 = vld [vmem:[%s710] sm:$0xff]
    %v712 = vrot.slane %v121, 4
    %v713 = vrot.slane %v126, 3
    %v714 = vsel %vm145, %v713, %v712
    %v715 = vrot.slane %v132, 2
    %v716 = vsel %vm148, %v715, %v714
    %v717 = vrot.slane %v134, 1
    %v718 = vsel %vm151, %v717, %v716
    %v719 = vsel %vm154, %v136, %v718
    %v720 = vrot.slane %v138, 7
    %v721 = vsel %vm157, %v720, %v719
    %v722 = vrot.slane %v140, 6
    %v723 = vsel %vm160, %v722, %v721
    %v724 = vrot.slane %v142, 5
    %v725 = vsel %vm163, %v724, %v723
    %v726 = vsel %vm165, %v725, 0
    %728 = vmatprep.subr.mxu0 0.0
    %729 = vmatpush1.msra.mxu0 0.0
    %730 = vmatprep.subr.mxu0 0.0
    %731 = vmatpush1.msra.mxu0 0.0
    %732 = vmatprep.subr.mxu0 0.0
    %733 = vmatpush1.msra.mxu0 0.0
    %734 = vmatprep.subr.mxu0 0.0
    %735 = vmatpush1.msra.mxu0 0.0
    %736 = vmatprep.subr.mxu0 0.0
    %737 = vmatpush1.msra.mxu0 0.0
    %738 = vmatprep.subr.mxu0 0.0
    %739 = vmatpush1.msra.mxu0 0.0
    %740 = vmatprep.subr.mxu0 0.0
    %741 = vmatpush1.msra.mxu0 0.0
    %742 = vmatprep.subr.mxu0 0.0
    %743 = vmatpush1.msra.mxu0 0.0
    %744 = vmatprep.subr.mxu0 0.0
    %745 = vmatpush1.msra.mxu0 0.0
    %746 = vmatprep.subr.mxu0 0.0
    %747 = vmatpush1.msra.mxu0 0.0
    %748 = vmatprep.subr.mxu0 0.0
    %749 = vmatpush1.msra.mxu0 0.0
    %750 = vmatprep.subr.mxu0 0.0
    %751 = vmatpush1.msra.mxu0 0.0
    %752 = vmatprep.subr.mxu0 0.0
    %753 = vmatpush1.msra.mxu0 0.0
    %754 = vmatprep.subr.mxu0 0.0
    %755 = vmatpush1.msra.mxu0 0.0
    %756 = vmatprep.subr.mxu0 0.0
    %757 = vmatpush1.msra.mxu0 0.0
    %758 = vmatprep.subr.mxu0 0.0
    %759 = vmatpush1.msra.mxu0 %v711
    %760 = vmatprep.subr.mxu0 0.0
    %761 = vmatpush2.msra.mxu0 0.0
    %762 = vmatprep.subr.mxu0 0.0
    %763 = vmatpush2.msra.mxu0 0.0
    %764 = vmatprep.subr.mxu0 0.0
    %765 = vmatpush2.msra.mxu0 0.0
    %766 = vmatprep.subr.mxu0 0.0
    %767 = vmatpush2.msra.mxu0 0.0
    %768 = vmatprep.subr.mxu0 0.0
    %769 = vmatpush2.msra.mxu0 0.0
    %770 = vmatprep.subr.mxu0 0.0
    %771 = vmatpush2.msra.mxu0 0.0
    %772 = vmatprep.subr.mxu0 0.0
    %773 = vmatpush2.msra.mxu0 0.0
    %774 = vmatprep.subr.mxu0 0.0
    %775 = vmatpush2.msra.mxu0 0.0
    %776 = vmatprep.subr.mxu0 0.0
    %777 = vmatpush2.msra.mxu0 0.0
    %778 = vmatprep.subr.mxu0 0.0
    %779 = vmatpush2.msra.mxu0 0.0
    %780 = vmatprep.subr.mxu0 0.0
    %781 = vmatpush2.msra.mxu0 0.0
    %782 = vmatprep.subr.mxu0 0.0
    %783 = vmatpush2.msra.mxu0 0.0
    %784 = vmatprep.subr.mxu0 0.0
    %785 = vmatpush2.msra.mxu0 0.0
    %786 = vmatprep.subr.mxu0 0.0
    %787 = vmatpush2.msra.mxu0 0.0
    %788 = vmatprep.subr.mxu0 0.0
    %789 = vmatpush2.msra.mxu0 0.0
    %790 = vmatprep.subr.mxu0 0.0
    %791 = vmatpush2.msra.mxu0 0.0
    %792 = vmatprep.mubr.f32.mxu0 0.0
    %793 = vmatmul.mubr.f32.gmra.mxu0 %v726
    %v794 = vpop.f32.mrf.mxu0
    %v795 = vadd.f32 0.0, %v794
    %v796 = vpop.f32.mrf.mxu0
    %797 = vdwg.mxu0
    %v799 = vcombine.high %v795, %v795
    %v801 = vunpack.c.l.s4 1966171168
    %v802 = vunpack.c.0.s8 %v801
    %v803 = vlaneseq
    %v804 = vshrl.u32 %v803, 7
    %v805 = vsub.s32 %v802, %v804
    %v806 = vrot.slane %v795, %v805
    %v808 = vunpack.c.l.s4 1966171168
    %v809 = vunpack.c.0.s8 %v808
    %v810 = vlaneseq
    %v811 = vshrl.u32 %v810, 7
    %v812 = vsub.s32 %v809, %v811
    %v813 = vrot.slane %v799, %v812
    %v814 = vcombine.high %v806, %v806
    %v815 = vcombine.high %v813, %v813
    %v817 = vunpack.c.l.s4 1966171168
    %v818 = vunpack.c.0.s8 %v817
    %v819 = vlaneseq
    %v820 = vshrl.u32 %v819, 7
    %v821 = vsub.s32 %v818, %v820
    %v822 = vrot.slane %v806, %v821
    %v824 = vunpack.c.l.s4 1966171168
    %v825 = vunpack.c.0.s8 %v824
    %v826 = vlaneseq
    %v827 = vshrl.u32 %v826, 7
    %v828 = vsub.s32 %v825, %v827
    %v829 = vrot.slane %v813, %v828
    %v831 = vunpack.c.l.s4 1966171168
    %v832 = vunpack.c.0.s8 %v831
    %v833 = vlaneseq
    %v834 = vshrl.u32 %v833, 7
    %v835 = vsub.s32 %v832, %v834
    %v836 = vrot.slane %v814, %v835
    %v838 = vunpack.c.l.s4 1966171168
    %v839 = vunpack.c.0.s8 %v838
    %v840 = vlaneseq
    %v841 = vshrl.u32 %v840, 7
    %v842 = vsub.s32 %v839, %v841
    %v843 = vrot.slane %v815, %v842
    %v844 = vcombine.high %v822, %v822
    %v845 = vcombine.high %v829, %v829
    %v846 = vcombine.high %v836, %v836
    %v847 = vcombine.high %v843, %v843
    %s848 = scalar_lea.vmem %s4, 40
    %v849 = vld [vmem:[%s848] sm:$0xff]
    %v850 = vrot.slane %v121, 5
    %v851 = vrot.slane %v126, 4
    %v852 = vsel %vm145, %v851, %v850
    %v853 = vrot.slane %v132, 3
    %v854 = vsel %vm148, %v853, %v852
    %v855 = vrot.slane %v134, 2
    %v856 = vsel %vm151, %v855, %v854
    %v857 = vrot.slane %v136, 1
    %v858 = vsel %vm154, %v857, %v856
    %v859 = vsel %vm157, %v138, %v858
    %v860 = vrot.slane %v140, 7
    %v861 = vsel %vm160, %v860, %v859
    %v862 = vrot.slane %v142, 6
    %v863 = vsel %vm163, %v862, %v861
    %v864 = vsel %vm165, %v863, 0
    %866 = vmatprep.subr.mxu0 0.0
    %867 = vmatpush1.msra.mxu0 0.0
    %868 = vmatprep.subr.mxu0 0.0
    %869 = vmatpush1.msra.mxu0 0.0
    %870 = vmatprep.subr.mxu0 0.0
    %871 = vmatpush1.msra.mxu0 0.0
    %872 = vmatprep.subr.mxu0 0.0
    %873 = vmatpush1.msra.mxu0 0.0
    %874 = vmatprep.subr.mxu0 0.0
    %875 = vmatpush1.msra.mxu0 0.0
    %876 = vmatprep.subr.mxu0 0.0
    %877 = vmatpush1.msra.mxu0 0.0
    %878 = vmatprep.subr.mxu0 0.0
    %879 = vmatpush1.msra.mxu0 0.0
    %880 = vmatprep.subr.mxu0 0.0
    %881 = vmatpush1.msra.mxu0 0.0
    %882 = vmatprep.subr.mxu0 0.0
    %883 = vmatpush1.msra.mxu0 0.0
    %884 = vmatprep.subr.mxu0 0.0
    %885 = vmatpush1.msra.mxu0 0.0
    %886 = vmatprep.subr.mxu0 0.0
    %887 = vmatpush1.msra.mxu0 0.0
    %888 = vmatprep.subr.mxu0 0.0
    %889 = vmatpush1.msra.mxu0 0.0
    %890 = vmatprep.subr.mxu0 0.0
    %891 = vmatpush1.msra.mxu0 0.0
    %892 = vmatprep.subr.mxu0 0.0
    %893 = vmatpush1.msra.mxu0 0.0
    %894 = vmatprep.subr.mxu0 0.0
    %895 = vmatpush1.msra.mxu0 0.0
    %896 = vmatprep.subr.mxu0 0.0
    %897 = vmatpush1.msra.mxu0 %v849
    %898 = vmatprep.subr.mxu0 0.0
    %899 = vmatpush2.msra.mxu0 0.0
    %900 = vmatprep.subr.mxu0 0.0
    %901 = vmatpush2.msra.mxu0 0.0
    %902 = vmatprep.subr.mxu0 0.0
    %903 = vmatpush2.msra.mxu0 0.0
    %904 = vmatprep.subr.mxu0 0.0
    %905 = vmatpush2.msra.mxu0 0.0
    %906 = vmatprep.subr.mxu0 0.0
    %907 = vmatpush2.msra.mxu0 0.0
    %908 = vmatprep.subr.mxu0 0.0
    %909 = vmatpush2.msra.mxu0 0.0
    %910 = vmatprep.subr.mxu0 0.0
    %911 = vmatpush2.msra.mxu0 0.0
    %912 = vmatprep.subr.mxu0 0.0
    %913 = vmatpush2.msra.mxu0 0.0
    %914 = vmatprep.subr.mxu0 0.0
    %915 = vmatpush2.msra.mxu0 0.0
    %916 = vmatprep.subr.mxu0 0.0
    %917 = vmatpush2.msra.mxu0 0.0
    %918 = vmatprep.subr.mxu0 0.0
    %919 = vmatpush2.msra.mxu0 0.0
    %920 = vmatprep.subr.mxu0 0.0
    %921 = vmatpush2.msra.mxu0 0.0
    %922 = vmatprep.subr.mxu0 0.0
    %923 = vmatpush2.msra.mxu0 0.0
    %924 = vmatprep.subr.mxu0 0.0
    %925 = vmatpush2.msra.mxu0 0.0
    %926 = vmatprep.subr.mxu0 0.0
    %927 = vmatpush2.msra.mxu0 0.0
    %928 = vmatprep.subr.mxu0 0.0
    %929 = vmatpush2.msra.mxu0 0.0
    %930 = vmatprep.mubr.f32.mxu0 0.0
    %931 = vmatmul.mubr.f32.gmra.mxu0 %v864
    %v932 = vpop.f32.mrf.mxu0
    %v933 = vadd.f32 0.0, %v932
    %v934 = vpop.f32.mrf.mxu0
    %935 = vdwg.mxu0
    %v937 = vcombine.high %v933, %v933
    %v939 = vunpack.c.l.s4 1966171168
    %v940 = vunpack.c.0.s8 %v939
    %v941 = vlaneseq
    %v942 = vshrl.u32 %v941, 7
    %v943 = vsub.s32 %v940, %v942
    %v944 = vrot.slane %v933, %v943
    %v946 = vunpack.c.l.s4 1966171168
    %v947 = vunpack.c.0.s8 %v946
    %v948 = vlaneseq
    %v949 = vshrl.u32 %v948, 7
    %v950 = vsub.s32 %v947, %v949
    %v951 = vrot.slane %v937, %v950
    %v952 = vcombine.high %v944, %v944
    %v953 = vcombine.high %v951, %v951
    %v955 = vunpack.c.l.s4 1966171168
    %v956 = vunpack.c.0.s8 %v955
    %v957 = vlaneseq
    %v958 = vshrl.u32 %v957, 7
    %v959 = vsub.s32 %v956, %v958
    %v960 = vrot.slane %v944, %v959
    %v962 = vunpack.c.l.s4 1966171168
    %v963 = vunpack.c.0.s8 %v962
    %v964 = vlaneseq
    %v965 = vshrl.u32 %v964, 7
    %v966 = vsub.s32 %v963, %v965
    %v967 = vrot.slane %v951, %v966
    %v969 = vunpack.c.l.s4 1966171168
    %v970 = vunpack.c.0.s8 %v969
    %v971 = vlaneseq
    %v972 = vshrl.u32 %v971, 7
    %v973 = vsub.s32 %v970, %v972
    %v974 = vrot.slane %v952, %v973
    %v976 = vunpack.c.l.s4 1966171168
    %v977 = vunpack.c.0.s8 %v976
    %v978 = vlaneseq
    %v979 = vshrl.u32 %v978, 7
    %v980 = vsub.s32 %v977, %v979
    %v981 = vrot.slane %v953, %v980
    %v982 = vcombine.high %v960, %v960
    %v983 = vcombine.high %v967, %v967
    %v984 = vcombine.high %v974, %v974
    %v985 = vcombine.high %v981, %v981
    %s986 = scalar_lea.vmem %s4, 48
    %v987 = vld [vmem:[%s986] sm:$0xff]
    %v988 = vrot.slane %v121, 6
    %v989 = vrot.slane %v126, 5
    %v990 = vsel %vm145, %v989, %v988
    %v991 = vrot.slane %v132, 4
    %v992 = vsel %vm148, %v991, %v990
    %v993 = vrot.slane %v134, 3
    %v994 = vsel %vm151, %v993, %v992
    %v995 = vrot.slane %v136, 2
    %v996 = vsel %vm154, %v995, %v994
    %v997 = vrot.slane %v138, 1
    %v998 = vsel %vm157, %v997, %v996
    %v999 = vsel %vm160, %v140, %v998
    %v1000 = vrot.slane %v142, 7
    %v1001 = vsel %vm163, %v1000, %v999
    %v1002 = vsel %vm165, %v1001, 0
    %1004 = vmatprep.subr.mxu0 0.0
    %1005 = vmatpush1.msra.mxu0 0.0
    %1006 = vmatprep.subr.mxu0 0.0
    %1007 = vmatpush1.msra.mxu0 0.0
    %1008 = vmatprep.subr.mxu0 0.0
    %1009 = vmatpush1.msra.mxu0 0.0
    %1010 = vmatprep.subr.mxu0 0.0
    %1011 = vmatpush1.msra.mxu0 0.0
    %1012 = vmatprep.subr.mxu0 0.0
    %1013 = vmatpush1.msra.mxu0 0.0
    %1014 = vmatprep.subr.mxu0 0.0
    %1015 = vmatpush1.msra.mxu0 0.0
    %1016 = vmatprep.subr.mxu0 0.0
    %1017 = vmatpush1.msra.mxu0 0.0
    %1018 = vmatprep.subr.mxu0 0.0
    %1019 = vmatpush1.msra.mxu0 0.0
    %1020 = vmatprep.subr.mxu0 0.0
    %1021 = vmatpush1.msra.mxu0 0.0
    %1022 = vmatprep.subr.mxu0 0.0
    %1023 = vmatpush1.msra.mxu0 0.0
    %1024 = vmatprep.subr.mxu0 0.0
    %1025 = vmatpush1.msra.mxu0 0.0
    %1026 = vmatprep.subr.mxu0 0.0
    %1027 = vmatpush1.msra.mxu0 0.0
    %1028 = vmatprep.subr.mxu0 0.0
    %1029 = vmatpush1.msra.mxu0 0.0
    %1030 = vmatprep.subr.mxu0 0.0
    %1031 = vmatpush1.msra.mxu0 0.0
    %1032 = vmatprep.subr.mxu0 0.0
    %1033 = vmatpush1.msra.mxu0 0.0
    %1034 = vmatprep.subr.mxu0 0.0
    %1035 = vmatpush1.msra.mxu0 %v987
    %1036 = vmatprep.subr.mxu0 0.0
    %1037 = vmatpush2.msra.mxu0 0.0
    %1038 = vmatprep.subr.mxu0 0.0
    %1039 = vmatpush2.msra.mxu0 0.0
    %1040 = vmatprep.subr.mxu0 0.0
    %1041 = vmatpush2.msra.mxu0 0.0
    %1042 = vmatprep.subr.mxu0 0.0
    %1043 = vmatpush2.msra.mxu0 0.0
    %1044 = vmatprep.subr.mxu0 0.0
    %1045 = vmatpush2.msra.mxu0 0.0
    %1046 = vmatprep.subr.mxu0 0.0
    %1047 = vmatpush2.msra.mxu0 0.0
    %1048 = vmatprep.subr.mxu0 0.0
    %1049 = vmatpush2.msra.mxu0 0.0
    %1050 = vmatprep.subr.mxu0 0.0
    %1051 = vmatpush2.msra.mxu0 0.0
    %1052 = vmatprep.subr.mxu0 0.0
    %1053 = vmatpush2.msra.mxu0 0.0
    %1054 = vmatprep.subr.mxu0 0.0
    %1055 = vmatpush2.msra.mxu0 0.0
    %1056 = vmatprep.subr.mxu0 0.0
    %1057 = vmatpush2.msra.mxu0 0.0
    %1058 = vmatprep.subr.mxu0 0.0
    %1059 = vmatpush2.msra.mxu0 0.0
    %1060 = vmatprep.subr.mxu0 0.0
    %1061 = vmatpush2.msra.mxu0 0.0
    %1062 = vmatprep.subr.mxu0 0.0
    %1063 = vmatpush2.msra.mxu0 0.0
    %1064 = vmatprep.subr.mxu0 0.0
    %1065 = vmatpush2.msra.mxu0 0.0
    %1066 = vmatprep.subr.mxu0 0.0
    %1067 = vmatpush2.msra.mxu0 0.0
    %1068 = vmatprep.mubr.f32.mxu0 0.0
    %1069 = vmatmul.mubr.f32.gmra.mxu0 %v1002
    %v1070 = vpop.f32.mrf.mxu0
    %v1071 = vadd.f32 0.0, %v1070
    %v1072 = vpop.f32.mrf.mxu0
    %1073 = vdwg.mxu0
    %v1075 = vcombine.high %v1071, %v1071
    %v1077 = vunpack.c.l.s4 1966171168
    %v1078 = vunpack.c.0.s8 %v1077
    %v1079 = vlaneseq
    %v1080 = vshrl.u32 %v1079, 7
    %v1081 = vsub.s32 %v1078, %v1080
    %v1082 = vrot.slane %v1071, %v1081
    %v1084 = vunpack.c.l.s4 1966171168
    %v1085 = vunpack.c.0.s8 %v1084
    %v1086 = vlaneseq
    %v1087 = vshrl.u32 %v1086, 7
    %v1088 = vsub.s32 %v1085, %v1087
    %v1089 = vrot.slane %v1075, %v1088
    %v1090 = vcombine.high %v1082, %v1082
    %v1091 = vcombine.high %v1089, %v1089
    %v1093 = vunpack.c.l.s4 1966171168
    %v1094 = vunpack.c.0.s8 %v1093
    %v1095 = vlaneseq
    %v1096 = vshrl.u32 %v1095, 7
    %v1097 = vsub.s32 %v1094, %v1096
    %v1098 = vrot.slane %v1082, %v1097
    %v1100 = vunpack.c.l.s4 1966171168
    %v1101 = vunpack.c.0.s8 %v1100
    %v1102 = vlaneseq
    %v1103 = vshrl.u32 %v1102, 7
    %v1104 = vsub.s32 %v1101, %v1103
    %v1105 = vrot.slane %v1089, %v1104
    %v1107 = vunpack.c.l.s4 1966171168
    %v1108 = vunpack.c.0.s8 %v1107
    %v1109 = vlaneseq
    %v1110 = vshrl.u32 %v1109, 7
    %v1111 = vsub.s32 %v1108, %v1110
    %v1112 = vrot.slane %v1090, %v1111
    %v1114 = vunpack.c.l.s4 1966171168
    %v1115 = vunpack.c.0.s8 %v1114
    %v1116 = vlaneseq
    %v1117 = vshrl.u32 %v1116, 7
    %v1118 = vsub.s32 %v1115, %v1117
    %v1119 = vrot.slane %v1091, %v1118
    %v1120 = vcombine.high %v1098, %v1098
    %v1121 = vcombine.high %v1105, %v1105
    %v1122 = vcombine.high %v1112, %v1112
    %v1123 = vcombine.high %v1119, %v1119
    %s1124 = scalar_lea.vmem %s4, 56
    %v1125 = vld [vmem:[%s1124] sm:$0xff]
    %v1126 = vrot.slane %v121, 7
    %v1127 = vrot.slane %v126, 6
    %v1128 = vsel %vm145, %v1127, %v1126
    %v1129 = vrot.slane %v132, 5
    %v1130 = vsel %vm148, %v1129, %v1128
    %v1131 = vrot.slane %v134, 4
    %v1132 = vsel %vm151, %v1131, %v1130
    %v1133 = vrot.slane %v136, 3
    %v1134 = vsel %vm154, %v1133, %v1132
    %v1135 = vrot.slane %v138, 2
    %v1136 = vsel %vm157, %v1135, %v1134
    %v1137 = vrot.slane %v140, 1
    %v1138 = vsel %vm160, %v1137, %v1136
    %v1139 = vsel %vm163, %v142, %v1138
    %v1140 = vsel %vm165, %v1139, 0
    %1142 = vmatprep.subr.mxu0 0.0
    %1143 = vmatpush1.msra.mxu0 0.0
    %1144 = vmatprep.subr.mxu0 0.0
    %1145 = vmatpush1.msra.mxu0 0.0
    %1146 = vmatprep.subr.mxu0 0.0
    %1147 = vmatpush1.msra.mxu0 0.0
    %1148 = vmatprep.subr.mxu0 0.0
    %1149 = vmatpush1.msra.mxu0 0.0
    %1150 = vmatprep.subr.mxu0 0.0
    %1151 = vmatpush1.msra.mxu0 0.0
    %1152 = vmatprep.subr.mxu0 0.0
    %1153 = vmatpush1.msra.mxu0 0.0
    %1154 = vmatprep.subr.mxu0 0.0
    %1155 = vmatpush1.msra.mxu0 0.0
    %1156 = vmatprep.subr.mxu0 0.0
    %1157 = vmatpush1.msra.mxu0 0.0
    %1158 = vmatprep.subr.mxu0 0.0
    %1159 = vmatpush1.msra.mxu0 0.0
    %1160 = vmatprep.subr.mxu0 0.0
    %1161 = vmatpush1.msra.mxu0 0.0
    %1162 = vmatprep.subr.mxu0 0.0
    %1163 = vmatpush1.msra.mxu0 0.0
    %1164 = vmatprep.subr.mxu0 0.0
    %1165 = vmatpush1.msra.mxu0 0.0
    %1166 = vmatprep.subr.mxu0 0.0
    %1167 = vmatpush1.msra.mxu0 0.0
    %1168 = vmatprep.subr.mxu0 0.0
    %1169 = vmatpush1.msra.mxu0 0.0
    %1170 = vmatprep.subr.mxu0 0.0
    %1171 = vmatpush1.msra.mxu0 0.0
    %1172 = vmatprep.subr.mxu0 0.0
    %1173 = vmatpush1.msra.mxu0 %v1125
    %1174 = vmatprep.subr.mxu0 0.0
    %1175 = vmatpush2.msra.mxu0 0.0
    %1176 = vmatprep.subr.mxu0 0.0
    %1177 = vmatpush2.msra.mxu0 0.0
    %1178 = vmatprep.subr.mxu0 0.0
    %1179 = vmatpush2.msra.mxu0 0.0
    %1180 = vmatprep.subr.mxu0 0.0
    %1181 = vmatpush2.msra.mxu0 0.0
    %1182 = vmatprep.subr.mxu0 0.0
    %1183 = vmatpush2.msra.mxu0 0.0
    %1184 = vmatprep.subr.mxu0 0.0
    %1185 = vmatpush2.msra.mxu0 0.0
    %1186 = vmatprep.subr.mxu0 0.0
    %1187 = vmatpush2.msra.mxu0 0.0
    %1188 = vmatprep.subr.mxu0 0.0
    %1189 = vmatpush2.msra.mxu0 0.0
    %1190 = vmatprep.subr.mxu0 0.0
    %1191 = vmatpush2.msra.mxu0 0.0
    %1192 = vmatprep.subr.mxu0 0.0
    %1193 = vmatpush2.msra.mxu0 0.0
    %1194 = vmatprep.subr.mxu0 0.0
    %1195 = vmatpush2.msra.mxu0 0.0
    %1196 = vmatprep.subr.mxu0 0.0
    %1197 = vmatpush2.msra.mxu0 0.0
    %1198 = vmatprep.subr.mxu0 0.0
    %1199 = vmatpush2.msra.mxu0 0.0
    %1200 = vmatprep.subr.mxu0 0.0
    %1201 = vmatpush2.msra.mxu0 0.0
    %1202 = vmatprep.subr.mxu0 0.0
    %1203 = vmatpush2.msra.mxu0 0.0
    %1204 = vmatprep.subr.mxu0 0.0
    %1205 = vmatpush2.msra.mxu0 0.0
    %1206 = vmatprep.mubr.f32.mxu0 0.0
    %1207 = vmatmul.mubr.f32.gmra.mxu0 %v1140
    %v1208 = vpop.f32.mrf.mxu0
    %v1209 = vadd.f32 0.0, %v1208
    %v1210 = vpop.f32.mrf.mxu0
    %1211 = vdwg.mxu0
    %v1213 = vcombine.high %v1209, %v1209
    %v1215 = vunpack.c.l.s4 1966171168
    %v1216 = vunpack.c.0.s8 %v1215
    %v1217 = vlaneseq
    %v1218 = vshrl.u32 %v1217, 7
    %v1219 = vsub.s32 %v1216, %v1218
    %v1220 = vrot.slane %v1209, %v1219
    %v1222 = vunpack.c.l.s4 1966171168
    %v1223 = vunpack.c.0.s8 %v1222
    %v1224 = vlaneseq
    %v1225 = vshrl.u32 %v1224, 7
    %v1226 = vsub.s32 %v1223, %v1225
    %v1227 = vrot.slane %v1213, %v1226
    %v1228 = vcombine.high %v1220, %v1220
    %v1229 = vcombine.high %v1227, %v1227
    %v1231 = vunpack.c.l.s4 1966171168
    %v1232 = vunpack.c.0.s8 %v1231
    %v1233 = vlaneseq
    %v1234 = vshrl.u32 %v1233, 7
    %v1235 = vsub.s32 %v1232, %v1234
    %v1236 = vrot.slane %v1220, %v1235
    %v1238 = vunpack.c.l.s4 1966171168
    %v1239 = vunpack.c.0.s8 %v1238
    %v1240 = vlaneseq
    %v1241 = vshrl.u32 %v1240, 7
    %v1242 = vsub.s32 %v1239, %v1241
    %v1243 = vrot.slane %v1227, %v1242
    %v1245 = vunpack.c.l.s4 1966171168
    %v1246 = vunpack.c.0.s8 %v1245
    %v1247 = vlaneseq
    %v1248 = vshrl.u32 %v1247, 7
    %v1249 = vsub.s32 %v1246, %v1248
    %v1250 = vrot.slane %v1228, %v1249
    %v1252 = vunpack.c.l.s4 1966171168
    %v1253 = vunpack.c.0.s8 %v1252
    %v1254 = vlaneseq
    %v1255 = vshrl.u32 %v1254, 7
    %v1256 = vsub.s32 %v1253, %v1255
    %v1257 = vrot.slane %v1229, %v1256
    %v1258 = vcombine.high %v1236, %v1236
    %v1259 = vcombine.high %v1243, %v1243
    %v1260 = vcombine.high %v1250, %v1250
    %v1261 = vcombine.high %v1257, %v1257
    %v1262 = vlaneseq
    %v1263 = vshrl.u32 %v1262, 7
    %v1264 = vsub.s32 0, %v1263
    %v1265 = vrot.slane %v408, %v1264
    %v1266 = vlaneseq
    %v1267 = vshrl.u32 %v1266, 7
    %v1268 = vsub.s32 0, %v1267
    %v1269 = vrot.slane %v422, %v1268
    %v1270 = vlaneseq
    %v1271 = vshrl.u32 %v1270, 7
    %v1272 = vsub.s32 0, %v1271
    %v1273 = vrot.slane %v430, %v1272
    %v1274 = vlaneseq
    %v1275 = vshrl.u32 %v1274, 7
    %v1276 = vsub.s32 0, %v1275
    %v1277 = vrot.slane %v432, %v1276
    %v1278 = vlaneseq
    %v1279 = vshrl.u32 %v1278, 7
    %v1280 = vsub.s32 0, %v1279
    %v1281 = vrot.slane %v415, %v1280
    %v1282 = vlaneseq
    %v1283 = vshrl.u32 %v1282, 7
    %v1284 = vsub.s32 0, %v1283
    %v1285 = vrot.slane %v429, %v1284
    %v1286 = vlaneseq
    %v1287 = vshrl.u32 %v1286, 7
    %v1288 = vsub.s32 0, %v1287
    %v1289 = vrot.slane %v431, %v1288
    %v1290 = vlaneseq
    %v1291 = vshrl.u32 %v1290, 7
    %v1292 = vsub.s32 0, %v1291
    %v1293 = vrot.slane %v433, %v1292
    %v1302 = vlaneseq
    %v1303 = vshrl.u32 %v1302, 7
    %v1304 = vsub.s32 0, %v1303
    %v1305 = vrot.slane %v546, %v1304
    %v1306 = vlaneseq
    %v1307 = vshrl.u32 %v1306, 7
    %v1308 = vsub.s32 0, %v1307
    %v1309 = vrot.slane %v560, %v1308
    %v1310 = vlaneseq
    %v1311 = vshrl.u32 %v1310, 7
    %v1312 = vsub.s32 0, %v1311
    %v1313 = vrot.slane %v568, %v1312
    %v1314 = vlaneseq
    %v1315 = vshrl.u32 %v1314, 7
    %v1316 = vsub.s32 0, %v1315
    %v1317 = vrot.slane %v570, %v1316
    %v1318 = vlaneseq
    %v1319 = vshrl.u32 %v1318, 7
    %v1320 = vsub.s32 0, %v1319
    %v1321 = vrot.slane %v553, %v1320
    %v1322 = vlaneseq
    %v1323 = vshrl.u32 %v1322, 7
    %v1324 = vsub.s32 0, %v1323
    %v1325 = vrot.slane %v567, %v1324
    %v1326 = vlaneseq
    %v1327 = vshrl.u32 %v1326, 7
    %v1328 = vsub.s32 0, %v1327
    %v1329 = vrot.slane %v569, %v1328
    %v1330 = vlaneseq
    %v1331 = vshrl.u32 %v1330, 7
    %v1332 = vsub.s32 0, %v1331
    %v1333 = vrot.slane %v571, %v1332
    %v1342 = vlaneseq
    %v1343 = vshrl.u32 %v1342, 7
    %v1344 = vsub.s32 0, %v1343
    %v1345 = vrot.slane %v684, %v1344
    %v1346 = vlaneseq
    %v1347 = vshrl.u32 %v1346, 7
    %v1348 = vsub.s32 0, %v1347
    %v1349 = vrot.slane %v698, %v1348
    %v1350 = vlaneseq
    %v1351 = vshrl.u32 %v1350, 7
    %v1352 = vsub.s32 0, %v1351
    %v1353 = vrot.slane %v706, %v1352
    %v1354 = vlaneseq
    %v1355 = vshrl.u32 %v1354, 7
    %v1356 = vsub.s32 0, %v1355
    %v1357 = vrot.slane %v708, %v1356
    %v1358 = vlaneseq
    %v1359 = vshrl.u32 %v1358, 7
    %v1360 = vsub.s32 0, %v1359
    %v1361 = vrot.slane %v691, %v1360
    %v1362 = vlaneseq
    %v1363 = vshrl.u32 %v1362, 7
    %v1364 = vsub.s32 0, %v1363
    %v1365 = vrot.slane %v705, %v1364
    %v1366 = vlaneseq
    %v1367 = vshrl.u32 %v1366, 7
    %v1368 = vsub.s32 0, %v1367
    %v1369 = vrot.slane %v707, %v1368
    %v1370 = vlaneseq
    %v1371 = vshrl.u32 %v1370, 7
    %v1372 = vsub.s32 0, %v1371
    %v1373 = vrot.slane %v709, %v1372
    %v1382 = vlaneseq
    %v1383 = vshrl.u32 %v1382, 7
    %v1384 = vsub.s32 0, %v1383
    %v1385 = vrot.slane %v822, %v1384
    %v1386 = vlaneseq
    %v1387 = vshrl.u32 %v1386, 7
    %v1388 = vsub.s32 0, %v1387
    %v1389 = vrot.slane %v836, %v1388
    %v1390 = vlaneseq
    %v1391 = vshrl.u32 %v1390, 7
    %v1392 = vsub.s32 0, %v1391
    %v1393 = vrot.slane %v844, %v1392
    %v1394 = vlaneseq
    %v1395 = vshrl.u32 %v1394, 7
    %v1396 = vsub.s32 0, %v1395
    %v1397 = vrot.slane %v846, %v1396
    %v1398 = vlaneseq
    %v1399 = vshrl.u32 %v1398, 7
    %v1400 = vsub.s32 0, %v1399
    %v1401 = vrot.slane %v829, %v1400
    %v1402 = vlaneseq
    %v1403 = vshrl.u32 %v1402, 7
    %v1404 = vsub.s32 0, %v1403
    %v1405 = vrot.slane %v843, %v1404
    %v1406 = vlaneseq
    %v1407 = vshrl.u32 %v1406, 7
    %v1408 = vsub.s32 0, %v1407
    %v1409 = vrot.slane %v845, %v1408
    %v1410 = vlaneseq
    %v1411 = vshrl.u32 %v1410, 7
    %v1412 = vsub.s32 0, %v1411
    %v1413 = vrot.slane %v847, %v1412
    %v1422 = vlaneseq
    %v1423 = vshrl.u32 %v1422, 7
    %v1424 = vsub.s32 0, %v1423
    %v1425 = vrot.slane %v960, %v1424
    %v1426 = vlaneseq
    %v1427 = vshrl.u32 %v1426, 7
    %v1428 = vsub.s32 0, %v1427
    %v1429 = vrot.slane %v974, %v1428
    %v1430 = vlaneseq
    %v1431 = vshrl.u32 %v1430, 7
    %v1432 = vsub.s32 0, %v1431
    %v1433 = vrot.slane %v982, %v1432
    %v1434 = vlaneseq
    %v1435 = vshrl.u32 %v1434, 7
    %v1436 = vsub.s32 0, %v1435
    %v1437 = vrot.slane %v984, %v1436
    %v1438 = vlaneseq
    %v1439 = vshrl.u32 %v1438, 7
    %v1440 = vsub.s32 0, %v1439
    %v1441 = vrot.slane %v967, %v1440
    %v1442 = vlaneseq
    %v1443 = vshrl.u32 %v1442, 7
    %v1444 = vsub.s32 0, %v1443
    %v1445 = vrot.slane %v981, %v1444
    %v1446 = vlaneseq
    %v1447 = vshrl.u32 %v1446, 7
    %v1448 = vsub.s32 0, %v1447
    %v1449 = vrot.slane %v983, %v1448
    %v1450 = vlaneseq
    %v1451 = vshrl.u32 %v1450, 7
    %v1452 = vsub.s32 0, %v1451
    %v1453 = vrot.slane %v985, %v1452
    %v1462 = vlaneseq
    %v1463 = vshrl.u32 %v1462, 7
    %v1464 = vsub.s32 0, %v1463
    %v1465 = vrot.slane %v1098, %v1464
    %v1466 = vlaneseq
    %v1467 = vshrl.u32 %v1466, 7
    %v1468 = vsub.s32 0, %v1467
    %v1469 = vrot.slane %v1112, %v1468
    %v1470 = vlaneseq
    %v1471 = vshrl.u32 %v1470, 7
    %v1472 = vsub.s32 0, %v1471
    %v1473 = vrot.slane %v1120, %v1472
    %v1474 = vlaneseq
    %v1475 = vshrl.u32 %v1474, 7
    %v1476 = vsub.s32 0, %v1475
    %v1477 = vrot.slane %v1122, %v1476
    %v1478 = vlaneseq
    %v1479 = vshrl.u32 %v1478, 7
    %v1480 = vsub.s32 0, %v1479
    %v1481 = vrot.slane %v1105, %v1480
    %v1482 = vlaneseq
    %v1483 = vshrl.u32 %v1482, 7
    %v1484 = vsub.s32 0, %v1483
    %v1485 = vrot.slane %v1119, %v1484
    %v1486 = vlaneseq
    %v1487 = vshrl.u32 %v1486, 7
    %v1488 = vsub.s32 0, %v1487
    %v1489 = vrot.slane %v1121, %v1488
    %v1490 = vlaneseq
    %v1491 = vshrl.u32 %v1490, 7
    %v1492 = vsub.s32 0, %v1491
    %v1493 = vrot.slane %v1123, %v1492
    %v1502 = vlaneseq
    %v1503 = vshrl.u32 %v1502, 7
    %v1504 = vsub.s32 0, %v1503
    %v1505 = vrot.slane %v1236, %v1504
    %v1506 = vlaneseq
    %v1507 = vshrl.u32 %v1506, 7
    %v1508 = vsub.s32 0, %v1507
    %v1509 = vrot.slane %v1250, %v1508
    %v1510 = vlaneseq
    %v1511 = vshrl.u32 %v1510, 7
    %v1512 = vsub.s32 0, %v1511
    %v1513 = vrot.slane %v1258, %v1512
    %v1514 = vlaneseq
    %v1515 = vshrl.u32 %v1514, 7
    %v1516 = vsub.s32 0, %v1515
    %v1517 = vrot.slane %v1260, %v1516
    %v1518 = vlaneseq
    %v1519 = vshrl.u32 %v1518, 7
    %v1520 = vsub.s32 0, %v1519
    %v1521 = vrot.slane %v1243, %v1520
    %v1522 = vlaneseq
    %v1523 = vshrl.u32 %v1522, 7
    %v1524 = vsub.s32 0, %v1523
    %v1525 = vrot.slane %v1257, %v1524
    %v1526 = vlaneseq
    %v1527 = vshrl.u32 %v1526, 7
    %v1528 = vsub.s32 0, %v1527
    %v1529 = vrot.slane %v1259, %v1528
    %v1530 = vlaneseq
    %v1531 = vshrl.u32 %v1530, 7
    %v1532 = vsub.s32 0, %v1531
    %v1533 = vrot.slane %v1261, %v1532
    %vm1542 = vcmask 1040384
    %v1543 = vsel %vm1542, %v262, %v1265
    %v1544 = vsel %vm1542, %v276, %v1269
    %v1545 = vsel %vm1542, %v284, %v1273
    %v1546 = vsel %vm1542, %v286, %v1277
    %v1547 = vsel %vm1542, %v269, %v1281
    %v1548 = vsel %vm1542, %v283, %v1285
    %v1549 = vsel %vm1542, %v285, %v1289
    %v1550 = vsel %vm1542, %v287, %v1293
    %vm1551 = vcmask 1041408
    %v1552 = vsel %vm1551, %v1543, %v1305
    %v1553 = vsel %vm1551, %v1544, %v1309
    %v1554 = vsel %vm1551, %v1545, %v1313
    %v1555 = vsel %vm1551, %v1546, %v1317
    %v1556 = vsel %vm1551, %v1547, %v1321
    %v1557 = vsel %vm1551, %v1548, %v1325
    %v1558 = vsel %vm1551, %v1549, %v1329
    %v1559 = vsel %vm1551, %v1550, %v1333
    %vm1560 = vcmask 1042432
    %v1561 = vsel %vm1560, %v1552, %v1345
    %v1562 = vsel %vm1560, %v1553, %v1349
    %v1563 = vsel %vm1560, %v1554, %v1353
    %v1564 = vsel %vm1560, %v1555, %v1357
    %v1565 = vsel %vm1560, %v1556, %v1361
    %v1566 = vsel %vm1560, %v1557, %v1365
    %v1567 = vsel %vm1560, %v1558, %v1369
    %v1568 = vsel %vm1560, %v1559, %v1373
    %vm1569 = vcmask 1043456
    %v1570 = vsel %vm1569, %v1561, %v1385
    %v1571 = vsel %vm1569, %v1562, %v1389
    %v1572 = vsel %vm1569, %v1563, %v1393
    %v1573 = vsel %vm1569, %v1564, %v1397
    %v1574 = vsel %vm1569, %v1565, %v1401
    %v1575 = vsel %vm1569, %v1566, %v1405
    %v1576 = vsel %vm1569, %v1567, %v1409
    %v1577 = vsel %vm1569, %v1568, %v1413
    %vm1578 = vcmask 1044480
    %v1579 = vsel %vm1578, %v1570, %v1425
    %v1580 = vsel %vm1578, %v1571, %v1429
    %v1581 = vsel %vm1578, %v1572, %v1433
    %v1582 = vsel %vm1578, %v1573, %v1437
    %v1583 = vsel %vm1578, %v1574, %v1441
    %v1584 = vsel %vm1578, %v1575, %v1445
    %v1585 = vsel %vm1578, %v1576, %v1449
    %v1586 = vsel %vm1578, %v1577, %v1453
    %vm1587 = vcmask 1045504
    %v1588 = vsel %vm1587, %v1579, %v1465
    %v1589 = vsel %vm1587, %v1580, %v1469
    %v1590 = vsel %vm1587, %v1581, %v1473
    %v1591 = vsel %vm1587, %v1582, %v1477
    %v1592 = vsel %vm1587, %v1583, %v1481
    %v1593 = vsel %vm1587, %v1584, %v1485
    %v1594 = vsel %vm1587, %v1585, %v1489
    %v1595 = vsel %vm1587, %v1586, %v1493
    %vm1596 = vcmask 1046528
    %v1597 = vsel %vm1596, %v1588, %v1505
    %v1598 = vsel %vm1596, %v1589, %v1509
    %v1599 = vsel %vm1596, %v1590, %v1513
    %v1600 = vsel %vm1596, %v1591, %v1517
    %v1601 = vsel %vm1596, %v1592, %v1521
    %v1602 = vsel %vm1596, %v1593, %v1525
    %v1603 = vsel %vm1596, %v1594, %v1529
    %v1604 = vsel %vm1596, %v1595, %v1533
    %s1605 = scalar_lea.vmem %s4, 64
    %v1606 = vld [vmem:[%s1605] sm:$0xff]
    %v1607 = vld [vmem:[%s1605 + $0x8] sm:$0xff]
    %v1608 = vld [vmem:[%s1605 + $0x10] sm:$0xff]
    %v1609 = vld [vmem:[%s1605 + $0x18] sm:$0xff]
    %1610 = vrot.lane.b32.xlu0 %v121, 96
    %v1611 = vpop.permute.xlu0 %1610
    %v1612 = vsel %vm165, %v121, 0
    %v1614 = vsel %vm165, %v1611, 0
    %1616 = vmatprep.subr.mxu0 0.0
    %1617 = vmatpush1.xpose.msra.mxu0 0.0
    %1618 = vmatprep.subr.mxu0 0.0
    %1619 = vmatpush1.xpose.msra.mxu0 0.0
    %1620 = vmatprep.subr.mxu0 0.0
    %1621 = vmatpush1.xpose.msra.mxu0 0.0
    %1622 = vmatprep.subr.mxu0 0.0
    %1623 = vmatpush1.xpose.msra.mxu0 0.0
    %1624 = vmatprep.subr.mxu0 0.0
    %1625 = vmatpush1.xpose.msra.mxu0 0.0
    %1626 = vmatprep.subr.mxu0 0.0
    %1627 = vmatpush1.xpose.msra.mxu0 0.0
    %1628 = vmatprep.subr.mxu0 0.0
    %1629 = vmatpush1.xpose.msra.mxu0 0.0
    %1630 = vmatprep.subr.mxu0 0.0
    %1631 = vmatpush1.xpose.msra.mxu0 0.0
    %1632 = vmatprep.subr.mxu0 0.0
    %1633 = vmatpush1.xpose.msra.mxu0 0.0
    %1634 = vmatprep.subr.mxu0 0.0
    %1635 = vmatpush1.xpose.msra.mxu0 0.0
    %1636 = vmatprep.subr.mxu0 0.0
    %1637 = vmatpush1.xpose.msra.mxu0 0.0
    %1638 = vmatprep.subr.mxu0 0.0
    %1639 = vmatpush1.xpose.msra.mxu0 0.0
    %1640 = vmatprep.subr.mxu0 0.0
    %1641 = vmatpush1.xpose.msra.mxu0 0.0
    %1642 = vmatprep.subr.mxu0 0.0
    %1643 = vmatpush1.xpose.msra.mxu0 0.0
    %1644 = vmatprep.subr.mxu0 0.0
    %1645 = vmatpush1.xpose.msra.mxu0 0.0
    %1646 = vmatprep.subr.mxu0 0.0
    %1647 = vmatpush1.xpose.msra.mxu0 %v1614
    %1648 = vmatprep.subr.mxu0 0.0
    %1649 = vmatpush2.xpose.msra.mxu0 0.0
    %1650 = vmatprep.subr.mxu0 0.0
    %1651 = vmatpush2.xpose.msra.mxu0 0.0
    %1652 = vmatprep.subr.mxu0 0.0
    %1653 = vmatpush2.xpose.msra.mxu0 0.0
    %1654 = vmatprep.subr.mxu0 0.0
    %1655 = vmatpush2.xpose.msra.mxu0 0.0
    %1656 = vmatprep.subr.mxu0 0.0
    %1657 = vmatpush2.xpose.msra.mxu0 0.0
    %1658 = vmatprep.subr.mxu0 0.0
    %1659 = vmatpush2.xpose.msra.mxu0 0.0
    %1660 = vmatprep.subr.mxu0 0.0
    %1661 = vmatpush2.xpose.msra.mxu0 0.0
    %1662 = vmatprep.subr.mxu0 0.0
    %1663 = vmatpush2.xpose.msra.mxu0 0.0
    %1664 = vmatprep.subr.mxu0 0.0
    %1665 = vmatpush2.xpose.msra.mxu0 0.0
    %1666 = vmatprep.subr.mxu0 0.0
    %1667 = vmatpush2.xpose.msra.mxu0 0.0
    %1668 = vmatprep.subr.mxu0 0.0
    %1669 = vmatpush2.xpose.msra.mxu0 0.0
    %1670 = vmatprep.subr.mxu0 0.0
    %1671 = vmatpush2.xpose.msra.mxu0 0.0
    %1672 = vmatprep.subr.mxu0 0.0
    %1673 = vmatpush2.xpose.msra.mxu0 0.0
    %1674 = vmatprep.subr.mxu0 0.0
    %1675 = vmatpush2.xpose.msra.mxu0 0.0
    %1676 = vmatprep.subr.mxu0 0.0
    %1677 = vmatpush2.xpose.msra.mxu0 0.0
    %1678 = vmatprep.subr.mxu0 0.0
    %1679 = vmatpush2.xpose.msra.mxu0 0.0
    %1680 = vmatprep.mubr.f32.mxu0 0.0
    %1681 = vmatmul.mubr.f32.gmra.mxu0 %v1612
    %v1682 = vpop.f32.mrf.mxu0
    %v1683 = vadd.f32 %v1597, %v1682
    %v1684 = vpop.f32.mrf.mxu0
    %1685 = vdwg.mxu0
    %1686 = vrot.lane.b32.xlu0 %v126, 96
    %v1687 = vpop.permute.xlu0 %1686
    %v1688 = vsel %vm165, %v126, 0
    %v1690 = vsel %vm165, %v1687, 0
    %1692 = vmatprep.subr.mxu0 0.0
    %1693 = vmatpush1.xpose.msra.mxu0 0.0
    %1694 = vmatprep.subr.mxu0 0.0
    %1695 = vmatpush1.xpose.msra.mxu0 0.0
    %1696 = vmatprep.subr.mxu0 0.0
    %1697 = vmatpush1.xpose.msra.mxu0 0.0
    %1698 = vmatprep.subr.mxu0 0.0
    %1699 = vmatpush1.xpose.msra.mxu0 0.0
    %1700 = vmatprep.subr.mxu0 0.0
    %1701 = vmatpush1.xpose.msra.mxu0 0.0
    %1702 = vmatprep.subr.mxu0 0.0
    %1703 = vmatpush1.xpose.msra.mxu0 0.0
    %1704 = vmatprep.subr.mxu0 0.0
    %1705 = vmatpush1.xpose.msra.mxu0 0.0
    %1706 = vmatprep.subr.mxu0 0.0
    %1707 = vmatpush1.xpose.msra.mxu0 0.0
    %1708 = vmatprep.subr.mxu0 0.0
    %1709 = vmatpush1.xpose.msra.mxu0 0.0
    %1710 = vmatprep.subr.mxu0 0.0
    %1711 = vmatpush1.xpose.msra.mxu0 0.0
    %1712 = vmatprep.subr.mxu0 0.0
    %1713 = vmatpush1.xpose.msra.mxu0 0.0
    %1714 = vmatprep.subr.mxu0 0.0
    %1715 = vmatpush1.xpose.msra.mxu0 0.0
    %1716 = vmatprep.subr.mxu0 0.0
    %1717 = vmatpush1.xpose.msra.mxu0 0.0
    %1718 = vmatprep.subr.mxu0 0.0
    %1719 = vmatpush1.xpose.msra.mxu0 0.0
    %1720 = vmatprep.subr.mxu0 0.0
    %1721 = vmatpush1.xpose.msra.mxu0 0.0
    %1722 = vmatprep.subr.mxu0 0.0
    %1723 = vmatpush1.xpose.msra.mxu0 %v1690
    %1724 = vmatprep.subr.mxu0 0.0
    %1725 = vmatpush2.xpose.msra.mxu0 0.0
    %1726 = vmatprep.subr.mxu0 0.0
    %1727 = vmatpush2.xpose.msra.mxu0 0.0
    %1728 = vmatprep.subr.mxu0 0.0
    %1729 = vmatpush2.xpose.msra.mxu0 0.0
    %1730 = vmatprep.subr.mxu0 0.0
    %1731 = vmatpush2.xpose.msra.mxu0 0.0
    %1732 = vmatprep.subr.mxu0 0.0
    %1733 = vmatpush2.xpose.msra.mxu0 0.0
    %1734 = vmatprep.subr.mxu0 0.0
    %1735 = vmatpush2.xpose.msra.mxu0 0.0
    %1736 = vmatprep.subr.mxu0 0.0
    %1737 = vmatpush2.xpose.msra.mxu0 0.0
    %1738 = vmatprep.subr.mxu0 0.0
    %1739 = vmatpush2.xpose.msra.mxu0 0.0
    %1740 = vmatprep.subr.mxu0 0.0
    %1741 = vmatpush2.xpose.msra.mxu0 0.0
    %1742 = vmatprep.subr.mxu0 0.0
    %1743 = vmatpush2.xpose.msra.mxu0 0.0
    %1744 = vmatprep.subr.mxu0 0.0
    %1745 = vmatpush2.xpose.msra.mxu0 0.0
    %1746 = vmatprep.subr.mxu0 0.0
    %1747 = vmatpush2.xpose.msra.mxu0 0.0
    %1748 = vmatprep.subr.mxu0 0.0
    %1749 = vmatpush2.xpose.msra.mxu0 0.0
    %1750 = vmatprep.subr.mxu0 0.0
    %1751 = vmatpush2.xpose.msra.mxu0 0.0
    %1752 = vmatprep.subr.mxu0 0.0
    %1753 = vmatpush2.xpose.msra.mxu0 0.0
    %1754 = vmatprep.subr.mxu0 0.0
    %1755 = vmatpush2.xpose.msra.mxu0 0.0
    %1756 = vmatprep.mubr.f32.mxu0 0.0
    %1757 = vmatmul.mubr.f32.gmra.mxu0 %v1688
    %v1758 = vpop.f32.mrf.mxu0
    %v1759 = vadd.f32 %v1598, %v1758
    %v1760 = vpop.f32.mrf.mxu0
    %1761 = vdwg.mxu0
    %1762 = vrot.lane.b32.xlu0 %v132, 96
    %v1763 = vpop.permute.xlu0 %1762
    %v1764 = vsel %vm165, %v132, 0
    %v1766 = vsel %vm165, %v1763, 0
    %1768 = vmatprep.subr.mxu0 0.0
    %1769 = vmatpush1.xpose.msra.mxu0 0.0
    %1770 = vmatprep.subr.mxu0 0.0
    %1771 = vmatpush1.xpose.msra.mxu0 0.0
    %1772 = vmatprep.subr.mxu0 0.0
    %1773 = vmatpush1.xpose.msra.mxu0 0.0
    %1774 = vmatprep.subr.mxu0 0.0
    %1775 = vmatpush1.xpose.msra.mxu0 0.0
    %1776 = vmatprep.subr.mxu0 0.0
    %1777 = vmatpush1.xpose.msra.mxu0 0.0
    %1778 = vmatprep.subr.mxu0 0.0
    %1779 = vmatpush1.xpose.msra.mxu0 0.0
    %1780 = vmatprep.subr.mxu0 0.0
    %1781 = vmatpush1.xpose.msra.mxu0 0.0
    %1782 = vmatprep.subr.mxu0 0.0
    %1783 = vmatpush1.xpose.msra.mxu0 0.0
    %1784 = vmatprep.subr.mxu0 0.0
    %1785 = vmatpush1.xpose.msra.mxu0 0.0
    %1786 = vmatprep.subr.mxu0 0.0
    %1787 = vmatpush1.xpose.msra.mxu0 0.0
    %1788 = vmatprep.subr.mxu0 0.0
    %1789 = vmatpush1.xpose.msra.mxu0 0.0
    %1790 = vmatprep.subr.mxu0 0.0
    %1791 = vmatpush1.xpose.msra.mxu0 0.0
    %1792 = vmatprep.subr.mxu0 0.0
    %1793 = vmatpush1.xpose.msra.mxu0 0.0
    %1794 = vmatprep.subr.mxu0 0.0
    %1795 = vmatpush1.xpose.msra.mxu0 0.0
    %1796 = vmatprep.subr.mxu0 0.0
    %1797 = vmatpush1.xpose.msra.mxu0 0.0
    %1798 = vmatprep.subr.mxu0 0.0
    %1799 = vmatpush1.xpose.msra.mxu0 %v1766
    %1800 = vmatprep.subr.mxu0 0.0
    %1801 = vmatpush2.xpose.msra.mxu0 0.0
    %1802 = vmatprep.subr.mxu0 0.0
    %1803 = vmatpush2.xpose.msra.mxu0 0.0
    %1804 = vmatprep.subr.mxu0 0.0
    %1805 = vmatpush2.xpose.msra.mxu0 0.0
    %1806 = vmatprep.subr.mxu0 0.0
    %1807 = vmatpush2.xpose.msra.mxu0 0.0
    %1808 = vmatprep.subr.mxu0 0.0
    %1809 = vmatpush2.xpose.msra.mxu0 0.0
    %1810 = vmatprep.subr.mxu0 0.0
    %1811 = vmatpush2.xpose.msra.mxu0 0.0
    %1812 = vmatprep.subr.mxu0 0.0
    %1813 = vmatpush2.xpose.msra.mxu0 0.0
    %1814 = vmatprep.subr.mxu0 0.0
    %1815 = vmatpush2.xpose.msra.mxu0 0.0
    %1816 = vmatprep.subr.mxu0 0.0
    %1817 = vmatpush2.xpose.msra.mxu0 0.0
    %1818 = vmatprep.subr.mxu0 0.0
    %1819 = vmatpush2.xpose.msra.mxu0 0.0
    %1820 = vmatprep.subr.mxu0 0.0
    %1821 = vmatpush2.xpose.msra.mxu0 0.0
    %1822 = vmatprep.subr.mxu0 0.0
    %1823 = vmatpush2.xpose.msra.mxu0 0.0
    %1824 = vmatprep.subr.mxu0 0.0
    %1825 = vmatpush2.xpose.msra.mxu0 0.0
    %1826 = vmatprep.subr.mxu0 0.0
    %1827 = vmatpush2.xpose.msra.mxu0 0.0
    %1828 = vmatprep.subr.mxu0 0.0
    %1829 = vmatpush2.xpose.msra.mxu0 0.0
    %1830 = vmatprep.subr.mxu0 0.0
    %1831 = vmatpush2.xpose.msra.mxu0 0.0
    %1832 = vmatprep.mubr.f32.mxu0 0.0
    %1833 = vmatmul.mubr.f32.gmra.mxu0 %v1764
    %v1834 = vpop.f32.mrf.mxu0
    %v1835 = vadd.f32 %v1599, %v1834
    %v1836 = vpop.f32.mrf.mxu0
    %1837 = vdwg.mxu0
    %1838 = vrot.lane.b32.xlu0 %v134, 96
    %v1839 = vpop.permute.xlu0 %1838
    %v1840 = vsel %vm165, %v134, 0
    %v1842 = vsel %vm165, %v1839, 0
    %1844 = vmatprep.subr.mxu0 0.0
    %1845 = vmatpush1.xpose.msra.mxu0 0.0
    %1846 = vmatprep.subr.mxu0 0.0
    %1847 = vmatpush1.xpose.msra.mxu0 0.0
    %1848 = vmatprep.subr.mxu0 0.0
    %1849 = vmatpush1.xpose.msra.mxu0 0.0
    %1850 = vmatprep.subr.mxu0 0.0
    %1851 = vmatpush1.xpose.msra.mxu0 0.0
    %1852 = vmatprep.subr.mxu0 0.0
    %1853 = vmatpush1.xpose.msra.mxu0 0.0
    %1854 = vmatprep.subr.mxu0 0.0
    %1855 = vmatpush1.xpose.msra.mxu0 0.0
    %1856 = vmatprep.subr.mxu0 0.0
    %1857 = vmatpush1.xpose.msra.mxu0 0.0
    %1858 = vmatprep.subr.mxu0 0.0
    %1859 = vmatpush1.xpose.msra.mxu0 0.0
    %1860 = vmatprep.subr.mxu0 0.0
    %1861 = vmatpush1.xpose.msra.mxu0 0.0
    %1862 = vmatprep.subr.mxu0 0.0
    %1863 = vmatpush1.xpose.msra.mxu0 0.0
    %1864 = vmatprep.subr.mxu0 0.0
    %1865 = vmatpush1.xpose.msra.mxu0 0.0
    %1866 = vmatprep.subr.mxu0 0.0
    %1867 = vmatpush1.xpose.msra.mxu0 0.0
    %1868 = vmatprep.subr.mxu0 0.0
    %1869 = vmatpush1.xpose.msra.mxu0 0.0
    %1870 = vmatprep.subr.mxu0 0.0
    %1871 = vmatpush1.xpose.msra.mxu0 0.0
    %1872 = vmatprep.subr.mxu0 0.0
    %1873 = vmatpush1.xpose.msra.mxu0 0.0
    %1874 = vmatprep.subr.mxu0 0.0
    %1875 = vmatpush1.xpose.msra.mxu0 %v1842
    %1876 = vmatprep.subr.mxu0 0.0
    %1877 = vmatpush2.xpose.msra.mxu0 0.0
    %1878 = vmatprep.subr.mxu0 0.0
    %1879 = vmatpush2.xpose.msra.mxu0 0.0
    %1880 = vmatprep.subr.mxu0 0.0
    %1881 = vmatpush2.xpose.msra.mxu0 0.0
    %1882 = vmatprep.subr.mxu0 0.0
    %1883 = vmatpush2.xpose.msra.mxu0 0.0
    %1884 = vmatprep.subr.mxu0 0.0
    %1885 = vmatpush2.xpose.msra.mxu0 0.0
    %1886 = vmatprep.subr.mxu0 0.0
    %1887 = vmatpush2.xpose.msra.mxu0 0.0
    %1888 = vmatprep.subr.mxu0 0.0
    %1889 = vmatpush2.xpose.msra.mxu0 0.0
    %1890 = vmatprep.subr.mxu0 0.0
    %1891 = vmatpush2.xpose.msra.mxu0 0.0
    %1892 = vmatprep.subr.mxu0 0.0
    %1893 = vmatpush2.xpose.msra.mxu0 0.0
    %1894 = vmatprep.subr.mxu0 0.0
    %1895 = vmatpush2.xpose.msra.mxu0 0.0
    %1896 = vmatprep.subr.mxu0 0.0
    %1897 = vmatpush2.xpose.msra.mxu0 0.0
    %1898 = vmatprep.subr.mxu0 0.0
    %1899 = vmatpush2.xpose.msra.mxu0 0.0
    %1900 = vmatprep.subr.mxu0 0.0
    %1901 = vmatpush2.xpose.msra.mxu0 0.0
    %1902 = vmatprep.subr.mxu0 0.0
    %1903 = vmatpush2.xpose.msra.mxu0 0.0
    %1904 = vmatprep.subr.mxu0 0.0
    %1905 = vmatpush2.xpose.msra.mxu0 0.0
    %1906 = vmatprep.subr.mxu0 0.0
    %1907 = vmatpush2.xpose.msra.mxu0 0.0
    %1908 = vmatprep.mubr.f32.mxu0 0.0
    %1909 = vmatmul.mubr.f32.gmra.mxu0 %v1840
    %v1910 = vpop.f32.mrf.mxu0
    %v1911 = vadd.f32 %v1600, %v1910
    %v1912 = vpop.f32.mrf.mxu0
    %1913 = vdwg.mxu0
    %1914 = vrot.lane.b32.xlu0 %v136, 96
    %v1915 = vpop.permute.xlu0 %1914
    %v1916 = vsel %vm165, %v136, 0
    %v1918 = vsel %vm165, %v1915, 0
    %1920 = vmatprep.subr.mxu0 0.0
    %1921 = vmatpush1.xpose.msra.mxu0 0.0
    %1922 = vmatprep.subr.mxu0 0.0
    %1923 = vmatpush1.xpose.msra.mxu0 0.0
    %1924 = vmatprep.subr.mxu0 0.0
    %1925 = vmatpush1.xpose.msra.mxu0 0.0
    %1926 = vmatprep.subr.mxu0 0.0
    %1927 = vmatpush1.xpose.msra.mxu0 0.0
    %1928 = vmatprep.subr.mxu0 0.0
    %1929 = vmatpush1.xpose.msra.mxu0 0.0
    %1930 = vmatprep.subr.mxu0 0.0
    %1931 = vmatpush1.xpose.msra.mxu0 0.0
    %1932 = vmatprep.subr.mxu0 0.0
    %1933 = vmatpush1.xpose.msra.mxu0 0.0
    %1934 = vmatprep.subr.mxu0 0.0
    %1935 = vmatpush1.xpose.msra.mxu0 0.0
    %1936 = vmatprep.subr.mxu0 0.0
    %1937 = vmatpush1.xpose.msra.mxu0 0.0
    %1938 = vmatprep.subr.mxu0 0.0
    %1939 = vmatpush1.xpose.msra.mxu0 0.0
    %1940 = vmatprep.subr.mxu0 0.0
    %1941 = vmatpush1.xpose.msra.mxu0 0.0
    %1942 = vmatprep.subr.mxu0 0.0
    %1943 = vmatpush1.xpose.msra.mxu0 0.0
    %1944 = vmatprep.subr.mxu0 0.0
    %1945 = vmatpush1.xpose.msra.mxu0 0.0
    %1946 = vmatprep.subr.mxu0 0.0
    %1947 = vmatpush1.xpose.msra.mxu0 0.0
    %1948 = vmatprep.subr.mxu0 0.0
    %1949 = vmatpush1.xpose.msra.mxu0 0.0
    %1950 = vmatprep.subr.mxu0 0.0
    %1951 = vmatpush1.xpose.msra.mxu0 %v1918
    %1952 = vmatprep.subr.mxu0 0.0
    %1953 = vmatpush2.xpose.msra.mxu0 0.0
    %1954 = vmatprep.subr.mxu0 0.0
    %1955 = vmatpush2.xpose.msra.mxu0 0.0
    %1956 = vmatprep.subr.mxu0 0.0
    %1957 = vmatpush2.xpose.msra.mxu0 0.0
    %1958 = vmatprep.subr.mxu0 0.0
    %1959 = vmatpush2.xpose.msra.mxu0 0.0
    %1960 = vmatprep.subr.mxu0 0.0
    %1961 = vmatpush2.xpose.msra.mxu0 0.0
    %1962 = vmatprep.subr.mxu0 0.0
    %1963 = vmatpush2.xpose.msra.mxu0 0.0
    %1964 = vmatprep.subr.mxu0 0.0
    %1965 = vmatpush2.xpose.msra.mxu0 0.0
    %1966 = vmatprep.subr.mxu0 0.0
    %1967 = vmatpush2.xpose.msra.mxu0 0.0
    %1968 = vmatprep.subr.mxu0 0.0
    %1969 = vmatpush2.xpose.msra.mxu0 0.0
    %1970 = vmatprep.subr.mxu0 0.0
    %1971 = vmatpush2.xpose.msra.mxu0 0.0
    %1972 = vmatprep.subr.mxu0 0.0
    %1973 = vmatpush2.xpose.msra.mxu0 0.0
    %1974 = vmatprep.subr.mxu0 0.0
    %1975 = vmatpush2.xpose.msra.mxu0 0.0
    %1976 = vmatprep.subr.mxu0 0.0
    %1977 = vmatpush2.xpose.msra.mxu0 0.0
    %1978 = vmatprep.subr.mxu0 0.0
    %1979 = vmatpush2.xpose.msra.mxu0 0.0
    %1980 = vmatprep.subr.mxu0 0.0
    %1981 = vmatpush2.xpose.msra.mxu0 0.0
    %1982 = vmatprep.subr.mxu0 0.0
    %1983 = vmatpush2.xpose.msra.mxu0 0.0
    %1984 = vmatprep.mubr.f32.mxu0 0.0
    %1985 = vmatmul.mubr.f32.gmra.mxu0 %v1916
    %v1986 = vpop.f32.mrf.mxu0
    %v1987 = vadd.f32 %v1601, %v1986
    %v1988 = vpop.f32.mrf.mxu0
    %1989 = vdwg.mxu0
    %1990 = vrot.lane.b32.xlu0 %v138, 96
    %v1991 = vpop.permute.xlu0 %1990
    %v1992 = vsel %vm165, %v138, 0
    %v1994 = vsel %vm165, %v1991, 0
    %1996 = vmatprep.subr.mxu0 0.0
    %1997 = vmatpush1.xpose.msra.mxu0 0.0
    %1998 = vmatprep.subr.mxu0 0.0
    %1999 = vmatpush1.xpose.msra.mxu0 0.0
    %2000 = vmatprep.subr.mxu0 0.0
    %2001 = vmatpush1.xpose.msra.mxu0 0.0
    %2002 = vmatprep.subr.mxu0 0.0
    %2003 = vmatpush1.xpose.msra.mxu0 0.0
    %2004 = vmatprep.subr.mxu0 0.0
    %2005 = vmatpush1.xpose.msra.mxu0 0.0
    %2006 = vmatprep.subr.mxu0 0.0
    %2007 = vmatpush1.xpose.msra.mxu0 0.0
    %2008 = vmatprep.subr.mxu0 0.0
    %2009 = vmatpush1.xpose.msra.mxu0 0.0
    %2010 = vmatprep.subr.mxu0 0.0
    %2011 = vmatpush1.xpose.msra.mxu0 0.0
    %2012 = vmatprep.subr.mxu0 0.0
    %2013 = vmatpush1.xpose.msra.mxu0 0.0
    %2014 = vmatprep.subr.mxu0 0.0
    %2015 = vmatpush1.xpose.msra.mxu0 0.0
    %2016 = vmatprep.subr.mxu0 0.0
    %2017 = vmatpush1.xpose.msra.mxu0 0.0
    %2018 = vmatprep.subr.mxu0 0.0
    %2019 = vmatpush1.xpose.msra.mxu0 0.0
    %2020 = vmatprep.subr.mxu0 0.0
    %2021 = vmatpush1.xpose.msra.mxu0 0.0
    %2022 = vmatprep.subr.mxu0 0.0
    %2023 = vmatpush1.xpose.msra.mxu0 0.0
    %2024 = vmatprep.subr.mxu0 0.0
    %2025 = vmatpush1.xpose.msra.mxu0 0.0
    %2026 = vmatprep.subr.mxu0 0.0
    %2027 = vmatpush1.xpose.msra.mxu0 %v1994
    %2028 = vmatprep.subr.mxu0 0.0
    %2029 = vmatpush2.xpose.msra.mxu0 0.0
    %2030 = vmatprep.subr.mxu0 0.0
    %2031 = vmatpush2.xpose.msra.mxu0 0.0
    %2032 = vmatprep.subr.mxu0 0.0
    %2033 = vmatpush2.xpose.msra.mxu0 0.0
    %2034 = vmatprep.subr.mxu0 0.0
    %2035 = vmatpush2.xpose.msra.mxu0 0.0
    %2036 = vmatprep.subr.mxu0 0.0
    %2037 = vmatpush2.xpose.msra.mxu0 0.0
    %2038 = vmatprep.subr.mxu0 0.0
    %2039 = vmatpush2.xpose.msra.mxu0 0.0
    %2040 = vmatprep.subr.mxu0 0.0
    %2041 = vmatpush2.xpose.msra.mxu0 0.0
    %2042 = vmatprep.subr.mxu0 0.0
    %2043 = vmatpush2.xpose.msra.mxu0 0.0
    %2044 = vmatprep.subr.mxu0 0.0
    %2045 = vmatpush2.xpose.msra.mxu0 0.0
    %2046 = vmatprep.subr.mxu0 0.0
    %2047 = vmatpush2.xpose.msra.mxu0 0.0
    %2048 = vmatprep.subr.mxu0 0.0
    %2049 = vmatpush2.xpose.msra.mxu0 0.0
    %2050 = vmatprep.subr.mxu0 0.0
    %2051 = vmatpush2.xpose.msra.mxu0 0.0
    %2052 = vmatprep.subr.mxu0 0.0
    %2053 = vmatpush2.xpose.msra.mxu0 0.0
    %2054 = vmatprep.subr.mxu0 0.0
    %2055 = vmatpush2.xpose.msra.mxu0 0.0
    %2056 = vmatprep.subr.mxu0 0.0
    %2057 = vmatpush2.xpose.msra.mxu0 0.0
    %2058 = vmatprep.subr.mxu0 0.0
    %2059 = vmatpush2.xpose.msra.mxu0 0.0
    %2060 = vmatprep.mubr.f32.mxu0 0.0
    %2061 = vmatmul.mubr.f32.gmra.mxu0 %v1992
    %v2062 = vpop.f32.mrf.mxu0
    %v2063 = vadd.f32 %v1602, %v2062
    %v2064 = vpop.f32.mrf.mxu0
    %2065 = vdwg.mxu0
    %2066 = vrot.lane.b32.xlu0 %v140, 96
    %v2067 = vpop.permute.xlu0 %2066
    %v2068 = vsel %vm165, %v140, 0
    %v2070 = vsel %vm165, %v2067, 0
    %2072 = vmatprep.subr.mxu0 0.0
    %2073 = vmatpush1.xpose.msra.mxu0 0.0
    %2074 = vmatprep.subr.mxu0 0.0
    %2075 = vmatpush1.xpose.msra.mxu0 0.0
    %2076 = vmatprep.subr.mxu0 0.0
    %2077 = vmatpush1.xpose.msra.mxu0 0.0
    %2078 = vmatprep.subr.mxu0 0.0
    %2079 = vmatpush1.xpose.msra.mxu0 0.0
    %2080 = vmatprep.subr.mxu0 0.0
    %2081 = vmatpush1.xpose.msra.mxu0 0.0
    %2082 = vmatprep.subr.mxu0 0.0
    %2083 = vmatpush1.xpose.msra.mxu0 0.0
    %2084 = vmatprep.subr.mxu0 0.0
    %2085 = vmatpush1.xpose.msra.mxu0 0.0
    %2086 = vmatprep.subr.mxu0 0.0
    %2087 = vmatpush1.xpose.msra.mxu0 0.0
    %2088 = vmatprep.subr.mxu0 0.0
    %2089 = vmatpush1.xpose.msra.mxu0 0.0
    %2090 = vmatprep.subr.mxu0 0.0
    %2091 = vmatpush1.xpose.msra.mxu0 0.0
    %2092 = vmatprep.subr.mxu0 0.0
    %2093 = vmatpush1.xpose.msra.mxu0 0.0
    %2094 = vmatprep.subr.mxu0 0.0
    %2095 = vmatpush1.xpose.msra.mxu0 0.0
    %2096 = vmatprep.subr.mxu0 0.0
    %2097 = vmatpush1.xpose.msra.mxu0 0.0
    %2098 = vmatprep.subr.mxu0 0.0
    %2099 = vmatpush1.xpose.msra.mxu0 0.0
    %2100 = vmatprep.subr.mxu0 0.0
    %2101 = vmatpush1.xpose.msra.mxu0 0.0
    %2102 = vmatprep.subr.mxu0 0.0
    %2103 = vmatpush1.xpose.msra.mxu0 %v2070
    %2104 = vmatprep.subr.mxu0 0.0
    %2105 = vmatpush2.xpose.msra.mxu0 0.0
    %2106 = vmatprep.subr.mxu0 0.0
    %2107 = vmatpush2.xpose.msra.mxu0 0.0
    %2108 = vmatprep.subr.mxu0 0.0
    %2109 = vmatpush2.xpose.msra.mxu0 0.0
    %2110 = vmatprep.subr.mxu0 0.0
    %2111 = vmatpush2.xpose.msra.mxu0 0.0
    %2112 = vmatprep.subr.mxu0 0.0
    %2113 = vmatpush2.xpose.msra.mxu0 0.0
    %2114 = vmatprep.subr.mxu0 0.0
    %2115 = vmatpush2.xpose.msra.mxu0 0.0
    %2116 = vmatprep.subr.mxu0 0.0
    %2117 = vmatpush2.xpose.msra.mxu0 0.0
    %2118 = vmatprep.subr.mxu0 0.0
    %2119 = vmatpush2.xpose.msra.mxu0 0.0
    %2120 = vmatprep.subr.mxu0 0.0
    %2121 = vmatpush2.xpose.msra.mxu0 0.0
    %2122 = vmatprep.subr.mxu0 0.0
    %2123 = vmatpush2.xpose.msra.mxu0 0.0
    %2124 = vmatprep.subr.mxu0 0.0
    %2125 = vmatpush2.xpose.msra.mxu0 0.0
    %2126 = vmatprep.subr.mxu0 0.0
    %2127 = vmatpush2.xpose.msra.mxu0 0.0
    %2128 = vmatprep.subr.mxu0 0.0
    %2129 = vmatpush2.xpose.msra.mxu0 0.0
    %2130 = vmatprep.subr.mxu0 0.0
    %2131 = vmatpush2.xpose.msra.mxu0 0.0
    %2132 = vmatprep.subr.mxu0 0.0
    %2133 = vmatpush2.xpose.msra.mxu0 0.0
    %2134 = vmatprep.subr.mxu0 0.0
    %2135 = vmatpush2.xpose.msra.mxu0 0.0
    %2136 = vmatprep.mubr.f32.mxu0 0.0
    %2137 = vmatmul.mubr.f32.gmra.mxu0 %v2068
    %v2138 = vpop.f32.mrf.mxu0
    %v2139 = vadd.f32 %v1603, %v2138
    %v2140 = vpop.f32.mrf.mxu0
    %2141 = vdwg.mxu0
    %2142 = vrot.lane.b32.xlu0 %v142, 96
    %v2143 = vpop.permute.xlu0 %2142
    %v2144 = vsel %vm165, %v142, 0
    %v2146 = vsel %vm165, %v2143, 0
    %2148 = vmatprep.subr.mxu0 0.0
    %2149 = vmatpush1.xpose.msra.mxu0 0.0
    %2150 = vmatprep.subr.mxu0 0.0
    %2151 = vmatpush1.xpose.msra.mxu0 0.0
    %2152 = vmatprep.subr.mxu0 0.0
    %2153 = vmatpush1.xpose.msra.mxu0 0.0
    %2154 = vmatprep.subr.mxu0 0.0
    %2155 = vmatpush1.xpose.msra.mxu0 0.0
    %2156 = vmatprep.subr.mxu0 0.0
    %2157 = vmatpush1.xpose.msra.mxu0 0.0
    %2158 = vmatprep.subr.mxu0 0.0
    %2159 = vmatpush1.xpose.msra.mxu0 0.0
    %2160 = vmatprep.subr.mxu0 0.0
    %2161 = vmatpush1.xpose.msra.mxu0 0.0
    %2162 = vmatprep.subr.mxu0 0.0
    %2163 = vmatpush1.xpose.msra.mxu0 0.0
    %2164 = vmatprep.subr.mxu0 0.0
    %2165 = vmatpush1.xpose.msra.mxu0 0.0
    %2166 = vmatprep.subr.mxu0 0.0
    %2167 = vmatpush1.xpose.msra.mxu0 0.0
    %2168 = vmatprep.subr.mxu0 0.0
    %2169 = vmatpush1.xpose.msra.mxu0 0.0
    %2170 = vmatprep.subr.mxu0 0.0
    %2171 = vmatpush1.xpose.msra.mxu0 0.0
    %2172 = vmatprep.subr.mxu0 0.0
    %2173 = vmatpush1.xpose.msra.mxu0 0.0
    %2174 = vmatprep.subr.mxu0 0.0
    %2175 = vmatpush1.xpose.msra.mxu0 0.0
    %2176 = vmatprep.subr.mxu0 0.0
    %2177 = vmatpush1.xpose.msra.mxu0 0.0
    %2178 = vmatprep.subr.mxu0 0.0
    %2179 = vmatpush1.xpose.msra.mxu0 %v2146
    %2180 = vmatprep.subr.mxu0 0.0
    %2181 = vmatpush2.xpose.msra.mxu0 0.0
    %2182 = vmatprep.subr.mxu0 0.0
    %2183 = vmatpush2.xpose.msra.mxu0 0.0
    %2184 = vmatprep.subr.mxu0 0.0
    %2185 = vmatpush2.xpose.msra.mxu0 0.0
    %2186 = vmatprep.subr.mxu0 0.0
    %2187 = vmatpush2.xpose.msra.mxu0 0.0
    %2188 = vmatprep.subr.mxu0 0.0
    %2189 = vmatpush2.xpose.msra.mxu0 0.0
    %2190 = vmatprep.subr.mxu0 0.0
    %2191 = vmatpush2.xpose.msra.mxu0 0.0
    %2192 = vmatprep.subr.mxu0 0.0
    %2193 = vmatpush2.xpose.msra.mxu0 0.0
    %2194 = vmatprep.subr.mxu0 0.0
    %2195 = vmatpush2.xpose.msra.mxu0 0.0
    %2196 = vmatprep.subr.mxu0 0.0
    %2197 = vmatpush2.xpose.msra.mxu0 0.0
    %2198 = vmatprep.subr.mxu0 0.0
    %2199 = vmatpush2.xpose.msra.mxu0 0.0
    %2200 = vmatprep.subr.mxu0 0.0
    %2201 = vmatpush2.xpose.msra.mxu0 0.0
    %2202 = vmatprep.subr.mxu0 0.0
    %2203 = vmatpush2.xpose.msra.mxu0 0.0
    %2204 = vmatprep.subr.mxu0 0.0
    %2205 = vmatpush2.xpose.msra.mxu0 0.0
    %2206 = vmatprep.subr.mxu0 0.0
    %2207 = vmatpush2.xpose.msra.mxu0 0.0
    %2208 = vmatprep.subr.mxu0 0.0
    %2209 = vmatpush2.xpose.msra.mxu0 0.0
    %2210 = vmatprep.subr.mxu0 0.0
    %2211 = vmatpush2.xpose.msra.mxu0 0.0
    %2212 = vmatprep.mubr.f32.mxu0 0.0
    %2213 = vmatmul.mubr.f32.gmra.mxu0 %v2144
    %v2214 = vpop.f32.mrf.mxu0
    %v2215 = vadd.f32 %v1604, %v2214
    %v2216 = vpop.f32.mrf.mxu0
    %2217 = vdwg.mxu0
    %v2218 = vmul.f32 %v1683, 0.35355338
    %v2219 = vmul.f32 %v1759, 0.35355338
    %v2220 = vmul.f32 %v1835, 0.35355338
    %v2221 = vmul.f32 %v1911, 0.35355338
    %v2222 = vmul.f32 %v1987, 0.35355338
    %v2223 = vmul.f32 %v2063, 0.35355338
    %v2224 = vmul.f32 %v2139, 0.35355338
    %v2225 = vmul.f32 %v2215, 0.35355338
    %v2226 = vadd.f32 %v2218, %v1606
    %v2227 = vadd.f32 %v2219, %v1606
    %v2228 = vadd.f32 %v2220, %v1607
    %v2229 = vadd.f32 %v2221, %v1607
    %v2230 = vadd.f32 %v2222, %v1608
    %v2231 = vadd.f32 %v2223, %v1608
    %v2232 = vadd.f32 %v2224, %v1609
    %v2233 = vadd.f32 %v2225, %v1609
    %v2234 = vsel %vm165, %v2226, -inf
    %2235 = vmax.xlane.f32.xlu0 %v2234
    %v2236 = vpop.xlane.xlu0 %2235
    %v2237 = vsel %vm165, %v2227, -inf
    %2238 = vmax.xlane.f32.xlu0 %v2237
    %v2239 = vpop.xlane.xlu0 %2238
    %v2240 = vsel %vm165, %v2228, -inf
    %2241 = vmax.xlane.f32.xlu0 %v2240
    %v2242 = vpop.xlane.xlu0 %2241
    %v2243 = vsel %vm165, %v2229, -inf
    %2244 = vmax.xlane.f32.xlu0 %v2243
    %v2245 = vpop.xlane.xlu0 %2244
    %v2246 = vsel %vm165, %v2230, -inf
    %2247 = vmax.xlane.f32.xlu0 %v2246
    %v2248 = vpop.xlane.xlu0 %2247
    %v2249 = vsel %vm165, %v2231, -inf
    %2250 = vmax.xlane.f32.xlu0 %v2249
    %v2251 = vpop.xlane.xlu0 %2250
    %v2252 = vsel %vm165, %v2232, -inf
    %2253 = vmax.xlane.f32.xlu0 %v2252
    %v2254 = vpop.xlane.xlu0 %2253
    %v2255 = vsel %vm165, %v2233, -inf
    %2256 = vmax.xlane.f32.xlu0 %v2255
    %v2257 = vpop.xlane.xlu0 %2256
    %v2258 = vsub.f32 %v2226, %v2236
    %v2259 = vsub.f32 %v2227, %v2239
    %v2260 = vsub.f32 %v2228, %v2242
    %v2261 = vsub.f32 %v2229, %v2245
    %v2262 = vsub.f32 %v2230, %v2248
    %v2263 = vsub.f32 %v2231, %v2251
    %v2264 = vsub.f32 %v2232, %v2254
    %v2265 = vsub.f32 %v2233, %v2257
    %v2266 = vmul.f32 %v2258, 1.442695
    %v2267 = vpow.pop %v2266
    %v2268 = vmul.f32 %v2259, 1.442695
    %v2269 = vpow.pop %v2268
    %v2270 = vmul.f32 %v2260, 1.442695
    %v2271 = vpow.pop %v2270
    %v2272 = vmul.f32 %v2261, 1.442695
    %v2273 = vpow.pop %v2272
    %v2274 = vmul.f32 %v2262, 1.442695
    %v2275 = vpow.pop %v2274
    %v2276 = vmul.f32 %v2263, 1.442695
    %v2277 = vpow.pop %v2276
    %v2278 = vmul.f32 %v2264, 1.442695
    %v2279 = vpow.pop %v2278
    %v2280 = vmul.f32 %v2265, 1.442695
    %v2281 = vpow.pop %v2280
    %v2282 = vsel %vm165, %v2267, 0.0
    %2283 = vadd.xlane.f32.xlu0 %v2282
    %v2284 = vpop.xlane.xlu0 %2283
    %v2285 = vsel %vm165, %v2269, 0.0
    %2286 = vadd.xlane.f32.xlu0 %v2285
    %v2287 = vpop.xlane.xlu0 %2286
    %v2288 = vsel %vm165, %v2271, 0.0
    %2289 = vadd.xlane.f32.xlu0 %v2288
    %v2290 = vpop.xlane.xlu0 %2289
    %v2291 = vsel %vm165, %v2273, 0.0
    %2292 = vadd.xlane.f32.xlu0 %v2291
    %v2293 = vpop.xlane.xlu0 %2292
    %v2294 = vsel %vm165, %v2275, 0.0
    %2295 = vadd.xlane.f32.xlu0 %v2294
    %v2296 = vpop.xlane.xlu0 %2295
    %v2297 = vsel %vm165, %v2277, 0.0
    %2298 = vadd.xlane.f32.xlu0 %v2297
    %v2299 = vpop.xlane.xlu0 %2298
    %v2300 = vsel %vm165, %v2279, 0.0
    %2301 = vadd.xlane.f32.xlu0 %v2300
    %v2302 = vpop.xlane.xlu0 %2301
    %v2303 = vsel %vm165, %v2281, 0.0
    %2304 = vadd.xlane.f32.xlu0 %v2303
    %v2305 = vpop.xlane.xlu0 %2304
    %v2306 = vrcp.pop %v2284
    %v2307 = vrcp.pop %v2287
    %v2308 = vrcp.pop %v2290
    %v2309 = vrcp.pop %v2293
    %v2310 = vrcp.pop %v2296
    %v2311 = vrcp.pop %v2299
    %v2312 = vrcp.pop %v2302
    %v2313 = vrcp.pop %v2305
    %v2314 = vmul.f32 %v2267, %v2306
    %v2315 = vmul.f32 %v2269, %v2307
    %v2316 = vmul.f32 %v2271, %v2308
    %v2317 = vmul.f32 %v2273, %v2309
    %v2318 = vmul.f32 %v2275, %v2310
    %v2319 = vmul.f32 %v2277, %v2311
    %v2320 = vmul.f32 %v2279, %v2312
    %v2321 = vmul.f32 %v2281, %v2313
    %2322 = vrot.lane.b32.xlu0 %v121, 64
    %v2323 = vpop.permute.xlu0 %2322
    %v2326 = vsel %vm165, %v2314, 0
    %2328 = vmatprep.subr.mxu0 0.0
    %2329 = vmatpush1.msra.mxu0 0.0
    %2330 = vmatprep.subr.mxu0 0.0
    %2331 = vmatpush1.msra.mxu0 0.0
    %2332 = vmatprep.subr.mxu0 0.0
    %2333 = vmatpush1.msra.mxu0 0.0
    %2334 = vmatprep.subr.mxu0 0.0
    %2335 = vmatpush1.msra.mxu0 0.0
    %2336 = vmatprep.subr.mxu0 0.0
    %2337 = vmatpush1.msra.mxu0 0.0
    %2338 = vmatprep.subr.mxu0 0.0
    %2339 = vmatpush1.msra.mxu0 0.0
    %2340 = vmatprep.subr.mxu0 0.0
    %2341 = vmatpush1.msra.mxu0 0.0
    %2342 = vmatprep.subr.mxu0 0.0
    %2343 = vmatpush1.msra.mxu0 0.0
    %2344 = vmatprep.subr.mxu0 0.0
    %2345 = vmatpush1.msra.mxu0 0.0
    %2346 = vmatprep.subr.mxu0 0.0
    %2347 = vmatpush1.msra.mxu0 0.0
    %2348 = vmatprep.subr.mxu0 0.0
    %2349 = vmatpush1.msra.mxu0 0.0
    %2350 = vmatprep.subr.mxu0 0.0
    %2351 = vmatpush1.msra.mxu0 0.0
    %2352 = vmatprep.subr.mxu0 0.0
    %2353 = vmatpush1.msra.mxu0 0.0
    %2354 = vmatprep.subr.mxu0 0.0
    %2355 = vmatpush1.msra.mxu0 0.0
    %2356 = vmatprep.subr.mxu0 0.0
    %2357 = vmatpush1.msra.mxu0 0.0
    %2358 = vmatprep.subr.mxu0 0.0
    %2359 = vmatpush1.msra.mxu0 %v2323
    %2360 = vmatprep.subr.mxu0 0.0
    %2361 = vmatpush2.msra.mxu0 0.0
    %2362 = vmatprep.subr.mxu0 0.0
    %2363 = vmatpush2.msra.mxu0 0.0
    %2364 = vmatprep.subr.mxu0 0.0
    %2365 = vmatpush2.msra.mxu0 0.0
    %2366 = vmatprep.subr.mxu0 0.0
    %2367 = vmatpush2.msra.mxu0 0.0
    %2368 = vmatprep.subr.mxu0 0.0
    %2369 = vmatpush2.msra.mxu0 0.0
    %2370 = vmatprep.subr.mxu0 0.0
    %2371 = vmatpush2.msra.mxu0 0.0
    %2372 = vmatprep.subr.mxu0 0.0
    %2373 = vmatpush2.msra.mxu0 0.0
    %2374 = vmatprep.subr.mxu0 0.0
    %2375 = vmatpush2.msra.mxu0 0.0
    %2376 = vmatprep.subr.mxu0 0.0
    %2377 = vmatpush2.msra.mxu0 0.0
    %2378 = vmatprep.subr.mxu0 0.0
    %2379 = vmatpush2.msra.mxu0 0.0
    %2380 = vmatprep.subr.mxu0 0.0
    %2381 = vmatpush2.msra.mxu0 0.0
    %2382 = vmatprep.subr.mxu0 0.0
    %2383 = vmatpush2.msra.mxu0 0.0
    %2384 = vmatprep.subr.mxu0 0.0
    %2385 = vmatpush2.msra.mxu0 0.0
    %2386 = vmatprep.subr.mxu0 0.0
    %2387 = vmatpush2.msra.mxu0 0.0
    %2388 = vmatprep.subr.mxu0 0.0
    %2389 = vmatpush2.msra.mxu0 0.0
    %2390 = vmatprep.subr.mxu0 0.0
    %2391 = vmatpush2.msra.mxu0 0.0
    %2392 = vmatprep.mubr.f32.mxu0 0.0
    %2393 = vmatmul.mubr.f32.gmra.mxu0 %v2326
    %v2394 = vpop.f32.mrf.mxu0
    %v2395 = vadd.f32 0.0, %v2394
    %v2396 = vpop.f32.mrf.mxu0
    %2397 = vdwg.mxu0
    %2398 = vrot.lane.b32.xlu0 %v126, 64
    %v2399 = vpop.permute.xlu0 %2398
    %v2402 = vsel %vm165, %v2315, 0
    %2404 = vmatprep.subr.mxu0 0.0
    %2405 = vmatpush1.msra.mxu0 0.0
    %2406 = vmatprep.subr.mxu0 0.0
    %2407 = vmatpush1.msra.mxu0 0.0
    %2408 = vmatprep.subr.mxu0 0.0
    %2409 = vmatpush1.msra.mxu0 0.0
    %2410 = vmatprep.subr.mxu0 0.0
    %2411 = vmatpush1.msra.mxu0 0.0
    %2412 = vmatprep.subr.mxu0 0.0
    %2413 = vmatpush1.msra.mxu0 0.0
    %2414 = vmatprep.subr.mxu0 0.0
    %2415 = vmatpush1.msra.mxu0 0.0
    %2416 = vmatprep.subr.mxu0 0.0
    %2417 = vmatpush1.msra.mxu0 0.0
    %2418 = vmatprep.subr.mxu0 0.0
    %2419 = vmatpush1.msra.mxu0 0.0
    %2420 = vmatprep.subr.mxu0 0.0
    %2421 = vmatpush1.msra.mxu0 0.0
    %2422 = vmatprep.subr.mxu0 0.0
    %2423 = vmatpush1.msra.mxu0 0.0
    %2424 = vmatprep.subr.mxu0 0.0
    %2425 = vmatpush1.msra.mxu0 0.0
    %2426 = vmatprep.subr.mxu0 0.0
    %2427 = vmatpush1.msra.mxu0 0.0
    %2428 = vmatprep.subr.mxu0 0.0
    %2429 = vmatpush1.msra.mxu0 0.0
    %2430 = vmatprep.subr.mxu0 0.0
    %2431 = vmatpush1.msra.mxu0 0.0
    %2432 = vmatprep.subr.mxu0 0.0
    %2433 = vmatpush1.msra.mxu0 0.0
    %2434 = vmatprep.subr.mxu0 0.0
    %2435 = vmatpush1.msra.mxu0 %v2399
    %2436 = vmatprep.subr.mxu0 0.0
    %2437 = vmatpush2.msra.mxu0 0.0
    %2438 = vmatprep.subr.mxu0 0.0
    %2439 = vmatpush2.msra.mxu0 0.0
    %2440 = vmatprep.subr.mxu0 0.0
    %2441 = vmatpush2.msra.mxu0 0.0
    %2442 = vmatprep.subr.mxu0 0.0
    %2443 = vmatpush2.msra.mxu0 0.0
    %2444 = vmatprep.subr.mxu0 0.0
    %2445 = vmatpush2.msra.mxu0 0.0
    %2446 = vmatprep.subr.mxu0 0.0
    %2447 = vmatpush2.msra.mxu0 0.0
    %2448 = vmatprep.subr.mxu0 0.0
    %2449 = vmatpush2.msra.mxu0 0.0
    %2450 = vmatprep.subr.mxu0 0.0
    %2451 = vmatpush2.msra.mxu0 0.0
    %2452 = vmatprep.subr.mxu0 0.0
    %2453 = vmatpush2.msra.mxu0 0.0
    %2454 = vmatprep.subr.mxu0 0.0
    %2455 = vmatpush2.msra.mxu0 0.0
    %2456 = vmatprep.subr.mxu0 0.0
    %2457 = vmatpush2.msra.mxu0 0.0
    %2458 = vmatprep.subr.mxu0 0.0
    %2459 = vmatpush2.msra.mxu0 0.0
    %2460 = vmatprep.subr.mxu0 0.0
    %2461 = vmatpush2.msra.mxu0 0.0
    %2462 = vmatprep.subr.mxu0 0.0
    %2463 = vmatpush2.msra.mxu0 0.0
    %2464 = vmatprep.subr.mxu0 0.0
    %2465 = vmatpush2.msra.mxu0 0.0
    %2466 = vmatprep.subr.mxu0 0.0
    %2467 = vmatpush2.msra.mxu0 0.0
    %2468 = vmatprep.mubr.f32.mxu0 0.0
    %2469 = vmatmul.mubr.f32.gmra.mxu0 %v2402
    %v2470 = vpop.f32.mrf.mxu0
    %v2471 = vadd.f32 0.0, %v2470
    %v2472 = vpop.f32.mrf.mxu0
    %2473 = vdwg.mxu0
    %2474 = vrot.lane.b32.xlu0 %v132, 64
    %v2475 = vpop.permute.xlu0 %2474
    %v2478 = vsel %vm165, %v2316, 0
    %2480 = vmatprep.subr.mxu0 0.0
    %2481 = vmatpush1.msra.mxu0 0.0
    %2482 = vmatprep.subr.mxu0 0.0
    %2483 = vmatpush1.msra.mxu0 0.0
    %2484 = vmatprep.subr.mxu0 0.0
    %2485 = vmatpush1.msra.mxu0 0.0
    %2486 = vmatprep.subr.mxu0 0.0
    %2487 = vmatpush1.msra.mxu0 0.0
    %2488 = vmatprep.subr.mxu0 0.0
    %2489 = vmatpush1.msra.mxu0 0.0
    %2490 = vmatprep.subr.mxu0 0.0
    %2491 = vmatpush1.msra.mxu0 0.0
    %2492 = vmatprep.subr.mxu0 0.0
    %2493 = vmatpush1.msra.mxu0 0.0
    %2494 = vmatprep.subr.mxu0 0.0
    %2495 = vmatpush1.msra.mxu0 0.0
    %2496 = vmatprep.subr.mxu0 0.0
    %2497 = vmatpush1.msra.mxu0 0.0
    %2498 = vmatprep.subr.mxu0 0.0
    %2499 = vmatpush1.msra.mxu0 0.0
    %2500 = vmatprep.subr.mxu0 0.0
    %2501 = vmatpush1.msra.mxu0 0.0
    %2502 = vmatprep.subr.mxu0 0.0
    %2503 = vmatpush1.msra.mxu0 0.0
    %2504 = vmatprep.subr.mxu0 0.0
    %2505 = vmatpush1.msra.mxu0 0.0
    %2506 = vmatprep.subr.mxu0 0.0
    %2507 = vmatpush1.msra.mxu0 0.0
    %2508 = vmatprep.subr.mxu0 0.0
    %2509 = vmatpush1.msra.mxu0 0.0
    %2510 = vmatprep.subr.mxu0 0.0
    %2511 = vmatpush1.msra.mxu0 %v2475
    %2512 = vmatprep.subr.mxu0 0.0
    %2513 = vmatpush2.msra.mxu0 0.0
    %2514 = vmatprep.subr.mxu0 0.0
    %2515 = vmatpush2.msra.mxu0 0.0
    %2516 = vmatprep.subr.mxu0 0.0
    %2517 = vmatpush2.msra.mxu0 0.0
    %2518 = vmatprep.subr.mxu0 0.0
    %2519 = vmatpush2.msra.mxu0 0.0
    %2520 = vmatprep.subr.mxu0 0.0
    %2521 = vmatpush2.msra.mxu0 0.0
    %2522 = vmatprep.subr.mxu0 0.0
    %2523 = vmatpush2.msra.mxu0 0.0
    %2524 = vmatprep.subr.mxu0 0.0
    %2525 = vmatpush2.msra.mxu0 0.0
    %2526 = vmatprep.subr.mxu0 0.0
    %2527 = vmatpush2.msra.mxu0 0.0
    %2528 = vmatprep.subr.mxu0 0.0
    %2529 = vmatpush2.msra.mxu0 0.0
    %2530 = vmatprep.subr.mxu0 0.0
    %2531 = vmatpush2.msra.mxu0 0.0
    %2532 = vmatprep.subr.mxu0 0.0
    %2533 = vmatpush2.msra.mxu0 0.0
    %2534 = vmatprep.subr.mxu0 0.0
    %2535 = vmatpush2.msra.mxu0 0.0
    %2536 = vmatprep.subr.mxu0 0.0
    %2537 = vmatpush2.msra.mxu0 0.0
    %2538 = vmatprep.subr.mxu0 0.0
    %2539 = vmatpush2.msra.mxu0 0.0
    %2540 = vmatprep.subr.mxu0 0.0
    %2541 = vmatpush2.msra.mxu0 0.0
    %2542 = vmatprep.subr.mxu0 0.0
    %2543 = vmatpush2.msra.mxu0 0.0
    %2544 = vmatprep.mubr.f32.mxu0 0.0
    %2545 = vmatmul.mubr.f32.gmra.mxu0 %v2478
    %v2546 = vpop.f32.mrf.mxu0
    %v2547 = vadd.f32 0.0, %v2546
    %v2548 = vpop.f32.mrf.mxu0
    %2549 = vdwg.mxu0
    %2550 = vrot.lane.b32.xlu0 %v134, 64
    %v2551 = vpop.permute.xlu0 %2550
    %v2554 = vsel %vm165, %v2317, 0
    %2556 = vmatprep.subr.mxu0 0.0
    %2557 = vmatpush1.msra.mxu0 0.0
    %2558 = vmatprep.subr.mxu0 0.0
    %2559 = vmatpush1.msra.mxu0 0.0
    %2560 = vmatprep.subr.mxu0 0.0
    %2561 = vmatpush1.msra.mxu0 0.0
    %2562 = vmatprep.subr.mxu0 0.0
    %2563 = vmatpush1.msra.mxu0 0.0
    %2564 = vmatprep.subr.mxu0 0.0
    %2565 = vmatpush1.msra.mxu0 0.0
    %2566 = vmatprep.subr.mxu0 0.0
    %2567 = vmatpush1.msra.mxu0 0.0
    %2568 = vmatprep.subr.mxu0 0.0
    %2569 = vmatpush1.msra.mxu0 0.0
    %2570 = vmatprep.subr.mxu0 0.0
    %2571 = vmatpush1.msra.mxu0 0.0
    %2572 = vmatprep.subr.mxu0 0.0
    %2573 = vmatpush1.msra.mxu0 0.0
    %2574 = vmatprep.subr.mxu0 0.0
    %2575 = vmatpush1.msra.mxu0 0.0
    %2576 = vmatprep.subr.mxu0 0.0
    %2577 = vmatpush1.msra.mxu0 0.0
    %2578 = vmatprep.subr.mxu0 0.0
    %2579 = vmatpush1.msra.mxu0 0.0
    %2580 = vmatprep.subr.mxu0 0.0
    %2581 = vmatpush1.msra.mxu0 0.0
    %2582 = vmatprep.subr.mxu0 0.0
    %2583 = vmatpush1.msra.mxu0 0.0
    %2584 = vmatprep.subr.mxu0 0.0
    %2585 = vmatpush1.msra.mxu0 0.0
    %2586 = vmatprep.subr.mxu0 0.0
    %2587 = vmatpush1.msra.mxu0 %v2551
    %2588 = vmatprep.subr.mxu0 0.0
    %2589 = vmatpush2.msra.mxu0 0.0
    %2590 = vmatprep.subr.mxu0 0.0
    %2591 = vmatpush2.msra.mxu0 0.0
    %2592 = vmatprep.subr.mxu0 0.0
    %2593 = vmatpush2.msra.mxu0 0.0
    %2594 = vmatprep.subr.mxu0 0.0
    %2595 = vmatpush2.msra.mxu0 0.0
    %2596 = vmatprep.subr.mxu0 0.0
    %2597 = vmatpush2.msra.mxu0 0.0
    %2598 = vmatprep.subr.mxu0 0.0
    %2599 = vmatpush2.msra.mxu0 0.0
    %2600 = vmatprep.subr.mxu0 0.0
    %2601 = vmatpush2.msra.mxu0 0.0
    %2602 = vmatprep.subr.mxu0 0.0
    %2603 = vmatpush2.msra.mxu0 0.0
    %2604 = vmatprep.subr.mxu0 0.0
    %2605 = vmatpush2.msra.mxu0 0.0
    %2606 = vmatprep.subr.mxu0 0.0
    %2607 = vmatpush2.msra.mxu0 0.0
    %2608 = vmatprep.subr.mxu0 0.0
    %2609 = vmatpush2.msra.mxu0 0.0
    %2610 = vmatprep.subr.mxu0 0.0
    %2611 = vmatpush2.msra.mxu0 0.0
    %2612 = vmatprep.subr.mxu0 0.0
    %2613 = vmatpush2.msra.mxu0 0.0
    %2614 = vmatprep.subr.mxu0 0.0
    %2615 = vmatpush2.msra.mxu0 0.0
    %2616 = vmatprep.subr.mxu0 0.0
    %2617 = vmatpush2.msra.mxu0 0.0
    %2618 = vmatprep.subr.mxu0 0.0
    %2619 = vmatpush2.msra.mxu0 0.0
    %2620 = vmatprep.mubr.f32.mxu0 0.0
    %2621 = vmatmul.mubr.f32.gmra.mxu0 %v2554
    %v2622 = vpop.f32.mrf.mxu0
    %v2623 = vadd.f32 0.0, %v2622
    %v2624 = vpop.f32.mrf.mxu0
    %2625 = vdwg.mxu0
    %2626 = vrot.lane.b32.xlu0 %v136, 64
    %v2627 = vpop.permute.xlu0 %2626
    %v2630 = vsel %vm165, %v2318, 0
    %2632 = vmatprep.subr.mxu0 0.0
    %2633 = vmatpush1.msra.mxu0 0.0
    %2634 = vmatprep.subr.mxu0 0.0
    %2635 = vmatpush1.msra.mxu0 0.0
    %2636 = vmatprep.subr.mxu0 0.0
    %2637 = vmatpush1.msra.mxu0 0.0
    %2638 = vmatprep.subr.mxu0 0.0
    %2639 = vmatpush1.msra.mxu0 0.0
    %2640 = vmatprep.subr.mxu0 0.0
    %2641 = vmatpush1.msra.mxu0 0.0
    %2642 = vmatprep.subr.mxu0 0.0
    %2643 = vmatpush1.msra.mxu0 0.0
    %2644 = vmatprep.subr.mxu0 0.0
    %2645 = vmatpush1.msra.mxu0 0.0
    %2646 = vmatprep.subr.mxu0 0.0
    %2647 = vmatpush1.msra.mxu0 0.0
    %2648 = vmatprep.subr.mxu0 0.0
    %2649 = vmatpush1.msra.mxu0 0.0
    %2650 = vmatprep.subr.mxu0 0.0
    %2651 = vmatpush1.msra.mxu0 0.0
    %2652 = vmatprep.subr.mxu0 0.0
    %2653 = vmatpush1.msra.mxu0 0.0
    %2654 = vmatprep.subr.mxu0 0.0
    %2655 = vmatpush1.msra.mxu0 0.0
    %2656 = vmatprep.subr.mxu0 0.0
    %2657 = vmatpush1.msra.mxu0 0.0
    %2658 = vmatprep.subr.mxu0 0.0
    %2659 = vmatpush1.msra.mxu0 0.0
    %2660 = vmatprep.subr.mxu0 0.0
    %2661 = vmatpush1.msra.mxu0 0.0
    %2662 = vmatprep.subr.mxu0 0.0
    %2663 = vmatpush1.msra.mxu0 %v2627
    %2664 = vmatprep.subr.mxu0 0.0
    %2665 = vmatpush2.msra.mxu0 0.0
    %2666 = vmatprep.subr.mxu0 0.0
    %2667 = vmatpush2.msra.mxu0 0.0
    %2668 = vmatprep.subr.mxu0 0.0
    %2669 = vmatpush2.msra.mxu0 0.0
    %2670 = vmatprep.subr.mxu0 0.0
    %2671 = vmatpush2.msra.mxu0 0.0
    %2672 = vmatprep.subr.mxu0 0.0
    %2673 = vmatpush2.msra.mxu0 0.0
    %2674 = vmatprep.subr.mxu0 0.0
    %2675 = vmatpush2.msra.mxu0 0.0
    %2676 = vmatprep.subr.mxu0 0.0
    %2677 = vmatpush2.msra.mxu0 0.0
    %2678 = vmatprep.subr.mxu0 0.0
    %2679 = vmatpush2.msra.mxu0 0.0
    %2680 = vmatprep.subr.mxu0 0.0
    %2681 = vmatpush2.msra.mxu0 0.0
    %2682 = vmatprep.subr.mxu0 0.0
    %2683 = vmatpush2.msra.mxu0 0.0
    %2684 = vmatprep.subr.mxu0 0.0
    %2685 = vmatpush2.msra.mxu0 0.0
    %2686 = vmatprep.subr.mxu0 0.0
    %2687 = vmatpush2.msra.mxu0 0.0
    %2688 = vmatprep.subr.mxu0 0.0
    %2689 = vmatpush2.msra.mxu0 0.0
    %2690 = vmatprep.subr.mxu0 0.0
    %2691 = vmatpush2.msra.mxu0 0.0
    %2692 = vmatprep.subr.mxu0 0.0
    %2693 = vmatpush2.msra.mxu0 0.0
    %2694 = vmatprep.subr.mxu0 0.0
    %2695 = vmatpush2.msra.mxu0 0.0
    %2696 = vmatprep.mubr.f32.mxu0 0.0
    %2697 = vmatmul.mubr.f32.gmra.mxu0 %v2630
    %v2698 = vpop.f32.mrf.mxu0
    %v2699 = vadd.f32 0.0, %v2698
    %v2700 = vpop.f32.mrf.mxu0
    %2701 = vdwg.mxu0
    %2702 = vrot.lane.b32.xlu0 %v138, 64
    %v2703 = vpop.permute.xlu0 %2702
    %v2706 = vsel %vm165, %v2319, 0
    %2708 = vmatprep.subr.mxu0 0.0
    %2709 = vmatpush1.msra.mxu0 0.0
    %2710 = vmatprep.subr.mxu0 0.0
    %2711 = vmatpush1.msra.mxu0 0.0
    %2712 = vmatprep.subr.mxu0 0.0
    %2713 = vmatpush1.msra.mxu0 0.0
    %2714 = vmatprep.subr.mxu0 0.0
    %2715 = vmatpush1.msra.mxu0 0.0
    %2716 = vmatprep.subr.mxu0 0.0
    %2717 = vmatpush1.msra.mxu0 0.0
    %2718 = vmatprep.subr.mxu0 0.0
    %2719 = vmatpush1.msra.mxu0 0.0
    %2720 = vmatprep.subr.mxu0 0.0
    %2721 = vmatpush1.msra.mxu0 0.0
    %2722 = vmatprep.subr.mxu0 0.0
    %2723 = vmatpush1.msra.mxu0 0.0
    %2724 = vmatprep.subr.mxu0 0.0
    %2725 = vmatpush1.msra.mxu0 0.0
    %2726 = vmatprep.subr.mxu0 0.0
    %2727 = vmatpush1.msra.mxu0 0.0
    %2728 = vmatprep.subr.mxu0 0.0
    %2729 = vmatpush1.msra.mxu0 0.0
    %2730 = vmatprep.subr.mxu0 0.0
    %2731 = vmatpush1.msra.mxu0 0.0
    %2732 = vmatprep.subr.mxu0 0.0
    %2733 = vmatpush1.msra.mxu0 0.0
    %2734 = vmatprep.subr.mxu0 0.0
    %2735 = vmatpush1.msra.mxu0 0.0
    %2736 = vmatprep.subr.mxu0 0.0
    %2737 = vmatpush1.msra.mxu0 0.0
    %2738 = vmatprep.subr.mxu0 0.0
    %2739 = vmatpush1.msra.mxu0 %v2703
    %2740 = vmatprep.subr.mxu0 0.0
    %2741 = vmatpush2.msra.mxu0 0.0
    %2742 = vmatprep.subr.mxu0 0.0
    %2743 = vmatpush2.msra.mxu0 0.0
    %2744 = vmatprep.subr.mxu0 0.0
    %2745 = vmatpush2.msra.mxu0 0.0
    %2746 = vmatprep.subr.mxu0 0.0
    %2747 = vmatpush2.msra.mxu0 0.0
    %2748 = vmatprep.subr.mxu0 0.0
    %2749 = vmatpush2.msra.mxu0 0.0
    %2750 = vmatprep.subr.mxu0 0.0
    %2751 = vmatpush2.msra.mxu0 0.0
    %2752 = vmatprep.subr.mxu0 0.0
    %2753 = vmatpush2.msra.mxu0 0.0
    %2754 = vmatprep.subr.mxu0 0.0
    %2755 = vmatpush2.msra.mxu0 0.0
    %2756 = vmatprep.subr.mxu0 0.0
    %2757 = vmatpush2.msra.mxu0 0.0
    %2758 = vmatprep.subr.mxu0 0.0
    %2759 = vmatpush2.msra.mxu0 0.0
    %2760 = vmatprep.subr.mxu0 0.0
    %2761 = vmatpush2.msra.mxu0 0.0
    %2762 = vmatprep.subr.mxu0 0.0
    %2763 = vmatpush2.msra.mxu0 0.0
    %2764 = vmatprep.subr.mxu0 0.0
    %2765 = vmatpush2.msra.mxu0 0.0
    %2766 = vmatprep.subr.mxu0 0.0
    %2767 = vmatpush2.msra.mxu0 0.0
    %2768 = vmatprep.subr.mxu0 0.0
    %2769 = vmatpush2.msra.mxu0 0.0
    %2770 = vmatprep.subr.mxu0 0.0
    %2771 = vmatpush2.msra.mxu0 0.0
    %2772 = vmatprep.mubr.f32.mxu0 0.0
    %2773 = vmatmul.mubr.f32.gmra.mxu0 %v2706
    %v2774 = vpop.f32.mrf.mxu0
    %v2775 = vadd.f32 0.0, %v2774
    %v2776 = vpop.f32.mrf.mxu0
    %2777 = vdwg.mxu0
    %2778 = vrot.lane.b32.xlu0 %v140, 64
    %v2779 = vpop.permute.xlu0 %2778
    %v2782 = vsel %vm165, %v2320, 0
    %2784 = vmatprep.subr.mxu0 0.0
    %2785 = vmatpush1.msra.mxu0 0.0
    %2786 = vmatprep.subr.mxu0 0.0
    %2787 = vmatpush1.msra.mxu0 0.0
    %2788 = vmatprep.subr.mxu0 0.0
    %2789 = vmatpush1.msra.mxu0 0.0
    %2790 = vmatprep.subr.mxu0 0.0
    %2791 = vmatpush1.msra.mxu0 0.0
    %2792 = vmatprep.subr.mxu0 0.0
    %2793 = vmatpush1.msra.mxu0 0.0
    %2794 = vmatprep.subr.mxu0 0.0
    %2795 = vmatpush1.msra.mxu0 0.0
    %2796 = vmatprep.subr.mxu0 0.0
    %2797 = vmatpush1.msra.mxu0 0.0
    %2798 = vmatprep.subr.mxu0 0.0
    %2799 = vmatpush1.msra.mxu0 0.0
    %2800 = vmatprep.subr.mxu0 0.0
    %2801 = vmatpush1.msra.mxu0 0.0
    %2802 = vmatprep.subr.mxu0 0.0
    %2803 = vmatpush1.msra.mxu0 0.0
    %2804 = vmatprep.subr.mxu0 0.0
    %2805 = vmatpush1.msra.mxu0 0.0
    %2806 = vmatprep.subr.mxu0 0.0
    %2807 = vmatpush1.msra.mxu0 0.0
    %2808 = vmatprep.subr.mxu0 0.0
    %2809 = vmatpush1.msra.mxu0 0.0
    %2810 = vmatprep.subr.mxu0 0.0
    %2811 = vmatpush1.msra.mxu0 0.0
    %2812 = vmatprep.subr.mxu0 0.0
    %2813 = vmatpush1.msra.mxu0 0.0
    %2814 = vmatprep.subr.mxu0 0.0
    %2815 = vmatpush1.msra.mxu0 %v2779
    %2816 = vmatprep.subr.mxu0 0.0
    %2817 = vmatpush2.msra.mxu0 0.0
    %2818 = vmatprep.subr.mxu0 0.0
    %2819 = vmatpush2.msra.mxu0 0.0
    %2820 = vmatprep.subr.mxu0 0.0
    %2821 = vmatpush2.msra.mxu0 0.0
    %2822 = vmatprep.subr.mxu0 0.0
    %2823 = vmatpush2.msra.mxu0 0.0
    %2824 = vmatprep.subr.mxu0 0.0
    %2825 = vmatpush2.msra.mxu0 0.0
    %2826 = vmatprep.subr.mxu0 0.0
    %2827 = vmatpush2.msra.mxu0 0.0
    %2828 = vmatprep.subr.mxu0 0.0
    %2829 = vmatpush2.msra.mxu0 0.0
    %2830 = vmatprep.subr.mxu0 0.0
    %2831 = vmatpush2.msra.mxu0 0.0
    %2832 = vmatprep.subr.mxu0 0.0
    %2833 = vmatpush2.msra.mxu0 0.0
    %2834 = vmatprep.subr.mxu0 0.0
    %2835 = vmatpush2.msra.mxu0 0.0
    %2836 = vmatprep.subr.mxu0 0.0
    %2837 = vmatpush2.msra.mxu0 0.0
    %2838 = vmatprep.subr.mxu0 0.0
    %2839 = vmatpush2.msra.mxu0 0.0
    %2840 = vmatprep.subr.mxu0 0.0
    %2841 = vmatpush2.msra.mxu0 0.0
    %2842 = vmatprep.subr.mxu0 0.0
    %2843 = vmatpush2.msra.mxu0 0.0
    %2844 = vmatprep.subr.mxu0 0.0
    %2845 = vmatpush2.msra.mxu0 0.0
    %2846 = vmatprep.subr.mxu0 0.0
    %2847 = vmatpush2.msra.mxu0 0.0
    %2848 = vmatprep.mubr.f32.mxu0 0.0
    %2849 = vmatmul.mubr.f32.gmra.mxu0 %v2782
    %v2850 = vpop.f32.mrf.mxu0
    %v2851 = vadd.f32 0.0, %v2850
    %v2852 = vpop.f32.mrf.mxu0
    %2853 = vdwg.mxu0
    %2854 = vrot.lane.b32.xlu0 %v142, 64
    %v2855 = vpop.permute.xlu0 %2854
    %v2858 = vsel %vm165, %v2321, 0
    %2860 = vmatprep.subr.mxu0 0.0
    %2861 = vmatpush1.msra.mxu0 0.0
    %2862 = vmatprep.subr.mxu0 0.0
    %2863 = vmatpush1.msra.mxu0 0.0
    %2864 = vmatprep.subr.mxu0 0.0
    %2865 = vmatpush1.msra.mxu0 0.0
    %2866 = vmatprep.subr.mxu0 0.0
    %2867 = vmatpush1.msra.mxu0 0.0
    %2868 = vmatprep.subr.mxu0 0.0
    %2869 = vmatpush1.msra.mxu0 0.0
    %2870 = vmatprep.subr.mxu0 0.0
    %2871 = vmatpush1.msra.mxu0 0.0
    %2872 = vmatprep.subr.mxu0 0.0
    %2873 = vmatpush1.msra.mxu0 0.0
    %2874 = vmatprep.subr.mxu0 0.0
    %2875 = vmatpush1.msra.mxu0 0.0
    %2876 = vmatprep.subr.mxu0 0.0
    %2877 = vmatpush1.msra.mxu0 0.0
    %2878 = vmatprep.subr.mxu0 0.0
    %2879 = vmatpush1.msra.mxu0 0.0
    %2880 = vmatprep.subr.mxu0 0.0
    %2881 = vmatpush1.msra.mxu0 0.0
    %2882 = vmatprep.subr.mxu0 0.0
    %2883 = vmatpush1.msra.mxu0 0.0
    %2884 = vmatprep.subr.mxu0 0.0
    %2885 = vmatpush1.msra.mxu0 0.0
    %2886 = vmatprep.subr.mxu0 0.0
    %2887 = vmatpush1.msra.mxu0 0.0
    %2888 = vmatprep.subr.mxu0 0.0
    %2889 = vmatpush1.msra.mxu0 0.0
    %2890 = vmatprep.subr.mxu0 0.0
    %2891 = vmatpush1.msra.mxu0 %v2855
    %2892 = vmatprep.subr.mxu0 0.0
    %2893 = vmatpush2.msra.mxu0 0.0
    %2894 = vmatprep.subr.mxu0 0.0
    %2895 = vmatpush2.msra.mxu0 0.0
    %2896 = vmatprep.subr.mxu0 0.0
    %2897 = vmatpush2.msra.mxu0 0.0
    %2898 = vmatprep.subr.mxu0 0.0
    %2899 = vmatpush2.msra.mxu0 0.0
    %2900 = vmatprep.subr.mxu0 0.0
    %2901 = vmatpush2.msra.mxu0 0.0
    %2902 = vmatprep.subr.mxu0 0.0
    %2903 = vmatpush2.msra.mxu0 0.0
    %2904 = vmatprep.subr.mxu0 0.0
    %2905 = vmatpush2.msra.mxu0 0.0
    %2906 = vmatprep.subr.mxu0 0.0
    %2907 = vmatpush2.msra.mxu0 0.0
    %2908 = vmatprep.subr.mxu0 0.0
    %2909 = vmatpush2.msra.mxu0 0.0
    %2910 = vmatprep.subr.mxu0 0.0
    %2911 = vmatpush2.msra.mxu0 0.0
    %2912 = vmatprep.subr.mxu0 0.0
    %2913 = vmatpush2.msra.mxu0 0.0
    %2914 = vmatprep.subr.mxu0 0.0
    %2915 = vmatpush2.msra.mxu0 0.0
    %2916 = vmatprep.subr.mxu0 0.0
    %2917 = vmatpush2.msra.mxu0 0.0
    %2918 = vmatprep.subr.mxu0 0.0
    %2919 = vmatpush2.msra.mxu0 0.0
    %2920 = vmatprep.subr.mxu0 0.0
    %2921 = vmatpush2.msra.mxu0 0.0
    %2922 = vmatprep.subr.mxu0 0.0
    %2923 = vmatpush2.msra.mxu0 0.0
    %2924 = vmatprep.mubr.f32.mxu0 0.0
    %2925 = vmatmul.mubr.f32.gmra.mxu0 %v2858
    %v2926 = vpop.f32.mrf.mxu0
    %v2927 = vadd.f32 0.0, %v2926
    %v2928 = vpop.f32.mrf.mxu0
    %2929 = vdwg.mxu0
    %2932 = vrot.lane.b32.xlu0 %v2547, 8
    %v2933 = vpop.permute.xlu0 %2932
    %2934 = vrot.lane.b32.xlu0 %v2623, 8
    %v2935 = vpop.permute.xlu0 %2934
    %2940 = vrot.lane.b32.xlu0 %v2699, 16
    %v2941 = vpop.permute.xlu0 %2940
    %2942 = vrot.lane.b32.xlu0 %v2775, 16
    %v2943 = vpop.permute.xlu0 %2942
    %2948 = vrot.lane.b32.xlu0 %v2851, 24
    %v2949 = vpop.permute.xlu0 %2948
    %2950 = vrot.lane.b32.xlu0 %v2927, 24
    %v2951 = vpop.permute.xlu0 %2950
    %v2954 = vsel %vm165, %v2395, %v2933
    %v2955 = vsel %vm165, %v2471, %v2935
    %vm2956 = vcmask 130048
    %v2957 = vsel %vm2956, %v2954, %v2941
    %v2958 = vsel %vm2956, %v2955, %v2943
    %vm2959 = vcmask 195584
    %v2960 = vsel %vm2959, %v2957, %v2949
    %v2961 = vsel %vm2959, %v2958, %v2951
    %2966 = vrot.lane.b32.xlu0 %v23, 32
    %v2967 = vpop.permute.xlu0 %2966
    %2968 = vrot.lane.b32.xlu0 %v24, 32
    %v2969 = vpop.permute.xlu0 %2968
    %2970 = vrot.lane.b32.xlu0 %v25, 32
    %v2971 = vpop.permute.xlu0 %2970
    %2972 = vrot.lane.b32.xlu0 %v26, 32
    %v2973 = vpop.permute.xlu0 %2972
    %2978 = vrot.lane.b32.xlu0 %v45, 32
    %v2979 = vpop.permute.xlu0 %2978
    %v2982 = vsel %vm47, %v2960, 0
    %v2985 = vsel %vm47, %v2961, 0
    %2987 = vmatprep.subr.mxu0 0.0
    %2988 = vmatpush1.msra.mxu0 0.0
    %2989 = vmatprep.subr.mxu0 0.0
    %2990 = vmatpush1.msra.mxu0 0.0
    %2991 = vmatprep.subr.mxu0 0.0
    %2992 = vmatpush1.msra.mxu0 0.0
    %2993 = vmatprep.subr.mxu0 0.0
    %2994 = vmatpush1.msra.mxu0 0.0
    %2995 = vmatprep.subr.mxu0 0.0
    %2996 = vmatpush1.msra.mxu0 0.0
    %2997 = vmatprep.subr.mxu0 0.0
    %2998 = vmatpush1.msra.mxu0 0.0
    %2999 = vmatprep.subr.mxu0 0.0
    %3000 = vmatpush1.msra.mxu0 0.0
    %3001 = vmatprep.subr.mxu0 0.0
    %3002 = vmatpush1.msra.mxu0 0.0
    %3003 = vmatprep.subr.mxu0 0.0
    %3004 = vmatpush1.msra.mxu0 0.0
    %3005 = vmatprep.subr.mxu0 0.0
    %3006 = vmatpush1.msra.mxu0 0.0
    %3007 = vmatprep.subr.mxu0 0.0
    %3008 = vmatpush1.msra.mxu0 0.0
    %3009 = vmatprep.subr.mxu0 0.0
    %3010 = vmatpush1.msra.mxu0 0.0
    %3011 = vmatprep.subr.mxu0 0.0
    %3012 = vmatpush1.msra.mxu0 %v2973
    %3013 = vmatprep.subr.mxu0 0.0
    %3014 = vmatpush1.msra.mxu0 %v2971
    %3015 = vmatprep.subr.mxu0 0.0
    %3016 = vmatpush1.msra.mxu0 %v2969
    %3017 = vmatprep.subr.mxu0 0.0
    %3018 = vmatpush1.msra.mxu0 %v2967
    %3019 = vmatprep.subr.mxu0 0.0
    %3020 = vmatpush2.msra.mxu0 0.0
    %3021 = vmatprep.subr.mxu0 0.0
    %3022 = vmatpush2.msra.mxu0 0.0
    %3023 = vmatprep.subr.mxu0 0.0
    %3024 = vmatpush2.msra.mxu0 0.0
    %3025 = vmatprep.subr.mxu0 0.0
    %3026 = vmatpush2.msra.mxu0 0.0
    %3027 = vmatprep.subr.mxu0 0.0
    %3028 = vmatpush2.msra.mxu0 0.0
    %3029 = vmatprep.subr.mxu0 0.0
    %3030 = vmatpush2.msra.mxu0 0.0
    %3031 = vmatprep.subr.mxu0 0.0
    %3032 = vmatpush2.msra.mxu0 0.0
    %3033 = vmatprep.subr.mxu0 0.0
    %3034 = vmatpush2.msra.mxu0 0.0
    %3035 = vmatprep.subr.mxu0 0.0
    %3036 = vmatpush2.msra.mxu0 0.0
    %3037 = vmatprep.subr.mxu0 0.0
    %3038 = vmatpush2.msra.mxu0 0.0
    %3039 = vmatprep.subr.mxu0 0.0
    %3040 = vmatpush2.msra.mxu0 0.0
    %3041 = vmatprep.subr.mxu0 0.0
    %3042 = vmatpush2.msra.mxu0 0.0
    %3043 = vmatprep.subr.mxu0 0.0
    %3044 = vmatpush2.msra.mxu0 0.0
    %3045 = vmatprep.subr.mxu0 0.0
    %3046 = vmatpush2.msra.mxu0 0.0
    %3047 = vmatprep.subr.mxu0 0.0
    %3048 = vmatpush2.msra.mxu0 0.0
    %3049 = vmatprep.subr.mxu0 0.0
    %3050 = vmatpush2.msra.mxu0 0.0
    %3051 = vmatprep.mubr.f32.mxu0 0.0
    %3052 = vmatmul.mubr.f32.gmra.mxu0 %v2982
    %v3053 = vpop.f32.mrf.mxu0
    %v3054 = vadd.f32 %v2979, %v3053
    %v3055 = vpop.f32.mrf.mxu0
    %3056 = vmatprep.mubr.f32.mxu0 0.0
    %3057 = vmatmul.mubr.f32.gmra.mxu0 %v2985
    %v3058 = vpop.f32.mrf.mxu0
    %v3059 = vadd.f32 %v2979, %v3058
    %v3060 = vpop.f32.mrf.mxu0
    %3061 = vdwg.mxu0
    %v3062 = vadd.f32 %v21, %v3054
    %v3063 = vadd.f32 %v22, %v3059
    %v3064 = vsel %vm47, %v3062, 0.0
    %3065 = vadd.xlane.f32.xlu0 %v3064
    %v3066 = vpop.xlane.xlu0 %3065
    %v3067 = vsel %vm47, %v3063, 0.0
    %3068 = vadd.xlane.f32.xlu0 %v3067
    %v3069 = vpop.xlane.xlu0 %3068
    %v3070 = vrcp.pop 32.0
    %v3071 = vmul.f32 %v3066, %v3070
    %v3072 = vmul.f32 %v3069, %v3070
    %v3073 = vsub.f32 %v3062, %v3071
    %v3074 = vsub.f32 %v3063, %v3072
    %v3075 = vmul.f32 %v3073, %v3073
    %v3076 = vmul.f32 %v3074, %v3074
    %v3077 = vsel %vm47, %v3075, 0.0
    %3078 = vadd.xlane.f32.xlu0 %v3077
    %v3079 = vpop.xlane.xlu0 %3078
    %v3080 = vsel %vm47, %v3076, 0.0
    %3081 = vadd.xlane.f32.xlu0 %v3080
    %v3082 = vpop.xlane.xlu0 %3081
    %v3083 = vmul.f32 %v3079, %v3070
    %v3084 = vmul.f32 %v3082, %v3070
    %v3085 = vadd.f32 %v3083, 1e-06
    %v3086 = vadd.f32 %v3084, 1e-06
    %v3087 = vrsqrt.pop %v3085
    %v3088 = vrsqrt.pop %v3086
    %v3089 = vmul.f32 %v3073, %v3087
    %v3090 = vmul.f32 %v3074, %v3088
    %v3091 = vadd.f32 %v3089, %v3054
    %v3092 = vadd.f32 %v3090, %v3059
    %v3093 = vsel %vm47, %v3091, 0.0
    %3094 = vadd.xlane.f32.xlu0 %v3093
    %v3095 = vpop.xlane.xlu0 %3094
    %v3096 = vsel %vm47, %v3092, 0.0
    %3097 = vadd.xlane.f32.xlu0 %v3096
    %v3098 = vpop.xlane.xlu0 %3097
    %v3099 = vmul.f32 %v3095, %v3070
    %v3100 = vmul.f32 %v3098, %v3070
    %v3101 = vsub.f32 %v3091, %v3099
    %v3102 = vsub.f32 %v3092, %v3100
    %v3103 = vmul.f32 %v3101, %v3101
    %v3104 = vmul.f32 %v3102, %v3102
    %v3105 = vsel %vm47, %v3103, 0.0
    %3106 = vadd.xlane.f32.xlu0 %v3105
    %v3107 = vpop.xlane.xlu0 %3106
    %v3108 = vsel %vm47, %v3104, 0.0
    %3109 = vadd.xlane.f32.xlu0 %v3108
    %v3110 = vpop.xlane.xlu0 %3109
    %v3111 = vmul.f32 %v3107, %v3070
    %v3112 = vmul.f32 %v3110, %v3070
    %v3113 = vadd.f32 %v3111, 1e-06
    %v3114 = vadd.f32 %v3112, 1e-06
    %v3115 = vrsqrt.pop %v3113
    %v3116 = vrsqrt.pop %v3114
    %v3117 = vmul.f32 %v3101, %v3115
    %v3118 = vmul.f32 %v3102, %v3116
    %v3120 = vlaneseq
    %v3121 = vshrl.u32 %v3120, 7
    %v3122 = vsub.s32 0, %v3121
    %v3123 = vrot.slane %v40, %v3122
    %v3126 = vsel %vm47, %v3117, 0
    %v3129 = vsel %vm47, %v3118, 0
    %3131 = vmatprep.subr.mxu0 0.0
    %3132 = vmatpush1.msra.mxu0 0.0
    %3133 = vmatprep.subr.mxu0 0.0
    %3134 = vmatpush1.msra.mxu0 0.0
    %3135 = vmatprep.subr.mxu0 0.0
    %3136 = vmatpush1.msra.mxu0 0.0
    %3137 = vmatprep.subr.mxu0 0.0
    %3138 = vmatpush1.msra.mxu0 0.0
    %3139 = vmatprep.subr.mxu0 0.0
    %3140 = vmatpush1.msra.mxu0 0.0
    %3141 = vmatprep.subr.mxu0 0.0
    %3142 = vmatpush1.msra.mxu0 0.0
    %3143 = vmatprep.subr.mxu0 0.0
    %3144 = vmatpush1.msra.mxu0 0.0
    %3145 = vmatprep.subr.mxu0 0.0
    %3146 = vmatpush1.msra.mxu0 0.0
    %3147 = vmatprep.subr.mxu0 0.0
    %3148 = vmatpush1.msra.mxu0 0.0
    %3149 = vmatprep.subr.mxu0 0.0
    %3150 = vmatpush1.msra.mxu0 0.0
    %3151 = vmatprep.subr.mxu0 0.0
    %3152 = vmatpush1.msra.mxu0 0.0
    %3153 = vmatprep.subr.mxu0 0.0
    %3154 = vmatpush1.msra.mxu0 0.0
    %3155 = vmatprep.subr.mxu0 0.0
    %3156 = vmatpush1.msra.mxu0 %v30
    %3157 = vmatprep.subr.mxu0 0.0
    %3158 = vmatpush1.msra.mxu0 %v29
    %3159 = vmatprep.subr.mxu0 0.0
    %3160 = vmatpush1.msra.mxu0 %v28
    %3161 = vmatprep.subr.mxu0 0.0
    %3162 = vmatpush1.msra.mxu0 %v27
    %3163 = vmatprep.subr.mxu0 0.0
    %3164 = vmatpush2.msra.mxu0 0.0
    %3165 = vmatprep.subr.mxu0 0.0
    %3166 = vmatpush2.msra.mxu0 0.0
    %3167 = vmatprep.subr.mxu0 0.0
    %3168 = vmatpush2.msra.mxu0 0.0
    %3169 = vmatprep.subr.mxu0 0.0
    %3170 = vmatpush2.msra.mxu0 0.0
    %3171 = vmatprep.subr.mxu0 0.0
    %3172 = vmatpush2.msra.mxu0 0.0
    %3173 = vmatprep.subr.mxu0 0.0
    %3174 = vmatpush2.msra.mxu0 0.0
    %3175 = vmatprep.subr.mxu0 0.0
    %3176 = vmatpush2.msra.mxu0 0.0
    %3177 = vmatprep.subr.mxu0 0.0
    %3178 = vmatpush2.msra.mxu0 0.0
    %3179 = vmatprep.subr.mxu0 0.0
    %3180 = vmatpush2.msra.mxu0 0.0
    %3181 = vmatprep.subr.mxu0 0.0
    %3182 = vmatpush2.msra.mxu0 0.0
    %3183 = vmatprep.subr.mxu0 0.0
    %3184 = vmatpush2.msra.mxu0 0.0
    %3185 = vmatprep.subr.mxu0 0.0
    %3186 = vmatpush2.msra.mxu0 0.0
    %3187 = vmatprep.subr.mxu0 0.0
    %3188 = vmatpush2.msra.mxu0 0.0
    %3189 = vmatprep.subr.mxu0 0.0
    %3190 = vmatpush2.msra.mxu0 0.0
    %3191 = vmatprep.subr.mxu0 0.0
    %3192 = vmatpush2.msra.mxu0 0.0
    %3193 = vmatprep.subr.mxu0 0.0
    %3194 = vmatpush2.msra.mxu0 0.0
    %3195 = vmatprep.mubr.f32.mxu0 0.0
    %3196 = vmatmul.mubr.f32.gmra.mxu0 %v3126
    %v3197 = vpop.f32.mrf.mxu0
    %v3198 = vadd.f32 %v3123, %v3197
    %v3199 = vpop.f32.mrf.mxu0
    %3200 = vmatprep.mubr.f32.mxu0 0.0
    %3201 = vmatmul.mubr.f32.gmra.mxu0 %v3129
    %v3202 = vpop.f32.mrf.mxu0
    %v3203 = vadd.f32 %v3123, %v3202
    %v3204 = vpop.f32.mrf.mxu0
    %3205 = vdwg.mxu0
    %v3206 = vmax.f32 %v3198, 0.0
    %v3207 = vmax.f32 %v3203, 0.0
    %3208 = vrot.lane.b32.xlu0 %v3123, 64
    %v3209 = vpop.permute.xlu0 %3208
    %vm3211 = vcmask 523264
    %v3213 = vsel %vm3211, %v3206, 0
    %v3216 = vsel %vm3211, %v3207, 0
    %3218 = vmatprep.subr.mxu0 0.0
    %3219 = vmatpush1.msra.mxu0 0.0
    %3220 = vmatprep.subr.mxu0 0.0
    %3221 = vmatpush1.msra.mxu0 0.0
    %3222 = vmatprep.subr.mxu0 0.0
    %3223 = vmatpush1.msra.mxu0 0.0
    %3224 = vmatprep.subr.mxu0 0.0
    %3225 = vmatpush1.msra.mxu0 0.0
    %3226 = vmatprep.subr.mxu0 0.0
    %3227 = vmatpush1.msra.mxu0 0.0
    %3228 = vmatprep.subr.mxu0 0.0
    %3229 = vmatpush1.msra.mxu0 0.0
    %3230 = vmatprep.subr.mxu0 0.0
    %3231 = vmatpush1.msra.mxu0 0.0
    %3232 = vmatprep.subr.mxu0 0.0
    %3233 = vmatpush1.msra.mxu0 0.0
    %3234 = vmatprep.subr.mxu0 0.0
    %3235 = vmatpush1.msra.mxu0 %v38
    %3236 = vmatprep.subr.mxu0 0.0
    %3237 = vmatpush1.msra.mxu0 %v37
    %3238 = vmatprep.subr.mxu0 0.0
    %3239 = vmatpush1.msra.mxu0 %v36
    %3240 = vmatprep.subr.mxu0 0.0
    %3241 = vmatpush1.msra.mxu0 %v35
    %3242 = vmatprep.subr.mxu0 0.0
    %3243 = vmatpush1.msra.mxu0 %v34
    %3244 = vmatprep.subr.mxu0 0.0
    %3245 = vmatpush1.msra.mxu0 %v33
    %3246 = vmatprep.subr.mxu0 0.0
    %3247 = vmatpush1.msra.mxu0 %v32
    %3248 = vmatprep.subr.mxu0 0.0
    %3249 = vmatpush1.msra.mxu0 %v31
    %3250 = vmatprep.subr.mxu0 0.0
    %3251 = vmatpush2.msra.mxu0 0.0
    %3252 = vmatprep.subr.mxu0 0.0
    %3253 = vmatpush2.msra.mxu0 0.0
    %3254 = vmatprep.subr.mxu0 0.0
    %3255 = vmatpush2.msra.mxu0 0.0
    %3256 = vmatprep.subr.mxu0 0.0
    %3257 = vmatpush2.msra.mxu0 0.0
    %3258 = vmatprep.subr.mxu0 0.0
    %3259 = vmatpush2.msra.mxu0 0.0
    %3260 = vmatprep.subr.mxu0 0.0
    %3261 = vmatpush2.msra.mxu0 0.0
    %3262 = vmatprep.subr.mxu0 0.0
    %3263 = vmatpush2.msra.mxu0 0.0
    %3264 = vmatprep.subr.mxu0 0.0
    %3265 = vmatpush2.msra.mxu0 0.0
    %3266 = vmatprep.subr.mxu0 0.0
    %3267 = vmatpush2.msra.mxu0 0.0
    %3268 = vmatprep.subr.mxu0 0.0
    %3269 = vmatpush2.msra.mxu0 0.0
    %3270 = vmatprep.subr.mxu0 0.0
    %3271 = vmatpush2.msra.mxu0 0.0
    %3272 = vmatprep.subr.mxu0 0.0
    %3273 = vmatpush2.msra.mxu0 0.0
    %3274 = vmatprep.subr.mxu0 0.0
    %3275 = vmatpush2.msra.mxu0 0.0
    %3276 = vmatprep.subr.mxu0 0.0
    %3277 = vmatpush2.msra.mxu0 0.0
    %3278 = vmatprep.subr.mxu0 0.0
    %3279 = vmatpush2.msra.mxu0 0.0
    %3280 = vmatprep.subr.mxu0 0.0
    %3281 = vmatpush2.msra.mxu0 0.0
    %3282 = vmatprep.mubr.f32.mxu0 0.0
    %3283 = vmatmul.mubr.f32.gmra.mxu0 %v3213
    %v3284 = vpop.f32.mrf.mxu0
    %v3285 = vadd.f32 %v3209, %v3284
    %v3286 = vpop.f32.mrf.mxu0
    %3287 = vmatprep.mubr.f32.mxu0 0.0
    %3288 = vmatmul.mubr.f32.gmra.mxu0 %v3216
    %v3289 = vpop.f32.mrf.mxu0
    %v3290 = vadd.f32 %v3209, %v3289
    %v3291 = vpop.f32.mrf.mxu0
    %3292 = vdwg.mxu0
    %v3293 = vadd.f32 %v3117, %v3285
    %v3294 = vadd.f32 %v3118, %v3290
    %v3295 = vsel %vm47, %v3293, 0.0
    %3296 = vadd.xlane.f32.xlu0 %v3295
    %v3297 = vpop.xlane.xlu0 %3296
    %v3298 = vsel %vm47, %v3294, 0.0
    %3299 = vadd.xlane.f32.xlu0 %v3298
    %v3300 = vpop.xlane.xlu0 %3299
    %v3301 = vmul.f32 %v3297, %v3070
    %v3302 = vmul.f32 %v3300, %v3070
    %v3303 = vsub.f32 %v3293, %v3301
    %v3304 = vsub.f32 %v3294, %v3302
    %v3305 = vmul.f32 %v3303, %v3303
    %v3306 = vmul.f32 %v3304, %v3304
    %v3307 = vsel %vm47, %v3305, 0.0
    %3308 = vadd.xlane.f32.xlu0 %v3307
    %v3309 = vpop.xlane.xlu0 %3308
    %v3310 = vsel %vm47, %v3306, 0.0
    %3311 = vadd.xlane.f32.xlu0 %v3310
    %v3312 = vpop.xlane.xlu0 %3311
    %v3313 = vmul.f32 %v3309, %v3070
    %v3314 = vmul.f32 %v3312, %v3070
    %v3315 = vadd.f32 %v3313, 1e-06
    %v3316 = vadd.f32 %v3314, 1e-06
    %v3317 = vrsqrt.pop %v3315
    %v3318 = vrsqrt.pop %v3316
    %v3319 = vmul.f32 %v3303, %v3317
    %v3320 = vmul.f32 %v3304, %v3318
    %3321 = vst.msk [vmem:[#allocation2] sm:$0xff] %vm47, %v3319
    %3322 = vst.msk [vmem:[#allocation2 + $0x8] sm:$0xff] %vm47, %v3320
    // Predicated region
    $region22: #{tpu_custom_call.1} parent=1 // pred_check
      _
    $region23: #{tpu_custom_call.1} parent=1 // pred_check_branch
      %3324 = sbr.rel (0) target = $region25
    $region24: #{tpu_custom_call.1} parent=1 // pred_region
      %s3326 = ssub.s32 256, 256
      %3327 = vsyncadd [#allocation3], %s3326
      %s3328 = sshll.u32 [#allocation2], 4
      %s3329 = int_to_ptr.vmem [resolvable:$true] %s3328
      %3334 = dma.vmem_to_hbm [thread:$0]  %s3329, 256, %s5, [#allocation3], 128, 128, 8
    $region25: #{tpu_custom_call.1} parent=1 // pred_fallthru
      _
    // Predicated region
    $region26: #{tpu_custom_call.1} parent=1 // pred_check
      _
    $region27: #{tpu_custom_call.1} parent=1 // pred_check_branch
      %3336 = sbr.rel (0) target = $region29
    $region28: #{tpu_custom_call.1} parent=1 // pred_region
      %3337 = dma.done [#allocation3], 256
    $region29: #{tpu_custom_call.1} parent=1 // pred_fallthru
      _
    %3338 = vsyncpa [#allocation3], 1

</llo_original>
